<compile_context>
chip_gen: v7x
topology: tpu7x:2x2x1
jax: 0.10.0
libtpu: 0.0.40
codegen_flags: <defaults>
</compile_context>

<pallas_src>
import functools

import jax
import jax.numpy as jnp
import numpy as np
from jax import lax
from jax.experimental import pallas as pl
from jax.experimental.pallas import tpu as pltpu

_LANE = 128
_SUBLANE = 8
_DEFAULT_BATCH_TILE = 256
_NUM_FACTORS = 7                 # R, E1..E6
_VMEM_HEADROOM = 8 << 20         # leave headroom for Mosaic internals / small buffers
_GATHER_BYTES_RATIO = 8          # prefer HBM row-gather once tables >> gathered rows


def _round_up(x, m):
    return ((x + m - 1) // m) * m


def _vmem_capacity_bytes():
    try:
        info = pltpu.get_tpu_info()
        cap = getattr(info, "vmem_capacity_bytes", None)
        if cap:
            return int(cap)
    except Exception:
        pass
    return 64 << 20  # v7x per-core size; conservative lower bound for v5e/v6e


# --------------------------------------------------------------------------------------
# Kernel bodies
# --------------------------------------------------------------------------------------
def _mcp_resident_kernel(*refs, batch_tile, group, idx_is_global):
    """Tables VMEM-resident; per-row dynamic-slice gather; grouped aligned stores."""
    idx_refs = refs[:_NUM_FACTORS]                      # SMEM int32
    tab_refs = refs[_NUM_FACTORS:2 * _NUM_FACTORS]      # VMEM tables
    out_ref = refs[2 * _NUM_FACTORS]                    # (batch_tile, 1) f32
    prod_ref = refs[2 * _NUM_FACTORS + 1]               # VMEM (batch_tile, D_pad) f32

    off = pl.program_id(0) * batch_tile if idx_is_global else 0

    def body(g, carry):
        j0 = pl.multiple_of(g * group, group)
        rows = []
        for u in range(group):
            j = j0 + u
            row = tab_refs[0][pl.ds(idx_refs[0][off + j], 1), :].astype(jnp.float32)
            for t in range(1, _NUM_FACTORS):
                row = row * tab_refs[t][pl.ds(idx_refs[t][off + j], 1), :].astype(jnp.float32)
            rows.append(row)
        # One aligned (group, D_pad) store instead of `group` masked 1-sublane stores.
        prod_ref[pl.ds(j0, group), :] = jnp.concatenate(rows, axis=0)
        return carry

    lax.fori_loop(0, batch_tile // group, body, 0)
    # TODO(synk): hidden_drop (torch.nn.Dropout) is identity in eval mode; a training
    # variant would mask rows here via pltpu.prng_seed / pltpu.prng_random_bits.
    out_ref[...] = jnp.sum(prod_ref[...], axis=-1, keepdims=True)


def _mcp_gather_kernel(*refs, batch_tile, idx_is_global):
    """Tables stay in HBM; manual double-buffered per-row DMA gather (static slots)."""
    idx_refs = refs[:_NUM_FACTORS]                      # SMEM int32
    tab_refs = refs[_NUM_FACTORS:2 * _NUM_FACTORS]      # HBM (pl.ANY) tables
    out_ref = refs[2 * _NUM_FACTORS]                    # (batch_tile, 1) f32
    rowbuf = refs[2 * _NUM_FACTORS + 1]                 # VMEM (2, 7, 1, D_pad)
    sem = refs[2 * _NUM_FACTORS + 2]                    # DMA sems (2, 7)
    prod_ref = refs[2 * _NUM_FACTORS + 3]               # VMEM (batch_tile, D_pad) f32

    off = pl.program_id(0) * batch_tile if idx_is_global else 0

    def start_fetch(j, slot):
        for t in range(_NUM_FACTORS):
            pltpu.make_async_copy(
                tab_refs[t].at[pl.ds(idx_refs[t][off + j], 1), :],
                rowbuf.at[slot, t],
                sem.at[slot, t],
            ).start()

    def wait_fetch(slot):
        for t in range(_NUM_FACTORS):
            pltpu.make_async_copy(
                tab_refs[t].at[pl.ds(0, 1), :],
                rowbuf.at[slot, t],
                sem.at[slot, t],
            ).wait()

    def consume(j, slot):
        row = rowbuf[slot, 0].astype(jnp.float32)
        for t in range(1, _NUM_FACTORS):
            row = row * rowbuf[slot, t].astype(jnp.float32)
        prod_ref[pl.ds(j, 1), :] = row

    start_fetch(0, 0)

    def body(g, carry):
        j0 = g * 2
        wait_fetch(0)
        start_fetch(j0 + 1, 1)          # batch_tile is even -> always in range
        consume(j0, 0)
        wait_fetch(1)

        @pl.when(j0 + 2 < batch_tile)
        def _():
            start_fetch(j0 + 2, 0)

        consume(j0 + 1, 1)
        return carry

    lax.fori_loop(0, batch_tile // 2, body, 0)
    out_ref[...] = jnp.sum(prod_ref[...], axis=-1, keepdims=True)


# --------------------------------------------------------------------------------------
# pallas_call builder
# --------------------------------------------------------------------------------------
def _build_call(tables, *, D_pad, B_pad, batch_tile, resident, single_buffer,
                idx_mode, vmem_limit):
    num_tiles = B_pad // batch_tile
    table_dtype = tables[0].dtype
    itemsize = 2 if table_dtype == jnp.bfloat16 else 4

    if resident:
        if single_buffer:
            # Constant block index -> single buffer is enough (halves table VMEM).
            table_specs = [pl.BlockSpec(t.shape, lambda i, *_: (0, 0),
                                        pipeline_mode=pl.Buffered(1)) for t in tables]
        else:
            table_specs = [pl.BlockSpec(t.shape, lambda i, *_: (0, 0)) for t in tables]
        group = 8 if D_pad <= 256 else 4  # limit vreg pressure for wide embeddings
        kernel = functools.partial(_mcp_resident_kernel, batch_tile=batch_tile,
                                   group=group, idx_is_global=(idx_mode == "prefetch"))
        scratch = [pltpu.VMEM((batch_tile, D_pad), jnp.float32)]
        bytes_accessed = (sum(int(t.size) * itemsize for t in tables)
                          + _NUM_FACTORS * B_pad * 4 + B_pad * 4)
    else:
        table_specs = [pl.BlockSpec(memory_space=pl.ANY) for _ in tables]
        kernel = functools.partial(_mcp_gather_kernel, batch_tile=batch_tile,
                                   idx_is_global=(idx_mode == "prefetch"))
        scratch = [pltpu.VMEM((2, _NUM_FACTORS, 1, D_pad), table_dtype),
                   pltpu.SemaphoreType.DMA((2, _NUM_FACTORS)),
                   pltpu.VMEM((batch_tile, D_pad), jnp.float32)]
        bytes_accessed = (_NUM_FACTORS * B_pad * D_pad * itemsize
                          + _NUM_FACTORS * B_pad * 4 + B_pad * 4)

    out_spec = pl.BlockSpec((batch_tile, 1), lambda i, *_: (i, 0))

    if idx_mode == "prefetch":
        num_prefetch = _NUM_FACTORS
        in_specs = table_specs
    else:
        idx_specs = [pl.BlockSpec((batch_tile,), lambda i, *_: (i,),
                                  memory_space=pltpu.MemorySpace.SMEM)
                     for _ in range(_NUM_FACTORS)]
        num_prefetch = 0
        in_specs = idx_specs + table_specs

    grid_spec = pltpu.PrefetchScalarGridSpec(
        num_scalar_prefetch=num_prefetch,
        grid=(num_tiles,),
        in_specs=in_specs,
        out_specs=out_spec,
        scratch_shapes=scratch)

    cost = pl.CostEstimate(flops=_NUM_FACTORS * B_pad * D_pad,
                           transcendentals=0,
                           bytes_accessed=int(bytes_accessed))

    return pl.pallas_call(
        kernel,
        grid_spec=grid_spec,
        out_shape=jax.ShapeDtypeStruct((B_pad, 1), jnp.float32),
        compiler_params=pltpu.CompilerParams(
            dimension_semantics=("parallel",),
            vmem_limit_bytes=int(vmem_limit)),
        cost_estimate=cost,
    )


# --------------------------------------------------------------------------------------
# Public wrapper
# --------------------------------------------------------------------------------------
def mcp_forward(R, E1, E2, E3, E4, E5, E6,
                r_idx, e1_idx, e2_idx, e3_idx, e4_idx, e5_idx, e6_idx,
                *, batch_tile=None, force_hbm_gather=False):
    """Pallas implementation of MCP.forward (eval mode).

    R: (num_rel, D); E1..E6: (num_ent, D); *_idx: (B,) int32.  Returns (B,) float32.
    Tables may be float32 or bfloat16 (bf16 halves VMEM / table-DMA bytes).
    """
    tables_in = (R, E1, E2, E3, E4, E5, E6)
    idxs_in = (r_idx, e1_idx, e2_idx, e3_idx, e4_idx, e5_idx, e6_idx)

    B = int(r_idx.shape[0])
    D = int(R.shape[1])
    D_pad = _round_up(D, _LANE)

    # Batch tile: multiple of 8 sublanes; cap so large batches give >= 2 tiles
    # (lets the "parallel" grid axis shard across v7x's two TensorCores).
    if batch_tile is None:
        bt = min(_DEFAULT_BATCH_TILE, _round_up(B, _SUBLANE))
        if B >= 2 * _SUBLANE:
            bt = min(bt, _round_up((B + 1) // 2, _SUBLANE))
        batch_tile = bt
    batch_tile = max(_SUBLANE, _round_up(int(batch_tile), _SUBLANE))
    B_pad = _round_up(B, batch_tile)

    common_dtype = (jnp.bfloat16
                    if all(t.dtype == jnp.bfloat16 for t in tables_in)
                    else jnp.float32)
    itemsize = 2 if common_dtype == jnp.bfloat16 else 4

    def pad_table(t):
        t = t.astype(common_dtype)
        if D_pad != D:
            t = jnp.pad(t, ((0, 0), (0, D_pad - D)))     # exact: zeros under mul+sum
        return t

    def pad_idx(i):
        i = i.astype(jnp.int32)
        if B_pad != B:
            i = jnp.pad(i, (0, B_pad - B))               # pad with row 0 (valid), sliced off
        return i

    tables = [pad_table(t) for t in tables_in]
    idxs = [pad_idx(i) for i in idxs_in]

    table_bytes = sum(int(np.prod(t.shape)) * itemsize for t in tables)
    gathered_bytes = _NUM_FACTORS * B_pad * D_pad * itemsize
    prod_bytes = batch_tile * D_pad * 4
    out_bytes = 2 * batch_tile * 4
    capacity = _vmem_capacity_bytes()
    budget = max(capacity - _VMEM_HEADROOM, 16 << 20)

    def resident_need(buffer_factor):
        return buffer_factor * table_bytes + prod_bytes + out_bytes

    use_gather = (force_hbm_gather
                  or resident_need(1) > budget
                  or table_bytes > _GATHER_BYTES_RATIO * gathered_bytes)

    # Attempt configurations in decreasing preference; degrade gracefully if the
    # current Pallas build rejects an option (e.g. single-buffered pipeline_mode
    # or blocked SMEM index inputs).
    gather_need = prod_bytes + 2 * _NUM_FACTORS * D_pad * itemsize + out_bytes
    gather_limit = min(max(4 * gather_need, 32 << 20), budget)
    if use_gather:
        attempts = [
            dict(resident=False, single_buffer=False, idx_mode="blocked_smem",
                 vmem_limit=gather_limit),
            dict(resident=False, single_buffer=False, idx_mode="prefetch",
                 vmem_limit=gather_limit),
        ]
    else:
        lim1 = min(max(resident_need(1) + (4 << 20), 32 << 20), budget)
        lim2 = min(max(resident_need(2) + (4 << 20), 32 << 20), budget)
        attempts = [dict(resident=True, single_buffer=True, idx_mode="blocked_smem",
                         vmem_limit=lim1)]
        if resident_need(2) <= budget:
            attempts.append(dict(resident=True, single_buffer=False,
                                 idx_mode="blocked_smem", vmem_limit=lim2))
            attempts.append(dict(resident=True, single_buffer=False,
                                 idx_mode="prefetch", vmem_limit=lim2))
        attempts.append(dict(resident=False, single_buffer=False,
                             idx_mode="blocked_smem", vmem_limit=gather_limit))
        attempts.append(dict(resident=False, single_buffer=False,
                             idx_mode="prefetch", vmem_limit=gather_limit))

    last_err = None
    for cfg in attempts:
        try:
            call = _build_call(tables, D_pad=D_pad, B_pad=B_pad,
                               batch_tile=batch_tile, **cfg)
            out = call(*idxs, *tables)
            return out[:B, 0]
        except Exception as err:            # try the next configuration
            last_err = err
    raise last_err


# --------------------------------------------------------------------------------------
# Synthetic init mirroring MCP.init()
# --------------------------------------------------------------------------------------
def _xavier_normal(key, shape):
    fan_in, fan_out = shape[1], shape[0]
    std = float(np.sqrt(2.0 / (fan_in + fan_out)))
    return jax.random.normal(key, shape, dtype=jnp.float32) * std


def init_params(key, num_ent, num_rel, emb_dim):
    """Entity-table row 0 = ones, remaining rows xavier-normal; R xavier-normal."""
    keys = jax.random.split(key, 7)
    ents = []
    for i in range(6):
        w = _xavier_normal(keys[i], (num_ent, emb_dim))
        w = w.at[0].set(jnp.ones((emb_dim,), jnp.float32))
        ents.append(w)
    R = _xavier_normal(keys[6], (num_rel, emb_dim))
    return R, ents


if __name__ == "__main__":
    num_ent, num_rel, emb_dim, batch = 10, 5, 32, 8

    key = jax.random.PRNGKey(0)
    pkey, ikey = jax.random.split(key)
    R, (E1, E2, E3, E4, E5, E6) = init_params(pkey, num_ent, num_rel, emb_dim)

    ik = jax.random.split(ikey, 7)
    r_idx = jax.random.randint(ik[0], (batch,), 0, num_rel, dtype=jnp.int32)
    e_idx = [jax.random.randint(ik[i + 1], (batch,), 0, num_ent, dtype=jnp.int32)
             for i in range(6)]

    # Pure-JAX reference.
    ref = jnp.sum(
        R[r_idx] * E1[e_idx[0]] * E2[e_idx[1]] * E3[e_idx[2]]
        * E4[e_idx[3]] * E5[e_idx[4]] * E6[e_idx[5]],
        axis=1,
    )

    # Default path (VMEM-resident tables).
    out = mcp_forward(R, E1, E2, E3, E4, E5, E6, r_idx, *e_idx)
    out = jax.block_until_ready(out)
    assert out.shape == (batch,)
    np.testing.assert_allclose(np.asarray(out), np.asarray(ref), rtol=1e-5, atol=1e-5)

    # Exercise the large-table HBM row-gather fallback on the same inputs.
    out_gather = mcp_forward(R, E1, E2, E3, E4, E5, E6, r_idx, *e_idx,
                             force_hbm_gather=True)
    out_gather = jax.block_until_ready(out_gather)
    np.testing.assert_allclose(np.asarray(out_gather), np.asarray(ref),
                               rtol=1e-5, atol=1e-5)

    print("KERNEL_OK")
</pallas_src>

<mosaic_0001>
module attributes {stable_mosaic.version = 11 : i64} {
  func.func @_mcp_resident_kernel(%arg0: i32, %arg1: memref<8xi32, #tpu.memory_space<smem>>, %arg2: memref<8xi32, #tpu.memory_space<smem>>, %arg3: memref<8xi32, #tpu.memory_space<smem>>, %arg4: memref<8xi32, #tpu.memory_space<smem>>, %arg5: memref<8xi32, #tpu.memory_space<smem>>, %arg6: memref<8xi32, #tpu.memory_space<smem>>, %arg7: memref<8xi32, #tpu.memory_space<smem>>, %arg8: memref<5x128xf32, #tpu.memory_space<vmem>>, %arg9: memref<10x128xf32, #tpu.memory_space<vmem>>, %arg10: memref<10x128xf32, #tpu.memory_space<vmem>>, %arg11: memref<10x128xf32, #tpu.memory_space<vmem>>, %arg12: memref<10x128xf32, #tpu.memory_space<vmem>>, %arg13: memref<10x128xf32, #tpu.memory_space<vmem>>, %arg14: memref<10x128xf32, #tpu.memory_space<vmem>>, %arg15: memref<8x1xf32, #tpu.memory_space<vmem>>, %arg16: memref<8x128xf32, #tpu.memory_space<vmem>>) attributes {dimension_semantics = [#tpu.dimension_semantics<parallel>], iteration_bounds = array<i64: 1>, scalar_prefetch = 7 : i64, scratch_operands = 1 : i64, tpu.core_type = #tpu.core_type<tc>, window_params = [{pipeline_mode = #tpu.pipeline_mode<synchronous>, transform_indices = @transform_0, window_bounds = array<i64: 5, 128>}, {pipeline_mode = #tpu.pipeline_mode<synchronous>, transform_indices = @transform_1, window_bounds = array<i64: 10, 128>}, {pipeline_mode = #tpu.pipeline_mode<synchronous>, transform_indices = @transform_2, window_bounds = array<i64: 10, 128>}, {pipeline_mode = #tpu.pipeline_mode<synchronous>, transform_indices = @transform_3, window_bounds = array<i64: 10, 128>}, {pipeline_mode = #tpu.pipeline_mode<synchronous>, transform_indices = @transform_4, window_bounds = array<i64: 10, 128>}, {pipeline_mode = #tpu.pipeline_mode<synchronous>, transform_indices = @transform_5, window_bounds = array<i64: 10, 128>}, {pipeline_mode = #tpu.pipeline_mode<synchronous>, transform_indices = @transform_6, window_bounds = array<i64: 10, 128>}, {transform_indices = @transform_7, window_bounds = array<i64: 8, 1>}]} {
    %c8_i32 = arith.constant 8 : i32
    %0 = arith.muli %arg0, %c8_i32 : i32
    %c0_i32 = arith.constant 0 : i32
    %c8_i32_0 = arith.constant 8 : i32
    %1 = arith.muli %c0_i32, %c8_i32_0 : i32
    %2 = tpu.assume_multiple %1, 8 : i32
    %c0_i32_1 = arith.constant 0 : i32
    %3 = arith.addi %2, %c0_i32_1 : i32
    %4 = arith.addi %0, %3 : i32
    %5 = arith.index_cast %4 : i32 to index
    %6 = memref.load %arg1[%5] : memref<8xi32, #tpu.memory_space<smem>>
    %7 = arith.index_cast %6 : i32 to index
    %c0 = arith.constant 0 : index
    %8 = vector.load %arg8[%7, %c0] : memref<5x128xf32, #tpu.memory_space<vmem>>, vector<1x128xf32>
    %9 = arith.addi %0, %3 : i32
    %10 = arith.index_cast %9 : i32 to index
    %11 = memref.load %arg2[%10] : memref<8xi32, #tpu.memory_space<smem>>
    %12 = arith.index_cast %11 : i32 to index
    %c0_2 = arith.constant 0 : index
    %13 = vector.load %arg9[%12, %c0_2] : memref<10x128xf32, #tpu.memory_space<vmem>>, vector<1x128xf32>
    %14 = arith.mulf %8, %13 : vector<1x128xf32>
    %15 = arith.addi %0, %3 : i32
    %16 = arith.index_cast %15 : i32 to index
    %17 = memref.load %arg3[%16] : memref<8xi32, #tpu.memory_space<smem>>
    %18 = arith.index_cast %17 : i32 to index
    %c0_3 = arith.constant 0 : index
    %19 = vector.load %arg10[%18, %c0_3] : memref<10x128xf32, #tpu.memory_space<vmem>>, vector<1x128xf32>
    %20 = arith.mulf %14, %19 : vector<1x128xf32>
    %21 = arith.addi %0, %3 : i32
    %22 = arith.index_cast %21 : i32 to index
    %23 = memref.load %arg4[%22] : memref<8xi32, #tpu.memory_space<smem>>
    %24 = arith.index_cast %23 : i32 to index
    %c0_4 = arith.constant 0 : index
    %25 = vector.load %arg11[%24, %c0_4] : memref<10x128xf32, #tpu.memory_space<vmem>>, vector<1x128xf32>
    %26 = arith.mulf %20, %25 : vector<1x128xf32>
    %27 = arith.addi %0, %3 : i32
    %28 = arith.index_cast %27 : i32 to index
    %29 = memref.load %arg5[%28] : memref<8xi32, #tpu.memory_space<smem>>
    %30 = arith.index_cast %29 : i32 to index
    %c0_5 = arith.constant 0 : index
    %31 = vector.load %arg12[%30, %c0_5] : memref<10x128xf32, #tpu.memory_space<vmem>>, vector<1x128xf32>
    %32 = arith.mulf %26, %31 : vector<1x128xf32>
    %33 = arith.addi %0, %3 : i32
    %34 = arith.index_cast %33 : i32 to index
    %35 = memref.load %arg6[%34] : memref<8xi32, #tpu.memory_space<smem>>
    %36 = arith.index_cast %35 : i32 to index
    %c0_6 = arith.constant 0 : index
    %37 = vector.load %arg13[%36, %c0_6] : memref<10x128xf32, #tpu.memory_space<vmem>>, vector<1x128xf32>
    %38 = arith.mulf %32, %37 : vector<1x128xf32>
    %39 = arith.addi %0, %3 : i32
    %40 = arith.index_cast %39 : i32 to index
    %41 = memref.load %arg7[%40] : memref<8xi32, #tpu.memory_space<smem>>
    %42 = arith.index_cast %41 : i32 to index
    %c0_7 = arith.constant 0 : index
    %43 = vector.load %arg14[%42, %c0_7] : memref<10x128xf32, #tpu.memory_space<vmem>>, vector<1x128xf32>
    %44 = arith.mulf %38, %43 : vector<1x128xf32>
    %c1_i32 = arith.constant 1 : i32
    %45 = arith.addi %2, %c1_i32 : i32
    %46 = arith.addi %0, %45 : i32
    %47 = arith.index_cast %46 : i32 to index
    %48 = memref.load %arg1[%47] : memref<8xi32, #tpu.memory_space<smem>>
    %49 = arith.index_cast %48 : i32 to index
    %c0_8 = arith.constant 0 : index
    %50 = vector.load %arg8[%49, %c0_8] : memref<5x128xf32, #tpu.memory_space<vmem>>, vector<1x128xf32>
    %51 = arith.addi %0, %45 : i32
    %52 = arith.index_cast %51 : i32 to index
    %53 = memref.load %arg2[%52] : memref<8xi32, #tpu.memory_space<smem>>
    %54 = arith.index_cast %53 : i32 to index
    %c0_9 = arith.constant 0 : index
    %55 = vector.load %arg9[%54, %c0_9] : memref<10x128xf32, #tpu.memory_space<vmem>>, vector<1x128xf32>
    %56 = arith.mulf %50, %55 : vector<1x128xf32>
    %57 = arith.addi %0, %45 : i32
    %58 = arith.index_cast %57 : i32 to index
    %59 = memref.load %arg3[%58] : memref<8xi32, #tpu.memory_space<smem>>
    %60 = arith.index_cast %59 : i32 to index
    %c0_10 = arith.constant 0 : index
    %61 = vector.load %arg10[%60, %c0_10] : memref<10x128xf32, #tpu.memory_space<vmem>>, vector<1x128xf32>
    %62 = arith.mulf %56, %61 : vector<1x128xf32>
    %63 = arith.addi %0, %45 : i32
    %64 = arith.index_cast %63 : i32 to index
    %65 = memref.load %arg4[%64] : memref<8xi32, #tpu.memory_space<smem>>
    %66 = arith.index_cast %65 : i32 to index
    %c0_11 = arith.constant 0 : index
    %67 = vector.load %arg11[%66, %c0_11] : memref<10x128xf32, #tpu.memory_space<vmem>>, vector<1x128xf32>
    %68 = arith.mulf %62, %67 : vector<1x128xf32>
    %69 = arith.addi %0, %45 : i32
    %70 = arith.index_cast %69 : i32 to index
    %71 = memref.load %arg5[%70] : memref<8xi32, #tpu.memory_space<smem>>
    %72 = arith.index_cast %71 : i32 to index
    %c0_12 = arith.constant 0 : index
    %73 = vector.load %arg12[%72, %c0_12] : memref<10x128xf32, #tpu.memory_space<vmem>>, vector<1x128xf32>
    %74 = arith.mulf %68, %73 : vector<1x128xf32>
    %75 = arith.addi %0, %45 : i32
    %76 = arith.index_cast %75 : i32 to index
    %77 = memref.load %arg6[%76] : memref<8xi32, #tpu.memory_space<smem>>
    %78 = arith.index_cast %77 : i32 to index
    %c0_13 = arith.constant 0 : index
    %79 = vector.load %arg13[%78, %c0_13] : memref<10x128xf32, #tpu.memory_space<vmem>>, vector<1x128xf32>
    %80 = arith.mulf %74, %79 : vector<1x128xf32>
    %81 = arith.addi %0, %45 : i32
    %82 = arith.index_cast %81 : i32 to index
    %83 = memref.load %arg7[%82] : memref<8xi32, #tpu.memory_space<smem>>
    %84 = arith.index_cast %83 : i32 to index
    %c0_14 = arith.constant 0 : index
    %85 = vector.load %arg14[%84, %c0_14] : memref<10x128xf32, #tpu.memory_space<vmem>>, vector<1x128xf32>
    %86 = arith.mulf %80, %85 : vector<1x128xf32>
    %c2_i32 = arith.constant 2 : i32
    %87 = arith.addi %2, %c2_i32 : i32
    %88 = arith.addi %0, %87 : i32
    %89 = arith.index_cast %88 : i32 to index
    %90 = memref.load %arg1[%89] : memref<8xi32, #tpu.memory_space<smem>>
    %91 = arith.index_cast %90 : i32 to index
    %c0_15 = arith.constant 0 : index
    %92 = vector.load %arg8[%91, %c0_15] : memref<5x128xf32, #tpu.memory_space<vmem>>, vector<1x128xf32>
    %93 = arith.addi %0, %87 : i32
    %94 = arith.index_cast %93 : i32 to index
    %95 = memref.load %arg2[%94] : memref<8xi32, #tpu.memory_space<smem>>
    %96 = arith.index_cast %95 : i32 to index
    %c0_16 = arith.constant 0 : index
    %97 = vector.load %arg9[%96, %c0_16] : memref<10x128xf32, #tpu.memory_space<vmem>>, vector<1x128xf32>
    %98 = arith.mulf %92, %97 : vector<1x128xf32>
    %99 = arith.addi %0, %87 : i32
    %100 = arith.index_cast %99 : i32 to index
    %101 = memref.load %arg3[%100] : memref<8xi32, #tpu.memory_space<smem>>
    %102 = arith.index_cast %101 : i32 to index
    %c0_17 = arith.constant 0 : index
    %103 = vector.load %arg10[%102, %c0_17] : memref<10x128xf32, #tpu.memory_space<vmem>>, vector<1x128xf32>
    %104 = arith.mulf %98, %103 : vector<1x128xf32>
    %105 = arith.addi %0, %87 : i32
    %106 = arith.index_cast %105 : i32 to index
    %107 = memref.load %arg4[%106] : memref<8xi32, #tpu.memory_space<smem>>
    %108 = arith.index_cast %107 : i32 to index
    %c0_18 = arith.constant 0 : index
    %109 = vector.load %arg11[%108, %c0_18] : memref<10x128xf32, #tpu.memory_space<vmem>>, vector<1x128xf32>
    %110 = arith.mulf %104, %109 : vector<1x128xf32>
    %111 = arith.addi %0, %87 : i32
    %112 = arith.index_cast %111 : i32 to index
    %113 = memref.load %arg5[%112] : memref<8xi32, #tpu.memory_space<smem>>
    %114 = arith.index_cast %113 : i32 to index
    %c0_19 = arith.constant 0 : index
    %115 = vector.load %arg12[%114, %c0_19] : memref<10x128xf32, #tpu.memory_space<vmem>>, vector<1x128xf32>
    %116 = arith.mulf %110, %115 : vector<1x128xf32>
    %117 = arith.addi %0, %87 : i32
    %118 = arith.index_cast %117 : i32 to index
    %119 = memref.load %arg6[%118] : memref<8xi32, #tpu.memory_space<smem>>
    %120 = arith.index_cast %119 : i32 to index
    %c0_20 = arith.constant 0 : index
    %121 = vector.load %arg13[%120, %c0_20] : memref<10x128xf32, #tpu.memory_space<vmem>>, vector<1x128xf32>
    %122 = arith.mulf %116, %121 : vector<1x128xf32>
    %123 = arith.addi %0, %87 : i32
    %124 = arith.index_cast %123 : i32 to index
    %125 = memref.load %arg7[%124] : memref<8xi32, #tpu.memory_space<smem>>
    %126 = arith.index_cast %125 : i32 to index
    %c0_21 = arith.constant 0 : index
    %127 = vector.load %arg14[%126, %c0_21] : memref<10x128xf32, #tpu.memory_space<vmem>>, vector<1x128xf32>
    %128 = arith.mulf %122, %127 : vector<1x128xf32>
    %c3_i32 = arith.constant 3 : i32
    %129 = arith.addi %2, %c3_i32 : i32
    %130 = arith.addi %0, %129 : i32
    %131 = arith.index_cast %130 : i32 to index
    %132 = memref.load %arg1[%131] : memref<8xi32, #tpu.memory_space<smem>>
    %133 = arith.index_cast %132 : i32 to index
    %c0_22 = arith.constant 0 : index
    %134 = vector.load %arg8[%133, %c0_22] : memref<5x128xf32, #tpu.memory_space<vmem>>, vector<1x128xf32>
    %135 = arith.addi %0, %129 : i32
    %136 = arith.index_cast %135 : i32 to index
    %137 = memref.load %arg2[%136] : memref<8xi32, #tpu.memory_space<smem>>
    %138 = arith.index_cast %137 : i32 to index
    %c0_23 = arith.constant 0 : index
    %139 = vector.load %arg9[%138, %c0_23] : memref<10x128xf32, #tpu.memory_space<vmem>>, vector<1x128xf32>
    %140 = arith.mulf %134, %139 : vector<1x128xf32>
    %141 = arith.addi %0, %129 : i32
    %142 = arith.index_cast %141 : i32 to index
    %143 = memref.load %arg3[%142] : memref<8xi32, #tpu.memory_space<smem>>
    %144 = arith.index_cast %143 : i32 to index
    %c0_24 = arith.constant 0 : index
    %145 = vector.load %arg10[%144, %c0_24] : memref<10x128xf32, #tpu.memory_space<vmem>>, vector<1x128xf32>
    %146 = arith.mulf %140, %145 : vector<1x128xf32>
    %147 = arith.addi %0, %129 : i32
    %148 = arith.index_cast %147 : i32 to index
    %149 = memref.load %arg4[%148] : memref<8xi32, #tpu.memory_space<smem>>
    %150 = arith.index_cast %149 : i32 to index
    %c0_25 = arith.constant 0 : index
    %151 = vector.load %arg11[%150, %c0_25] : memref<10x128xf32, #tpu.memory_space<vmem>>, vector<1x128xf32>
    %152 = arith.mulf %146, %151 : vector<1x128xf32>
    %153 = arith.addi %0, %129 : i32
    %154 = arith.index_cast %153 : i32 to index
    %155 = memref.load %arg5[%154] : memref<8xi32, #tpu.memory_space<smem>>
    %156 = arith.index_cast %155 : i32 to index
    %c0_26 = arith.constant 0 : index
    %157 = vector.load %arg12[%156, %c0_26] : memref<10x128xf32, #tpu.memory_space<vmem>>, vector<1x128xf32>
    %158 = arith.mulf %152, %157 : vector<1x128xf32>
    %159 = arith.addi %0, %129 : i32
    %160 = arith.index_cast %159 : i32 to index
    %161 = memref.load %arg6[%160] : memref<8xi32, #tpu.memory_space<smem>>
    %162 = arith.index_cast %161 : i32 to index
    %c0_27 = arith.constant 0 : index
    %163 = vector.load %arg13[%162, %c0_27] : memref<10x128xf32, #tpu.memory_space<vmem>>, vector<1x128xf32>
    %164 = arith.mulf %158, %163 : vector<1x128xf32>
    %165 = arith.addi %0, %129 : i32
    %166 = arith.index_cast %165 : i32 to index
    %167 = memref.load %arg7[%166] : memref<8xi32, #tpu.memory_space<smem>>
    %168 = arith.index_cast %167 : i32 to index
    %c0_28 = arith.constant 0 : index
    %169 = vector.load %arg14[%168, %c0_28] : memref<10x128xf32, #tpu.memory_space<vmem>>, vector<1x128xf32>
    %170 = arith.mulf %164, %169 : vector<1x128xf32>
    %c4_i32 = arith.constant 4 : i32
    %171 = arith.addi %2, %c4_i32 : i32
    %172 = arith.addi %0, %171 : i32
    %173 = arith.index_cast %172 : i32 to index
    %174 = memref.load %arg1[%173] : memref<8xi32, #tpu.memory_space<smem>>
    %175 = arith.index_cast %174 : i32 to index
    %c0_29 = arith.constant 0 : index
    %176 = vector.load %arg8[%175, %c0_29] : memref<5x128xf32, #tpu.memory_space<vmem>>, vector<1x128xf32>
    %177 = arith.addi %0, %171 : i32
    %178 = arith.index_cast %177 : i32 to index
    %179 = memref.load %arg2[%178] : memref<8xi32, #tpu.memory_space<smem>>
    %180 = arith.index_cast %179 : i32 to index
    %c0_30 = arith.constant 0 : index
    %181 = vector.load %arg9[%180, %c0_30] : memref<10x128xf32, #tpu.memory_space<vmem>>, vector<1x128xf32>
    %182 = arith.mulf %176, %181 : vector<1x128xf32>
    %183 = arith.addi %0, %171 : i32
    %184 = arith.index_cast %183 : i32 to index
    %185 = memref.load %arg3[%184] : memref<8xi32, #tpu.memory_space<smem>>
    %186 = arith.index_cast %185 : i32 to index
    %c0_31 = arith.constant 0 : index
    %187 = vector.load %arg10[%186, %c0_31] : memref<10x128xf32, #tpu.memory_space<vmem>>, vector<1x128xf32>
    %188 = arith.mulf %182, %187 : vector<1x128xf32>
    %189 = arith.addi %0, %171 : i32
    %190 = arith.index_cast %189 : i32 to index
    %191 = memref.load %arg4[%190] : memref<8xi32, #tpu.memory_space<smem>>
    %192 = arith.index_cast %191 : i32 to index
    %c0_32 = arith.constant 0 : index
    %193 = vector.load %arg11[%192, %c0_32] : memref<10x128xf32, #tpu.memory_space<vmem>>, vector<1x128xf32>
    %194 = arith.mulf %188, %193 : vector<1x128xf32>
    %195 = arith.addi %0, %171 : i32
    %196 = arith.index_cast %195 : i32 to index
    %197 = memref.load %arg5[%196] : memref<8xi32, #tpu.memory_space<smem>>
    %198 = arith.index_cast %197 : i32 to index
    %c0_33 = arith.constant 0 : index
    %199 = vector.load %arg12[%198, %c0_33] : memref<10x128xf32, #tpu.memory_space<vmem>>, vector<1x128xf32>
    %200 = arith.mulf %194, %199 : vector<1x128xf32>
    %201 = arith.addi %0, %171 : i32
    %202 = arith.index_cast %201 : i32 to index
    %203 = memref.load %arg6[%202] : memref<8xi32, #tpu.memory_space<smem>>
    %204 = arith.index_cast %203 : i32 to index
    %c0_34 = arith.constant 0 : index
    %205 = vector.load %arg13[%204, %c0_34] : memref<10x128xf32, #tpu.memory_space<vmem>>, vector<1x128xf32>
    %206 = arith.mulf %200, %205 : vector<1x128xf32>
    %207 = arith.addi %0, %171 : i32
    %208 = arith.index_cast %207 : i32 to index
    %209 = memref.load %arg7[%208] : memref<8xi32, #tpu.memory_space<smem>>
    %210 = arith.index_cast %209 : i32 to index
    %c0_35 = arith.constant 0 : index
    %211 = vector.load %arg14[%210, %c0_35] : memref<10x128xf32, #tpu.memory_space<vmem>>, vector<1x128xf32>
    %212 = arith.mulf %206, %211 : vector<1x128xf32>
    %c5_i32 = arith.constant 5 : i32
    %213 = arith.addi %2, %c5_i32 : i32
    %214 = arith.addi %0, %213 : i32
    %215 = arith.index_cast %214 : i32 to index
    %216 = memref.load %arg1[%215] : memref<8xi32, #tpu.memory_space<smem>>
    %217 = arith.index_cast %216 : i32 to index
    %c0_36 = arith.constant 0 : index
    %218 = vector.load %arg8[%217, %c0_36] : memref<5x128xf32, #tpu.memory_space<vmem>>, vector<1x128xf32>
    %219 = arith.addi %0, %213 : i32
    %220 = arith.index_cast %219 : i32 to index
    %221 = memref.load %arg2[%220] : memref<8xi32, #tpu.memory_space<smem>>
    %222 = arith.index_cast %221 : i32 to index
    %c0_37 = arith.constant 0 : index
    %223 = vector.load %arg9[%222, %c0_37] : memref<10x128xf32, #tpu.memory_space<vmem>>, vector<1x128xf32>
    %224 = arith.mulf %218, %223 : vector<1x128xf32>
    %225 = arith.addi %0, %213 : i32
    %226 = arith.index_cast %225 : i32 to index
    %227 = memref.load %arg3[%226] : memref<8xi32, #tpu.memory_space<smem>>
    %228 = arith.index_cast %227 : i32 to index
    %c0_38 = arith.constant 0 : index
    %229 = vector.load %arg10[%228, %c0_38] : memref<10x128xf32, #tpu.memory_space<vmem>>, vector<1x128xf32>
    %230 = arith.mulf %224, %229 : vector<1x128xf32>
    %231 = arith.addi %0, %213 : i32
    %232 = arith.index_cast %231 : i32 to index
    %233 = memref.load %arg4[%232] : memref<8xi32, #tpu.memory_space<smem>>
    %234 = arith.index_cast %233 : i32 to index
    %c0_39 = arith.constant 0 : index
    %235 = vector.load %arg11[%234, %c0_39] : memref<10x128xf32, #tpu.memory_space<vmem>>, vector<1x128xf32>
    %236 = arith.mulf %230, %235 : vector<1x128xf32>
    %237 = arith.addi %0, %213 : i32
    %238 = arith.index_cast %237 : i32 to index
    %239 = memref.load %arg5[%238] : memref<8xi32, #tpu.memory_space<smem>>
    %240 = arith.index_cast %239 : i32 to index
    %c0_40 = arith.constant 0 : index
    %241 = vector.load %arg12[%240, %c0_40] : memref<10x128xf32, #tpu.memory_space<vmem>>, vector<1x128xf32>
    %242 = arith.mulf %236, %241 : vector<1x128xf32>
    %243 = arith.addi %0, %213 : i32
    %244 = arith.index_cast %243 : i32 to index
    %245 = memref.load %arg6[%244] : memref<8xi32, #tpu.memory_space<smem>>
    %246 = arith.index_cast %245 : i32 to index
    %c0_41 = arith.constant 0 : index
    %247 = vector.load %arg13[%246, %c0_41] : memref<10x128xf32, #tpu.memory_space<vmem>>, vector<1x128xf32>
    %248 = arith.mulf %242, %247 : vector<1x128xf32>
    %249 = arith.addi %0, %213 : i32
    %250 = arith.index_cast %249 : i32 to index
    %251 = memref.load %arg7[%250] : memref<8xi32, #tpu.memory_space<smem>>
    %252 = arith.index_cast %251 : i32 to index
    %c0_42 = arith.constant 0 : index
    %253 = vector.load %arg14[%252, %c0_42] : memref<10x128xf32, #tpu.memory_space<vmem>>, vector<1x128xf32>
    %254 = arith.mulf %248, %253 : vector<1x128xf32>
    %c6_i32 = arith.constant 6 : i32
    %255 = arith.addi %2, %c6_i32 : i32
    %256 = arith.addi %0, %255 : i32
    %257 = arith.index_cast %256 : i32 to index
    %258 = memref.load %arg1[%257] : memref<8xi32, #tpu.memory_space<smem>>
    %259 = arith.index_cast %258 : i32 to index
    %c0_43 = arith.constant 0 : index
    %260 = vector.load %arg8[%259, %c0_43] : memref<5x128xf32, #tpu.memory_space<vmem>>, vector<1x128xf32>
    %261 = arith.addi %0, %255 : i32
    %262 = arith.index_cast %261 : i32 to index
    %263 = memref.load %arg2[%262] : memref<8xi32, #tpu.memory_space<smem>>
    %264 = arith.index_cast %263 : i32 to index
    %c0_44 = arith.constant 0 : index
    %265 = vector.load %arg9[%264, %c0_44] : memref<10x128xf32, #tpu.memory_space<vmem>>, vector<1x128xf32>
    %266 = arith.mulf %260, %265 : vector<1x128xf32>
    %267 = arith.addi %0, %255 : i32
    %268 = arith.index_cast %267 : i32 to index
    %269 = memref.load %arg3[%268] : memref<8xi32, #tpu.memory_space<smem>>
    %270 = arith.index_cast %269 : i32 to index
    %c0_45 = arith.constant 0 : index
    %271 = vector.load %arg10[%270, %c0_45] : memref<10x128xf32, #tpu.memory_space<vmem>>, vector<1x128xf32>
    %272 = arith.mulf %266, %271 : vector<1x128xf32>
    %273 = arith.addi %0, %255 : i32
    %274 = arith.index_cast %273 : i32 to index
    %275 = memref.load %arg4[%274] : memref<8xi32, #tpu.memory_space<smem>>
    %276 = arith.index_cast %275 : i32 to index
    %c0_46 = arith.constant 0 : index
    %277 = vector.load %arg11[%276, %c0_46] : memref<10x128xf32, #tpu.memory_space<vmem>>, vector<1x128xf32>
    %278 = arith.mulf %272, %277 : vector<1x128xf32>
    %279 = arith.addi %0, %255 : i32
    %280 = arith.index_cast %279 : i32 to index
    %281 = memref.load %arg5[%280] : memref<8xi32, #tpu.memory_space<smem>>
    %282 = arith.index_cast %281 : i32 to index
    %c0_47 = arith.constant 0 : index
    %283 = vector.load %arg12[%282, %c0_47] : memref<10x128xf32, #tpu.memory_space<vmem>>, vector<1x128xf32>
    %284 = arith.mulf %278, %283 : vector<1x128xf32>
    %285 = arith.addi %0, %255 : i32
    %286 = arith.index_cast %285 : i32 to index
    %287 = memref.load %arg6[%286] : memref<8xi32, #tpu.memory_space<smem>>
    %288 = arith.index_cast %287 : i32 to index
    %c0_48 = arith.constant 0 : index
    %289 = vector.load %arg13[%288, %c0_48] : memref<10x128xf32, #tpu.memory_space<vmem>>, vector<1x128xf32>
    %290 = arith.mulf %284, %289 : vector<1x128xf32>
    %291 = arith.addi %0, %255 : i32
    %292 = arith.index_cast %291 : i32 to index
    %293 = memref.load %arg7[%292] : memref<8xi32, #tpu.memory_space<smem>>
    %294 = arith.index_cast %293 : i32 to index
    %c0_49 = arith.constant 0 : index
    %295 = vector.load %arg14[%294, %c0_49] : memref<10x128xf32, #tpu.memory_space<vmem>>, vector<1x128xf32>
    %296 = arith.mulf %290, %295 : vector<1x128xf32>
    %c7_i32 = arith.constant 7 : i32
    %297 = arith.addi %2, %c7_i32 : i32
    %298 = arith.addi %0, %297 : i32
    %299 = arith.index_cast %298 : i32 to index
    %300 = memref.load %arg1[%299] : memref<8xi32, #tpu.memory_space<smem>>
    %301 = arith.index_cast %300 : i32 to index
    %c0_50 = arith.constant 0 : index
    %302 = vector.load %arg8[%301, %c0_50] : memref<5x128xf32, #tpu.memory_space<vmem>>, vector<1x128xf32>
    %303 = arith.addi %0, %297 : i32
    %304 = arith.index_cast %303 : i32 to index
    %305 = memref.load %arg2[%304] : memref<8xi32, #tpu.memory_space<smem>>
    %306 = arith.index_cast %305 : i32 to index
    %c0_51 = arith.constant 0 : index
    %307 = vector.load %arg9[%306, %c0_51] : memref<10x128xf32, #tpu.memory_space<vmem>>, vector<1x128xf32>
    %308 = arith.mulf %302, %307 : vector<1x128xf32>
    %309 = arith.addi %0, %297 : i32
    %310 = arith.index_cast %309 : i32 to index
    %311 = memref.load %arg3[%310] : memref<8xi32, #tpu.memory_space<smem>>
    %312 = arith.index_cast %311 : i32 to index
    %c0_52 = arith.constant 0 : index
    %313 = vector.load %arg10[%312, %c0_52] : memref<10x128xf32, #tpu.memory_space<vmem>>, vector<1x128xf32>
    %314 = arith.mulf %308, %313 : vector<1x128xf32>
    %315 = arith.addi %0, %297 : i32
    %316 = arith.index_cast %315 : i32 to index
    %317 = memref.load %arg4[%316] : memref<8xi32, #tpu.memory_space<smem>>
    %318 = arith.index_cast %317 : i32 to index
    %c0_53 = arith.constant 0 : index
    %319 = vector.load %arg11[%318, %c0_53] : memref<10x128xf32, #tpu.memory_space<vmem>>, vector<1x128xf32>
    %320 = arith.mulf %314, %319 : vector<1x128xf32>
    %321 = arith.addi %0, %297 : i32
    %322 = arith.index_cast %321 : i32 to index
    %323 = memref.load %arg5[%322] : memref<8xi32, #tpu.memory_space<smem>>
    %324 = arith.index_cast %323 : i32 to index
    %c0_54 = arith.constant 0 : index
    %325 = vector.load %arg12[%324, %c0_54] : memref<10x128xf32, #tpu.memory_space<vmem>>, vector<1x128xf32>
    %326 = arith.mulf %320, %325 : vector<1x128xf32>
    %327 = arith.addi %0, %297 : i32
    %328 = arith.index_cast %327 : i32 to index
    %329 = memref.load %arg6[%328] : memref<8xi32, #tpu.memory_space<smem>>
    %330 = arith.index_cast %329 : i32 to index
    %c0_55 = arith.constant 0 : index
    %331 = vector.load %arg13[%330, %c0_55] : memref<10x128xf32, #tpu.memory_space<vmem>>, vector<1x128xf32>
    %332 = arith.mulf %326, %331 : vector<1x128xf32>
    %333 = arith.addi %0, %297 : i32
    %334 = arith.index_cast %333 : i32 to index
    %335 = memref.load %arg7[%334] : memref<8xi32, #tpu.memory_space<smem>>
    %336 = arith.index_cast %335 : i32 to index
    %c0_56 = arith.constant 0 : index
    %337 = vector.load %arg14[%336, %c0_56] : memref<10x128xf32, #tpu.memory_space<vmem>>, vector<1x128xf32>
    %338 = arith.mulf %332, %337 : vector<1x128xf32>
    %339 = tpu.concatenate %44, %86, %128, %170, %212, %254, %296, %338 in 0 : vector<1x128xf32>, vector<1x128xf32>, vector<1x128xf32>, vector<1x128xf32>, vector<1x128xf32>, vector<1x128xf32>, vector<1x128xf32>, vector<1x128xf32> -> vector<8x128xf32>
    %340 = arith.index_cast %2 : i32 to index
    %c0_57 = arith.constant 0 : index
    %341 = vector.load %arg16[%340, %c0_57] : memref<8x128xf32, #tpu.memory_space<vmem>>, vector<8x128xf32>
    tpu.vector_store %arg16[%340, %c0_57], %339 {strides = array<i32>} : memref<8x128xf32, #tpu.memory_space<vmem>>, vector<8x128xf32>,
    %c1_i32_58 = arith.constant 1 : i32
    %c0_59 = arith.constant 0 : index
    %c0_60 = arith.constant 0 : index
    %342 = vector.load %arg16[%c0_59, %c0_60] : memref<8x128xf32, #tpu.memory_space<vmem>>, vector<8x128xf32>
    %cst = arith.constant dense<0.000000e+00> : vector<8xf32>
    %343 = vector.multi_reduction <add>, %342, %cst [1] : vector<8x128xf32> to vector<8xf32>
    %344 = vector.shape_cast %343 : vector<8xf32> to vector<8x1xf32>
    %c0_61 = arith.constant 0 : index
    %c0_62 = arith.constant 0 : index
    %345 = vector.load %arg15[%c0_61, %c0_62] : memref<8x1xf32, #tpu.memory_space<vmem>>, vector<8x1xf32>
    tpu.vector_store %arg15[%c0_61, %c0_62], %344 {strides = array<i32>} : memref<8x1xf32, #tpu.memory_space<vmem>>, vector<8x1xf32>,
    return
  }
  func.func @transform_0(%arg0: i32, %arg1: memref<8xi32, #tpu.memory_space<smem>>, %arg2: memref<8xi32, #tpu.memory_space<smem>>, %arg3: memref<8xi32, #tpu.memory_space<smem>>, %arg4: memref<8xi32, #tpu.memory_space<smem>>, %arg5: memref<8xi32, #tpu.memory_space<smem>>, %arg6: memref<8xi32, #tpu.memory_space<smem>>, %arg7: memref<8xi32, #tpu.memory_space<smem>>) -> (i32, i32) {
    %c0_i32 = arith.constant 0 : i32
    %c0_i32_0 = arith.constant 0 : i32
    %c0_i32_1 = arith.constant 0 : i32
    return %c0_i32, %c0_i32_0 : i32, i32
  }
  func.func @transform_1(%arg0: i32, %arg1: memref<8xi32, #tpu.memory_space<smem>>, %arg2: memref<8xi32, #tpu.memory_space<smem>>, %arg3: memref<8xi32, #tpu.memory_space<smem>>, %arg4: memref<8xi32, #tpu.memory_space<smem>>, %arg5: memref<8xi32, #tpu.memory_space<smem>>, %arg6: memref<8xi32, #tpu.memory_space<smem>>, %arg7: memref<8xi32, #tpu.memory_space<smem>>) -> (i32, i32) {
    %c0_i32 = arith.constant 0 : i32
    %c0_i32_0 = arith.constant 0 : i32
    %c0_i32_1 = arith.constant 0 : i32
    return %c0_i32, %c0_i32_0 : i32, i32
  }
  func.func @transform_2(%arg0: i32, %arg1: memref<8xi32, #tpu.memory_space<smem>>, %arg2: memref<8xi32, #tpu.memory_space<smem>>, %arg3: memref<8xi32, #tpu.memory_space<smem>>, %arg4: memref<8xi32, #tpu.memory_space<smem>>, %arg5: memref<8xi32, #tpu.memory_space<smem>>, %arg6: memref<8xi32, #tpu.memory_space<smem>>, %arg7: memref<8xi32, #tpu.memory_space<smem>>) -> (i32, i32) {
    %c0_i32 = arith.constant 0 : i32
    %c0_i32_0 = arith.constant 0 : i32
    %c0_i32_1 = arith.constant 0 : i32
    return %c0_i32, %c0_i32_0 : i32, i32
  }
  func.func @transform_3(%arg0: i32, %arg1: memref<8xi32, #tpu.memory_space<smem>>, %arg2: memref<8xi32, #tpu.memory_space<smem>>, %arg3: memref<8xi32, #tpu.memory_space<smem>>, %arg4: memref<8xi32, #tpu.memory_space<smem>>, %arg5: memref<8xi32, #tpu.memory_space<smem>>, %arg6: memref<8xi32, #tpu.memory_space<smem>>, %arg7: memref<8xi32, #tpu.memory_space<smem>>) -> (i32, i32) {
    %c0_i32 = arith.constant 0 : i32
    %c0_i32_0 = arith.constant 0 : i32
    %c0_i32_1 = arith.constant 0 : i32
    return %c0_i32, %c0_i32_0 : i32, i32
  }
  func.func @transform_4(%arg0: i32, %arg1: memref<8xi32, #tpu.memory_space<smem>>, %arg2: memref<8xi32, #tpu.memory_space<smem>>, %arg3: memref<8xi32, #tpu.memory_space<smem>>, %arg4: memref<8xi32, #tpu.memory_space<smem>>, %arg5: memref<8xi32, #tpu.memory_space<smem>>, %arg6: memref<8xi32, #tpu.memory_space<smem>>, %arg7: memref<8xi32, #tpu.memory_space<smem>>) -> (i32, i32) {
    %c0_i32 = arith.constant 0 : i32
    %c0_i32_0 = arith.constant 0 : i32
    %c0_i32_1 = arith.constant 0 : i32
    return %c0_i32, %c0_i32_0 : i32, i32
  }
  func.func @transform_5(%arg0: i32, %arg1: memref<8xi32, #tpu.memory_space<smem>>, %arg2: memref<8xi32, #tpu.memory_space<smem>>, %arg3: memref<8xi32, #tpu.memory_space<smem>>, %arg4: memref<8xi32, #tpu.memory_space<smem>>, %arg5: memref<8xi32, #tpu.memory_space<smem>>, %arg6: memref<8xi32, #tpu.memory_space<smem>>, %arg7: memref<8xi32, #tpu.memory_space<smem>>) -> (i32, i32) {
    %c0_i32 = arith.constant 0 : i32
    %c0_i32_0 = arith.constant 0 : i32
    %c0_i32_1 = arith.constant 0 : i32
    return %c0_i32, %c0_i32_0 : i32, i32
  }
  func.func @transform_6(%arg0: i32, %arg1: memref<8xi32, #tpu.memory_space<smem>>, %arg2: memref<8xi32, #tpu.memory_space<smem>>, %arg3: memref<8xi32, #tpu.memory_space<smem>>, %arg4: memref<8xi32, #tpu.memory_space<smem>>, %arg5: memref<8xi32, #tpu.memory_space<smem>>, %arg6: memref<8xi32, #tpu.memory_space<smem>>, %arg7: memref<8xi32, #tpu.memory_space<smem>>) -> (i32, i32) {
    %c0_i32 = arith.constant 0 : i32
    %c0_i32_0 = arith.constant 0 : i32
    %c0_i32_1 = arith.constant 0 : i32
    return %c0_i32, %c0_i32_0 : i32, i32
  }
  func.func @transform_7(%arg0: i32, %arg1: memref<8xi32, #tpu.memory_space<smem>>, %arg2: memref<8xi32, #tpu.memory_space<smem>>, %arg3: memref<8xi32, #tpu.memory_space<smem>>, %arg4: memref<8xi32, #tpu.memory_space<smem>>, %arg5: memref<8xi32, #tpu.memory_space<smem>>, %arg6: memref<8xi32, #tpu.memory_space<smem>>, %arg7: memref<8xi32, #tpu.memory_space<smem>>) -> (i32, i32) {
    %c0_i32 = arith.constant 0 : i32
    %c0_i32_0 = arith.constant 0 : i32
    return %arg0, %c0_i32 : i32, i32
  }
}

module attributes {stable_mosaic.version = 11 : i64} {
  func.func @_mcp_gather_kernel(%arg0: i32, %arg1: memref<8xi32, #tpu.memory_space<smem>>, %arg2: memref<8xi32, #tpu.memory_space<smem>>, %arg3: memref<8xi32, #tpu.memory_space<smem>>, %arg4: memref<8xi32, #tpu.memory_space<smem>>, %arg5: memref<8xi32, #tpu.memory_space<smem>>, %arg6: memref<8xi32, #tpu.memory_space<smem>>, %arg7: memref<8xi32, #tpu.memory_space<smem>>, %arg8: memref<5x128xf32, #tpu.memory_space<any>>, %arg9: memref<10x128xf32, #tpu.memory_space<any>>, %arg10: memref<10x128xf32, #tpu.memory_space<any>>, %arg11: memref<10x128xf32, #tpu.memory_space<any>>, %arg12: memref<10x128xf32, #tpu.memory_space<any>>, %arg13: memref<10x128xf32, #tpu.memory_space<any>>, %arg14: memref<10x128xf32, #tpu.memory_space<any>>, %arg15: memref<8x1xf32, #tpu.memory_space<vmem>>, %arg16: memref<2x7x1x128xf32, #tpu.memory_space<vmem>>, %arg17: memref<2x7x!tpu.dma_semaphore, #tpu.memory_space<semaphore_mem>>, %arg18: memref<8x128xf32, #tpu.memory_space<vmem>>) attributes {dimension_semantics = [#tpu.dimension_semantics<parallel>], iteration_bounds = array<i64: 1>, scalar_prefetch = 7 : i64, scratch_operands = 3 : i64, tpu.core_type = #tpu.core_type<tc>, window_params = [{}, {}, {}, {}, {}, {}, {}, {transform_indices = @transform_7, window_bounds = array<i64: 8, 1>}]} {
    %c8_i32 = arith.constant 8 : i32
    %0 = arith.muli %arg0, %c8_i32 : i32
    %c0_i32 = arith.constant 0 : i32
    %1 = arith.addi %0, %c0_i32 : i32
    %2 = arith.index_cast %1 : i32 to index
    %3 = memref.load %arg1[%2] : memref<8xi32, #tpu.memory_space<smem>>
    %c0_i32_0 = arith.constant 0 : i32
    %c0_i32_1 = arith.constant 0 : i32
    %c0_i32_2 = arith.constant 0 : i32
    %c0_i32_3 = arith.constant 0 : i32
    %c0_i32_4 = arith.constant 0 : i32
    %4 = tpu.memref_slice %arg8[%3, %c0_i32_4] : memref<5x128xf32, #tpu.memory_space<any>> -> memref<1x128xf32, #tpu.memory_space<any>>
    %c0_i32_5 = arith.constant 0 : i32
    %c0_i32_6 = arith.constant 0 : i32
    %5 = tpu.memref_slice %arg16[%c0_i32_0, %c0_i32_1, %c0_i32_5, %c0_i32_6] : memref<2x7x1x128xf32, #tpu.memory_space<vmem>> -> memref<1x1x1x128xf32, #tpu.memory_space<vmem>>
    %6 = tpu.memref_squeeze %5 : memref<1x1x1x128xf32, #tpu.memory_space<vmem>> -> memref<1x128xf32, #tpu.memory_space<vmem>>
    %7 = tpu.memref_slice %arg17[%c0_i32_2, %c0_i32_3] : memref<2x7x!tpu.dma_semaphore, #tpu.memory_space<semaphore_mem>> -> memref<1x1x!tpu.dma_semaphore, #tpu.memory_space<semaphore_mem>>
    %8 = tpu.memref_squeeze %7 : memref<1x1x!tpu.dma_semaphore, #tpu.memory_space<semaphore_mem>> -> memref<!tpu.dma_semaphore, #tpu.memory_space<semaphore_mem>>
    tpu.enqueue_dma source(%4 : memref<1x128xf32, #tpu.memory_space<any>>) target(%6 : memref<1x128xf32, #tpu.memory_space<vmem>>) target_semaphore(%8 : memref<!tpu.dma_semaphore, #tpu.memory_space<semaphore_mem>>)
    %c0_i32_7 = arith.constant 0 : i32
    %9 = arith.addi %0, %c0_i32_7 : i32
    %10 = arith.index_cast %9 : i32 to index
    %11 = memref.load %arg2[%10] : memref<8xi32, #tpu.memory_space<smem>>
    %c0_i32_8 = arith.constant 0 : i32
    %c1_i32 = arith.constant 1 : i32
    %c0_i32_9 = arith.constant 0 : i32
    %c1_i32_10 = arith.constant 1 : i32
    %c0_i32_11 = arith.constant 0 : i32
    %12 = tpu.memref_slice %arg9[%11, %c0_i32_11] : memref<10x128xf32, #tpu.memory_space<any>> -> memref<1x128xf32, #tpu.memory_space<any>>
    %c0_i32_12 = arith.constant 0 : i32
    %c0_i32_13 = arith.constant 0 : i32
    %13 = tpu.memref_slice %arg16[%c0_i32_8, %c1_i32, %c0_i32_12, %c0_i32_13] : memref<2x7x1x128xf32, #tpu.memory_space<vmem>> -> memref<1x1x1x128xf32, #tpu.memory_space<vmem>>
    %14 = tpu.memref_squeeze %13 : memref<1x1x1x128xf32, #tpu.memory_space<vmem>> -> memref<1x128xf32, #tpu.memory_space<vmem>>
    %15 = tpu.memref_slice %arg17[%c0_i32_9, %c1_i32_10] : memref<2x7x!tpu.dma_semaphore, #tpu.memory_space<semaphore_mem>> -> memref<1x1x!tpu.dma_semaphore, #tpu.memory_space<semaphore_mem>>
    %16 = tpu.memref_squeeze %15 : memref<1x1x!tpu.dma_semaphore, #tpu.memory_space<semaphore_mem>> -> memref<!tpu.dma_semaphore, #tpu.memory_space<semaphore_mem>>
    tpu.enqueue_dma source(%12 : memref<1x128xf32, #tpu.memory_space<any>>) target(%14 : memref<1x128xf32, #tpu.memory_space<vmem>>) target_semaphore(%16 : memref<!tpu.dma_semaphore, #tpu.memory_space<semaphore_mem>>)
    %c0_i32_14 = arith.constant 0 : i32
    %17 = arith.addi %0, %c0_i32_14 : i32
    %18 = arith.index_cast %17 : i32 to index
    %19 = memref.load %arg3[%18] : memref<8xi32, #tpu.memory_space<smem>>
    %c0_i32_15 = arith.constant 0 : i32
    %c2_i32 = arith.constant 2 : i32
    %c0_i32_16 = arith.constant 0 : i32
    %c2_i32_17 = arith.constant 2 : i32
    %c0_i32_18 = arith.constant 0 : i32
    %20 = tpu.memref_slice %arg10[%19, %c0_i32_18] : memref<10x128xf32, #tpu.memory_space<any>> -> memref<1x128xf32, #tpu.memory_space<any>>
    %c0_i32_19 = arith.constant 0 : i32
    %c0_i32_20 = arith.constant 0 : i32
    %21 = tpu.memref_slice %arg16[%c0_i32_15, %c2_i32, %c0_i32_19, %c0_i32_20] : memref<2x7x1x128xf32, #tpu.memory_space<vmem>> -> memref<1x1x1x128xf32, #tpu.memory_space<vmem>>
    %22 = tpu.memref_squeeze %21 : memref<1x1x1x128xf32, #tpu.memory_space<vmem>> -> memref<1x128xf32, #tpu.memory_space<vmem>>
    %23 = tpu.memref_slice %arg17[%c0_i32_16, %c2_i32_17] : memref<2x7x!tpu.dma_semaphore, #tpu.memory_space<semaphore_mem>> -> memref<1x1x!tpu.dma_semaphore, #tpu.memory_space<semaphore_mem>>
    %24 = tpu.memref_squeeze %23 : memref<1x1x!tpu.dma_semaphore, #tpu.memory_space<semaphore_mem>> -> memref<!tpu.dma_semaphore, #tpu.memory_space<semaphore_mem>>
    tpu.enqueue_dma source(%20 : memref<1x128xf32, #tpu.memory_space<any>>) target(%22 : memref<1x128xf32, #tpu.memory_space<vmem>>) target_semaphore(%24 : memref<!tpu.dma_semaphore, #tpu.memory_space<semaphore_mem>>)
    %c0_i32_21 = arith.constant 0 : i32
    %25 = arith.addi %0, %c0_i32_21 : i32
    %26 = arith.index_cast %25 : i32 to index
    %27 = memref.load %arg4[%26] : memref<8xi32, #tpu.memory_space<smem>>
    %c0_i32_22 = arith.constant 0 : i32
    %c3_i32 = arith.constant 3 : i32
    %c0_i32_23 = arith.constant 0 : i32
    %c3_i32_24 = arith.constant 3 : i32
    %c0_i32_25 = arith.constant 0 : i32
    %28 = tpu.memref_slice %arg11[%27, %c0_i32_25] : memref<10x128xf32, #tpu.memory_space<any>> -> memref<1x128xf32, #tpu.memory_space<any>>
    %c0_i32_26 = arith.constant 0 : i32
    %c0_i32_27 = arith.constant 0 : i32
    %29 = tpu.memref_slice %arg16[%c0_i32_22, %c3_i32, %c0_i32_26, %c0_i32_27] : memref<2x7x1x128xf32, #tpu.memory_space<vmem>> -> memref<1x1x1x128xf32, #tpu.memory_space<vmem>>
    %30 = tpu.memref_squeeze %29 : memref<1x1x1x128xf32, #tpu.memory_space<vmem>> -> memref<1x128xf32, #tpu.memory_space<vmem>>
    %31 = tpu.memref_slice %arg17[%c0_i32_23, %c3_i32_24] : memref<2x7x!tpu.dma_semaphore, #tpu.memory_space<semaphore_mem>> -> memref<1x1x!tpu.dma_semaphore, #tpu.memory_space<semaphore_mem>>
    %32 = tpu.memref_squeeze %31 : memref<1x1x!tpu.dma_semaphore, #tpu.memory_space<semaphore_mem>> -> memref<!tpu.dma_semaphore, #tpu.memory_space<semaphore_mem>>
    tpu.enqueue_dma source(%28 : memref<1x128xf32, #tpu.memory_space<any>>) target(%30 : memref<1x128xf32, #tpu.memory_space<vmem>>) target_semaphore(%32 : memref<!tpu.dma_semaphore, #tpu.memory_space<semaphore_mem>>)
    %c0_i32_28 = arith.constant 0 : i32
    %33 = arith.addi %0, %c0_i32_28 : i32
    %34 = arith.index_cast %33 : i32 to index
    %35 = memref.load %arg5[%34] : memref<8xi32, #tpu.memory_space<smem>>
    %c0_i32_29 = arith.constant 0 : i32
    %c4_i32 = arith.constant 4 : i32
    %c0_i32_30 = arith.constant 0 : i32
    %c4_i32_31 = arith.constant 4 : i32
    %c0_i32_32 = arith.constant 0 : i32
    %36 = tpu.memref_slice %arg12[%35, %c0_i32_32] : memref<10x128xf32, #tpu.memory_space<any>> -> memref<1x128xf32, #tpu.memory_space<any>>
    %c0_i32_33 = arith.constant 0 : i32
    %c0_i32_34 = arith.constant 0 : i32
    %37 = tpu.memref_slice %arg16[%c0_i32_29, %c4_i32, %c0_i32_33, %c0_i32_34] : memref<2x7x1x128xf32, #tpu.memory_space<vmem>> -> memref<1x1x1x128xf32, #tpu.memory_space<vmem>>
    %38 = tpu.memref_squeeze %37 : memref<1x1x1x128xf32, #tpu.memory_space<vmem>> -> memref<1x128xf32, #tpu.memory_space<vmem>>
    %39 = tpu.memref_slice %arg17[%c0_i32_30, %c4_i32_31] : memref<2x7x!tpu.dma_semaphore, #tpu.memory_space<semaphore_mem>> -> memref<1x1x!tpu.dma_semaphore, #tpu.memory_space<semaphore_mem>>
    %40 = tpu.memref_squeeze %39 : memref<1x1x!tpu.dma_semaphore, #tpu.memory_space<semaphore_mem>> -> memref<!tpu.dma_semaphore, #tpu.memory_space<semaphore_mem>>
    tpu.enqueue_dma source(%36 : memref<1x128xf32, #tpu.memory_space<any>>) target(%38 : memref<1x128xf32, #tpu.memory_space<vmem>>) target_semaphore(%40 : memref<!tpu.dma_semaphore, #tpu.memory_space<semaphore_mem>>)
    %c0_i32_35 = arith.constant 0 : i32
    %41 = arith.addi %0, %c0_i32_35 : i32
    %42 = arith.index_cast %41 : i32 to index
    %43 = memref.load %arg6[%42] : memref<8xi32, #tpu.memory_space<smem>>
    %c0_i32_36 = arith.constant 0 : i32
    %c5_i32 = arith.constant 5 : i32
    %c0_i32_37 = arith.constant 0 : i32
    %c5_i32_38 = arith.constant 5 : i32
    %c0_i32_39 = arith.constant 0 : i32
    %44 = tpu.memref_slice %arg13[%43, %c0_i32_39] : memref<10x128xf32, #tpu.memory_space<any>> -> memref<1x128xf32, #tpu.memory_space<any>>
    %c0_i32_40 = arith.constant 0 : i32
    %c0_i32_41 = arith.constant 0 : i32
    %45 = tpu.memref_slice %arg16[%c0_i32_36, %c5_i32, %c0_i32_40, %c0_i32_41] : memref<2x7x1x128xf32, #tpu.memory_space<vmem>> -> memref<1x1x1x128xf32, #tpu.memory_space<vmem>>
    %46 = tpu.memref_squeeze %45 : memref<1x1x1x128xf32, #tpu.memory_space<vmem>> -> memref<1x128xf32, #tpu.memory_space<vmem>>
    %47 = tpu.memref_slice %arg17[%c0_i32_37, %c5_i32_38] : memref<2x7x!tpu.dma_semaphore, #tpu.memory_space<semaphore_mem>> -> memref<1x1x!tpu.dma_semaphore, #tpu.memory_space<semaphore_mem>>
    %48 = tpu.memref_squeeze %47 : memref<1x1x!tpu.dma_semaphore, #tpu.memory_space<semaphore_mem>> -> memref<!tpu.dma_semaphore, #tpu.memory_space<semaphore_mem>>
    tpu.enqueue_dma source(%44 : memref<1x128xf32, #tpu.memory_space<any>>) target(%46 : memref<1x128xf32, #tpu.memory_space<vmem>>) target_semaphore(%48 : memref<!tpu.dma_semaphore, #tpu.memory_space<semaphore_mem>>)
    %c0_i32_42 = arith.constant 0 : i32
    %49 = arith.addi %0, %c0_i32_42 : i32
    %50 = arith.index_cast %49 : i32 to index
    %51 = memref.load %arg7[%50] : memref<8xi32, #tpu.memory_space<smem>>
    %c0_i32_43 = arith.constant 0 : i32
    %c6_i32 = arith.constant 6 : i32
    %c0_i32_44 = arith.constant 0 : i32
    %c6_i32_45 = arith.constant 6 : i32
    %c0_i32_46 = arith.constant 0 : i32
    %52 = tpu.memref_slice %arg14[%51, %c0_i32_46] : memref<10x128xf32, #tpu.memory_space<any>> -> memref<1x128xf32, #tpu.memory_space<any>>
    %c0_i32_47 = arith.constant 0 : i32
    %c0_i32_48 = arith.constant 0 : i32
    %53 = tpu.memref_slice %arg16[%c0_i32_43, %c6_i32, %c0_i32_47, %c0_i32_48] : memref<2x7x1x128xf32, #tpu.memory_space<vmem>> -> memref<1x1x1x128xf32, #tpu.memory_space<vmem>>
    %54 = tpu.memref_squeeze %53 : memref<1x1x1x128xf32, #tpu.memory_space<vmem>> -> memref<1x128xf32, #tpu.memory_space<vmem>>
    %55 = tpu.memref_slice %arg17[%c0_i32_44, %c6_i32_45] : memref<2x7x!tpu.dma_semaphore, #tpu.memory_space<semaphore_mem>> -> memref<1x1x!tpu.dma_semaphore, #tpu.memory_space<semaphore_mem>>
    %56 = tpu.memref_squeeze %55 : memref<1x1x!tpu.dma_semaphore, #tpu.memory_space<semaphore_mem>> -> memref<!tpu.dma_semaphore, #tpu.memory_space<semaphore_mem>>
    tpu.enqueue_dma source(%52 : memref<1x128xf32, #tpu.memory_space<any>>) target(%54 : memref<1x128xf32, #tpu.memory_space<vmem>>) target_semaphore(%56 : memref<!tpu.dma_semaphore, #tpu.memory_space<semaphore_mem>>)
    %c0_i32_49 = arith.constant 0 : i32
    %c4_i32_50 = arith.constant 4 : i32
    %57 = arith.addi %c0_i32_49, %c4_i32_50 : i32
    %c1_i32_51 = arith.constant 1 : i32
    scf.for %arg19 = %c0_i32_49 to %57 step %c1_i32_51  : i32 {
      %c2_i32_56 = arith.constant 2 : i32
      %62 = arith.muli %arg19, %c2_i32_56 : i32
      %c0_i32_57 = arith.constant 0 : i32
      %c0_i32_58 = arith.constant 0 : i32
      %c0_i32_59 = arith.constant 0 : i32
      %c0_i32_60 = arith.constant 0 : i32
      %c0_i32_61 = arith.constant 0 : i32
      %c0_i32_62 = arith.constant 0 : i32
      %63 = tpu.memref_slice %arg8[%c0_i32_61, %c0_i32_62] : memref<5x128xf32, #tpu.memory_space<any>> -> memref<1x128xf32, #tpu.memory_space<any>>
      %c0_i32_63 = arith.constant 0 : i32
      %c0_i32_64 = arith.constant 0 : i32
      %64 = tpu.memref_slice %arg16[%c0_i32_57, %c0_i32_58, %c0_i32_63, %c0_i32_64] : memref<2x7x1x128xf32, #tpu.memory_space<vmem>> -> memref<1x1x1x128xf32, #tpu.memory_space<vmem>>
      %65 = tpu.memref_squeeze %64 : memref<1x1x1x128xf32, #tpu.memory_space<vmem>> -> memref<1x128xf32, #tpu.memory_space<vmem>>
      %66 = tpu.memref_slice %arg17[%c0_i32_59, %c0_i32_60] : memref<2x7x!tpu.dma_semaphore, #tpu.memory_space<semaphore_mem>> -> memref<1x1x!tpu.dma_semaphore, #tpu.memory_space<semaphore_mem>>
      %67 = tpu.memref_squeeze %66 : memref<1x1x!tpu.dma_semaphore, #tpu.memory_space<semaphore_mem>> -> memref<!tpu.dma_semaphore, #tpu.memory_space<semaphore_mem>>
      tpu.wait_dma2 semaphore(%67 : memref<!tpu.dma_semaphore, #tpu.memory_space<semaphore_mem>>) src(%63 : memref<1x128xf32, #tpu.memory_space<any>>) dst(%65 : memref<1x128xf32, #tpu.memory_space<vmem>>)
      %c0_i32_65 = arith.constant 0 : i32
      %c1_i32_66 = arith.constant 1 : i32
      %c0_i32_67 = arith.constant 0 : i32
      %c1_i32_68 = arith.constant 1 : i32
      %c0_i32_69 = arith.constant 0 : i32
      %c0_i32_70 = arith.constant 0 : i32
      %68 = tpu.memref_slice %arg9[%c0_i32_69, %c0_i32_70] : memref<10x128xf32, #tpu.memory_space<any>> -> memref<1x128xf32, #tpu.memory_space<any>>
      %c0_i32_71 = arith.constant 0 : i32
      %c0_i32_72 = arith.constant 0 : i32
      %69 = tpu.memref_slice %arg16[%c0_i32_65, %c1_i32_66, %c0_i32_71, %c0_i32_72] : memref<2x7x1x128xf32, #tpu.memory_space<vmem>> -> memref<1x1x1x128xf32, #tpu.memory_space<vmem>>
      %70 = tpu.memref_squeeze %69 : memref<1x1x1x128xf32, #tpu.memory_space<vmem>> -> memref<1x128xf32, #tpu.memory_space<vmem>>
      %71 = tpu.memref_slice %arg17[%c0_i32_67, %c1_i32_68] : memref<2x7x!tpu.dma_semaphore, #tpu.memory_space<semaphore_mem>> -> memref<1x1x!tpu.dma_semaphore, #tpu.memory_space<semaphore_mem>>
      %72 = tpu.memref_squeeze %71 : memref<1x1x!tpu.dma_semaphore, #tpu.memory_space<semaphore_mem>> -> memref<!tpu.dma_semaphore, #tpu.memory_space<semaphore_mem>>
      tpu.wait_dma2 semaphore(%72 : memref<!tpu.dma_semaphore, #tpu.memory_space<semaphore_mem>>) src(%68 : memref<1x128xf32, #tpu.memory_space<any>>) dst(%70 : memref<1x128xf32, #tpu.memory_space<vmem>>)
      %c0_i32_73 = arith.constant 0 : i32
      %c2_i32_74 = arith.constant 2 : i32
      %c0_i32_75 = arith.constant 0 : i32
      %c2_i32_76 = arith.constant 2 : i32
      %c0_i32_77 = arith.constant 0 : i32
      %c0_i32_78 = arith.constant 0 : i32
      %73 = tpu.memref_slice %arg10[%c0_i32_77, %c0_i32_78] : memref<10x128xf32, #tpu.memory_space<any>> -> memref<1x128xf32, #tpu.memory_space<any>>
      %c0_i32_79 = arith.constant 0 : i32
      %c0_i32_80 = arith.constant 0 : i32
      %74 = tpu.memref_slice %arg16[%c0_i32_73, %c2_i32_74, %c0_i32_79, %c0_i32_80] : memref<2x7x1x128xf32, #tpu.memory_space<vmem>> -> memref<1x1x1x128xf32, #tpu.memory_space<vmem>>
      %75 = tpu.memref_squeeze %74 : memref<1x1x1x128xf32, #tpu.memory_space<vmem>> -> memref<1x128xf32, #tpu.memory_space<vmem>>
      %76 = tpu.memref_slice %arg17[%c0_i32_75, %c2_i32_76] : memref<2x7x!tpu.dma_semaphore, #tpu.memory_space<semaphore_mem>> -> memref<1x1x!tpu.dma_semaphore, #tpu.memory_space<semaphore_mem>>
      %77 = tpu.memref_squeeze %76 : memref<1x1x!tpu.dma_semaphore, #tpu.memory_space<semaphore_mem>> -> memref<!tpu.dma_semaphore, #tpu.memory_space<semaphore_mem>>
      tpu.wait_dma2 semaphore(%77 : memref<!tpu.dma_semaphore, #tpu.memory_space<semaphore_mem>>) src(%73 : memref<1x128xf32, #tpu.memory_space<any>>) dst(%75 : memref<1x128xf32, #tpu.memory_space<vmem>>)
      %c0_i32_81 = arith.constant 0 : i32
      %c3_i32_82 = arith.constant 3 : i32
      %c0_i32_83 = arith.constant 0 : i32
      %c3_i32_84 = arith.constant 3 : i32
      %c0_i32_85 = arith.constant 0 : i32
      %c0_i32_86 = arith.constant 0 : i32
      %78 = tpu.memref_slice %arg11[%c0_i32_85, %c0_i32_86] : memref<10x128xf32, #tpu.memory_space<any>> -> memref<1x128xf32, #tpu.memory_space<any>>
      %c0_i32_87 = arith.constant 0 : i32
      %c0_i32_88 = arith.constant 0 : i32
      %79 = tpu.memref_slice %arg16[%c0_i32_81, %c3_i32_82, %c0_i32_87, %c0_i32_88] : memref<2x7x1x128xf32, #tpu.memory_space<vmem>> -> memref<1x1x1x128xf32, #tpu.memory_space<vmem>>
      %80 = tpu.memref_squeeze %79 : memref<1x1x1x128xf32, #tpu.memory_space<vmem>> -> memref<1x128xf32, #tpu.memory_space<vmem>>
      %81 = tpu.memref_slice %arg17[%c0_i32_83, %c3_i32_84] : memref<2x7x!tpu.dma_semaphore, #tpu.memory_space<semaphore_mem>> -> memref<1x1x!tpu.dma_semaphore, #tpu.memory_space<semaphore_mem>>
      %82 = tpu.memref_squeeze %81 : memref<1x1x!tpu.dma_semaphore, #tpu.memory_space<semaphore_mem>> -> memref<!tpu.dma_semaphore, #tpu.memory_space<semaphore_mem>>
      tpu.wait_dma2 semaphore(%82 : memref<!tpu.dma_semaphore, #tpu.memory_space<semaphore_mem>>) src(%78 : memref<1x128xf32, #tpu.memory_space<any>>) dst(%80 : memref<1x128xf32, #tpu.memory_space<vmem>>)
      %c0_i32_89 = arith.constant 0 : i32
      %c4_i32_90 = arith.constant 4 : i32
      %c0_i32_91 = arith.constant 0 : i32
      %c4_i32_92 = arith.constant 4 : i32
      %c0_i32_93 = arith.constant 0 : i32
      %c0_i32_94 = arith.constant 0 : i32
      %83 = tpu.memref_slice %arg12[%c0_i32_93, %c0_i32_94] : memref<10x128xf32, #tpu.memory_space<any>> -> memref<1x128xf32, #tpu.memory_space<any>>
      %c0_i32_95 = arith.constant 0 : i32
      %c0_i32_96 = arith.constant 0 : i32
      %84 = tpu.memref_slice %arg16[%c0_i32_89, %c4_i32_90, %c0_i32_95, %c0_i32_96] : memref<2x7x1x128xf32, #tpu.memory_space<vmem>> -> memref<1x1x1x128xf32, #tpu.memory_space<vmem>>
      %85 = tpu.memref_squeeze %84 : memref<1x1x1x128xf32, #tpu.memory_space<vmem>> -> memref<1x128xf32, #tpu.memory_space<vmem>>
      %86 = tpu.memref_slice %arg17[%c0_i32_91, %c4_i32_92] : memref<2x7x!tpu.dma_semaphore, #tpu.memory_space<semaphore_mem>> -> memref<1x1x!tpu.dma_semaphore, #tpu.memory_space<semaphore_mem>>
      %87 = tpu.memref_squeeze %86 : memref<1x1x!tpu.dma_semaphore, #tpu.memory_space<semaphore_mem>> -> memref<!tpu.dma_semaphore, #tpu.memory_space<semaphore_mem>>
      tpu.wait_dma2 semaphore(%87 : memref<!tpu.dma_semaphore, #tpu.memory_space<semaphore_mem>>) src(%83 : memref<1x128xf32, #tpu.memory_space<any>>) dst(%85 : memref<1x128xf32, #tpu.memory_space<vmem>>)
      %c0_i32_97 = arith.constant 0 : i32
      %c5_i32_98 = arith.constant 5 : i32
      %c0_i32_99 = arith.constant 0 : i32
      %c5_i32_100 = arith.constant 5 : i32
      %c0_i32_101 = arith.constant 0 : i32
      %c0_i32_102 = arith.constant 0 : i32
      %88 = tpu.memref_slice %arg13[%c0_i32_101, %c0_i32_102] : memref<10x128xf32, #tpu.memory_space<any>> -> memref<1x128xf32, #tpu.memory_space<any>>
      %c0_i32_103 = arith.constant 0 : i32
      %c0_i32_104 = arith.constant 0 : i32
      %89 = tpu.memref_slice %arg16[%c0_i32_97, %c5_i32_98, %c0_i32_103, %c0_i32_104] : memref<2x7x1x128xf32, #tpu.memory_space<vmem>> -> memref<1x1x1x128xf32, #tpu.memory_space<vmem>>
      %90 = tpu.memref_squeeze %89 : memref<1x1x1x128xf32, #tpu.memory_space<vmem>> -> memref<1x128xf32, #tpu.memory_space<vmem>>
      %91 = tpu.memref_slice %arg17[%c0_i32_99, %c5_i32_100] : memref<2x7x!tpu.dma_semaphore, #tpu.memory_space<semaphore_mem>> -> memref<1x1x!tpu.dma_semaphore, #tpu.memory_space<semaphore_mem>>
      %92 = tpu.memref_squeeze %91 : memref<1x1x!tpu.dma_semaphore, #tpu.memory_space<semaphore_mem>> -> memref<!tpu.dma_semaphore, #tpu.memory_space<semaphore_mem>>
      tpu.wait_dma2 semaphore(%92 : memref<!tpu.dma_semaphore, #tpu.memory_space<semaphore_mem>>) src(%88 : memref<1x128xf32, #tpu.memory_space<any>>) dst(%90 : memref<1x128xf32, #tpu.memory_space<vmem>>)
      %c0_i32_105 = arith.constant 0 : i32
      %c6_i32_106 = arith.constant 6 : i32
      %c0_i32_107 = arith.constant 0 : i32
      %c6_i32_108 = arith.constant 6 : i32
      %c0_i32_109 = arith.constant 0 : i32
      %c0_i32_110 = arith.constant 0 : i32
      %93 = tpu.memref_slice %arg14[%c0_i32_109, %c0_i32_110] : memref<10x128xf32, #tpu.memory_space<any>> -> memref<1x128xf32, #tpu.memory_space<any>>
      %c0_i32_111 = arith.constant 0 : i32
      %c0_i32_112 = arith.constant 0 : i32
      %94 = tpu.memref_slice %arg16[%c0_i32_105, %c6_i32_106, %c0_i32_111, %c0_i32_112] : memref<2x7x1x128xf32, #tpu.memory_space<vmem>> -> memref<1x1x1x128xf32, #tpu.memory_space<vmem>>
      %95 = tpu.memref_squeeze %94 : memref<1x1x1x128xf32, #tpu.memory_space<vmem>> -> memref<1x128xf32, #tpu.memory_space<vmem>>
      %96 = tpu.memref_slice %arg17[%c0_i32_107, %c6_i32_108] : memref<2x7x!tpu.dma_semaphore, #tpu.memory_space<semaphore_mem>> -> memref<1x1x!tpu.dma_semaphore, #tpu.memory_space<semaphore_mem>>
      %97 = tpu.memref_squeeze %96 : memref<1x1x!tpu.dma_semaphore, #tpu.memory_space<semaphore_mem>> -> memref<!tpu.dma_semaphore, #tpu.memory_space<semaphore_mem>>
      tpu.wait_dma2 semaphore(%97 : memref<!tpu.dma_semaphore, #tpu.memory_space<semaphore_mem>>) src(%93 : memref<1x128xf32, #tpu.memory_space<any>>) dst(%95 : memref<1x128xf32, #tpu.memory_space<vmem>>)
      %c1_i32_113 = arith.constant 1 : i32
      %98 = arith.addi %62, %c1_i32_113 : i32
      %99 = arith.addi %0, %98 : i32
      %100 = arith.index_cast %99 : i32 to index
      %101 = memref.load %arg1[%100] : memref<8xi32, #tpu.memory_space<smem>>
      %c1_i32_114 = arith.constant 1 : i32
      %c0_i32_115 = arith.constant 0 : i32
      %c1_i32_116 = arith.constant 1 : i32
      %c0_i32_117 = arith.constant 0 : i32
      %c0_i32_118 = arith.constant 0 : i32
      %102 = tpu.memref_slice %arg8[%101, %c0_i32_118] : memref<5x128xf32, #tpu.memory_space<any>> -> memref<1x128xf32, #tpu.memory_space<any>>
      %c0_i32_119 = arith.constant 0 : i32
      %c0_i32_120 = arith.constant 0 : i32
      %103 = tpu.memref_slice %arg16[%c1_i32_114, %c0_i32_115, %c0_i32_119, %c0_i32_120] : memref<2x7x1x128xf32, #tpu.memory_space<vmem>> -> memref<1x1x1x128xf32, #tpu.memory_space<vmem>>
      %104 = tpu.memref_squeeze %103 : memref<1x1x1x128xf32, #tpu.memory_space<vmem>> -> memref<1x128xf32, #tpu.memory_space<vmem>>
      %105 = tpu.memref_slice %arg17[%c1_i32_116, %c0_i32_117] : memref<2x7x!tpu.dma_semaphore, #tpu.memory_space<semaphore_mem>> -> memref<1x1x!tpu.dma_semaphore, #tpu.memory_space<semaphore_mem>>
      %106 = tpu.memref_squeeze %105 : memref<1x1x!tpu.dma_semaphore, #tpu.memory_space<semaphore_mem>> -> memref<!tpu.dma_semaphore, #tpu.memory_space<semaphore_mem>>
      tpu.enqueue_dma source(%102 : memref<1x128xf32, #tpu.memory_space<any>>) target(%104 : memref<1x128xf32, #tpu.memory_space<vmem>>) target_semaphore(%106 : memref<!tpu.dma_semaphore, #tpu.memory_space<semaphore_mem>>)
      %107 = arith.addi %0, %98 : i32
      %108 = arith.index_cast %107 : i32 to index
      %109 = memref.load %arg2[%108] : memref<8xi32, #tpu.memory_space<smem>>
      %c1_i32_121 = arith.constant 1 : i32
      %c1_i32_122 = arith.constant 1 : i32
      %c1_i32_123 = arith.constant 1 : i32
      %c1_i32_124 = arith.constant 1 : i32
      %c0_i32_125 = arith.constant 0 : i32
      %110 = tpu.memref_slice %arg9[%109, %c0_i32_125] : memref<10x128xf32, #tpu.memory_space<any>> -> memref<1x128xf32, #tpu.memory_space<any>>
      %c0_i32_126 = arith.constant 0 : i32
      %c0_i32_127 = arith.constant 0 : i32
      %111 = tpu.memref_slice %arg16[%c1_i32_121, %c1_i32_122, %c0_i32_126, %c0_i32_127] : memref<2x7x1x128xf32, #tpu.memory_space<vmem>> -> memref<1x1x1x128xf32, #tpu.memory_space<vmem>>
      %112 = tpu.memref_squeeze %111 : memref<1x1x1x128xf32, #tpu.memory_space<vmem>> -> memref<1x128xf32, #tpu.memory_space<vmem>>
      %113 = tpu.memref_slice %arg17[%c1_i32_123, %c1_i32_124] : memref<2x7x!tpu.dma_semaphore, #tpu.memory_space<semaphore_mem>> -> memref<1x1x!tpu.dma_semaphore, #tpu.memory_space<semaphore_mem>>
      %114 = tpu.memref_squeeze %113 : memref<1x1x!tpu.dma_semaphore, #tpu.memory_space<semaphore_mem>> -> memref<!tpu.dma_semaphore, #tpu.memory_space<semaphore_mem>>
      tpu.enqueue_dma source(%110 : memref<1x128xf32, #tpu.memory_space<any>>) target(%112 : memref<1x128xf32, #tpu.memory_space<vmem>>) target_semaphore(%114 : memref<!tpu.dma_semaphore, #tpu.memory_space<semaphore_mem>>)
      %115 = arith.addi %0, %98 : i32
      %116 = arith.index_cast %115 : i32 to index
      %117 = memref.load %arg3[%116] : memref<8xi32, #tpu.memory_space<smem>>
      %c1_i32_128 = arith.constant 1 : i32
      %c2_i32_129 = arith.constant 2 : i32
      %c1_i32_130 = arith.constant 1 : i32
      %c2_i32_131 = arith.constant 2 : i32
      %c0_i32_132 = arith.constant 0 : i32
      %118 = tpu.memref_slice %arg10[%117, %c0_i32_132] : memref<10x128xf32, #tpu.memory_space<any>> -> memref<1x128xf32, #tpu.memory_space<any>>
      %c0_i32_133 = arith.constant 0 : i32
      %c0_i32_134 = arith.constant 0 : i32
      %119 = tpu.memref_slice %arg16[%c1_i32_128, %c2_i32_129, %c0_i32_133, %c0_i32_134] : memref<2x7x1x128xf32, #tpu.memory_space<vmem>> -> memref<1x1x1x128xf32, #tpu.memory_space<vmem>>
      %120 = tpu.memref_squeeze %119 : memref<1x1x1x128xf32, #tpu.memory_space<vmem>> -> memref<1x128xf32, #tpu.memory_space<vmem>>
      %121 = tpu.memref_slice %arg17[%c1_i32_130, %c2_i32_131] : memref<2x7x!tpu.dma_semaphore, #tpu.memory_space<semaphore_mem>> -> memref<1x1x!tpu.dma_semaphore, #tpu.memory_space<semaphore_mem>>
      %122 = tpu.memref_squeeze %121 : memref<1x1x!tpu.dma_semaphore, #tpu.memory_space<semaphore_mem>> -> memref<!tpu.dma_semaphore, #tpu.memory_space<semaphore_mem>>
      tpu.enqueue_dma source(%118 : memref<1x128xf32, #tpu.memory_space<any>>) target(%120 : memref<1x128xf32, #tpu.memory_space<vmem>>) target_semaphore(%122 : memref<!tpu.dma_semaphore, #tpu.memory_space<semaphore_mem>>)
      %123 = arith.addi %0, %98 : i32
      %124 = arith.index_cast %123 : i32 to index
      %125 = memref.load %arg4[%124] : memref<8xi32, #tpu.memory_space<smem>>
      %c1_i32_135 = arith.constant 1 : i32
      %c3_i32_136 = arith.constant 3 : i32
      %c1_i32_137 = arith.constant 1 : i32
      %c3_i32_138 = arith.constant 3 : i32
      %c0_i32_139 = arith.constant 0 : i32
      %126 = tpu.memref_slice %arg11[%125, %c0_i32_139] : memref<10x128xf32, #tpu.memory_space<any>> -> memref<1x128xf32, #tpu.memory_space<any>>
      %c0_i32_140 = arith.constant 0 : i32
      %c0_i32_141 = arith.constant 0 : i32
      %127 = tpu.memref_slice %arg16[%c1_i32_135, %c3_i32_136, %c0_i32_140, %c0_i32_141] : memref<2x7x1x128xf32, #tpu.memory_space<vmem>> -> memref<1x1x1x128xf32, #tpu.memory_space<vmem>>
      %128 = tpu.memref_squeeze %127 : memref<1x1x1x128xf32, #tpu.memory_space<vmem>> -> memref<1x128xf32, #tpu.memory_space<vmem>>
      %129 = tpu.memref_slice %arg17[%c1_i32_137, %c3_i32_138] : memref<2x7x!tpu.dma_semaphore, #tpu.memory_space<semaphore_mem>> -> memref<1x1x!tpu.dma_semaphore, #tpu.memory_space<semaphore_mem>>
      %130 = tpu.memref_squeeze %129 : memref<1x1x!tpu.dma_semaphore, #tpu.memory_space<semaphore_mem>> -> memref<!tpu.dma_semaphore, #tpu.memory_space<semaphore_mem>>
      tpu.enqueue_dma source(%126 : memref<1x128xf32, #tpu.memory_space<any>>) target(%128 : memref<1x128xf32, #tpu.memory_space<vmem>>) target_semaphore(%130 : memref<!tpu.dma_semaphore, #tpu.memory_space<semaphore_mem>>)
      %131 = arith.addi %0, %98 : i32
      %132 = arith.index_cast %131 : i32 to index
      %133 = memref.load %arg5[%132] : memref<8xi32, #tpu.memory_space<smem>>
      %c1_i32_142 = arith.constant 1 : i32
      %c4_i32_143 = arith.constant 4 : i32
      %c1_i32_144 = arith.constant 1 : i32
      %c4_i32_145 = arith.constant 4 : i32
      %c0_i32_146 = arith.constant 0 : i32
      %134 = tpu.memref_slice %arg12[%133, %c0_i32_146] : memref<10x128xf32, #tpu.memory_space<any>> -> memref<1x128xf32, #tpu.memory_space<any>>
      %c0_i32_147 = arith.constant 0 : i32
      %c0_i32_148 = arith.constant 0 : i32
      %135 = tpu.memref_slice %arg16[%c1_i32_142, %c4_i32_143, %c0_i32_147, %c0_i32_148] : memref<2x7x1x128xf32, #tpu.memory_space<vmem>> -> memref<1x1x1x128xf32, #tpu.memory_space<vmem>>
      %136 = tpu.memref_squeeze %135 : memref<1x1x1x128xf32, #tpu.memory_space<vmem>> -> memref<1x128xf32, #tpu.memory_space<vmem>>
      %137 = tpu.memref_slice %arg17[%c1_i32_144, %c4_i32_145] : memref<2x7x!tpu.dma_semaphore, #tpu.memory_space<semaphore_mem>> -> memref<1x1x!tpu.dma_semaphore, #tpu.memory_space<semaphore_mem>>
      %138 = tpu.memref_squeeze %137 : memref<1x1x!tpu.dma_semaphore, #tpu.memory_space<semaphore_mem>> -> memref<!tpu.dma_semaphore, #tpu.memory_space<semaphore_mem>>
      tpu.enqueue_dma source(%134 : memref<1x128xf32, #tpu.memory_space<any>>) target(%136 : memref<1x128xf32, #tpu.memory_space<vmem>>) target_semaphore(%138 : memref<!tpu.dma_semaphore, #tpu.memory_space<semaphore_mem>>)
      %139 = arith.addi %0, %98 : i32
      %140 = arith.index_cast %139 : i32 to index
      %141 = memref.load %arg6[%140] : memref<8xi32, #tpu.memory_space<smem>>
      %c1_i32_149 = arith.constant 1 : i32
      %c5_i32_150 = arith.constant 5 : i32
      %c1_i32_151 = arith.constant 1 : i32
      %c5_i32_152 = arith.constant 5 : i32
      %c0_i32_153 = arith.constant 0 : i32
      %142 = tpu.memref_slice %arg13[%141, %c0_i32_153] : memref<10x128xf32, #tpu.memory_space<any>> -> memref<1x128xf32, #tpu.memory_space<any>>
      %c0_i32_154 = arith.constant 0 : i32
      %c0_i32_155 = arith.constant 0 : i32
      %143 = tpu.memref_slice %arg16[%c1_i32_149, %c5_i32_150, %c0_i32_154, %c0_i32_155] : memref<2x7x1x128xf32, #tpu.memory_space<vmem>> -> memref<1x1x1x128xf32, #tpu.memory_space<vmem>>
      %144 = tpu.memref_squeeze %143 : memref<1x1x1x128xf32, #tpu.memory_space<vmem>> -> memref<1x128xf32, #tpu.memory_space<vmem>>
      %145 = tpu.memref_slice %arg17[%c1_i32_151, %c5_i32_152] : memref<2x7x!tpu.dma_semaphore, #tpu.memory_space<semaphore_mem>> -> memref<1x1x!tpu.dma_semaphore, #tpu.memory_space<semaphore_mem>>
      %146 = tpu.memref_squeeze %145 : memref<1x1x!tpu.dma_semaphore, #tpu.memory_space<semaphore_mem>> -> memref<!tpu.dma_semaphore, #tpu.memory_space<semaphore_mem>>
      tpu.enqueue_dma source(%142 : memref<1x128xf32, #tpu.memory_space<any>>) target(%144 : memref<1x128xf32, #tpu.memory_space<vmem>>) target_semaphore(%146 : memref<!tpu.dma_semaphore, #tpu.memory_space<semaphore_mem>>)
      %147 = arith.addi %0, %98 : i32
      %148 = arith.index_cast %147 : i32 to index
      %149 = memref.load %arg7[%148] : memref<8xi32, #tpu.memory_space<smem>>
      %c1_i32_156 = arith.constant 1 : i32
      %c6_i32_157 = arith.constant 6 : i32
      %c1_i32_158 = arith.constant 1 : i32
      %c6_i32_159 = arith.constant 6 : i32
      %c0_i32_160 = arith.constant 0 : i32
      %150 = tpu.memref_slice %arg14[%149, %c0_i32_160] : memref<10x128xf32, #tpu.memory_space<any>> -> memref<1x128xf32, #tpu.memory_space<any>>
      %c0_i32_161 = arith.constant 0 : i32
      %c0_i32_162 = arith.constant 0 : i32
      %151 = tpu.memref_slice %arg16[%c1_i32_156, %c6_i32_157, %c0_i32_161, %c0_i32_162] : memref<2x7x1x128xf32, #tpu.memory_space<vmem>> -> memref<1x1x1x128xf32, #tpu.memory_space<vmem>>
      %152 = tpu.memref_squeeze %151 : memref<1x1x1x128xf32, #tpu.memory_space<vmem>> -> memref<1x128xf32, #tpu.memory_space<vmem>>
      %153 = tpu.memref_slice %arg17[%c1_i32_158, %c6_i32_159] : memref<2x7x!tpu.dma_semaphore, #tpu.memory_space<semaphore_mem>> -> memref<1x1x!tpu.dma_semaphore, #tpu.memory_space<semaphore_mem>>
      %154 = tpu.memref_squeeze %153 : memref<1x1x!tpu.dma_semaphore, #tpu.memory_space<semaphore_mem>> -> memref<!tpu.dma_semaphore, #tpu.memory_space<semaphore_mem>>
      tpu.enqueue_dma source(%150 : memref<1x128xf32, #tpu.memory_space<any>>) target(%152 : memref<1x128xf32, #tpu.memory_space<vmem>>) target_semaphore(%154 : memref<!tpu.dma_semaphore, #tpu.memory_space<semaphore_mem>>)
      %c0_163 = arith.constant 0 : index
      %c0_164 = arith.constant 0 : index
      %c0_165 = arith.constant 0 : index
      %c0_166 = arith.constant 0 : index
      %155 = vector.load %arg16[%c0_163, %c0_164, %c0_165, %c0_166] : memref<2x7x1x128xf32, #tpu.memory_space<vmem>>, vector<1x1x1x128xf32>
      %156 = vector.shape_cast %155 : vector<1x1x1x128xf32> to vector<1x128xf32>
      %c0_167 = arith.constant 0 : index
      %c1 = arith.constant 1 : index
      %c0_168 = arith.constant 0 : index
      %c0_169 = arith.constant 0 : index
      %157 = vector.load %arg16[%c0_167, %c1, %c0_168, %c0_169] : memref<2x7x1x128xf32, #tpu.memory_space<vmem>>, vector<1x1x1x128xf32>
      %158 = vector.shape_cast %157 : vector<1x1x1x128xf32> to vector<1x128xf32>
      %159 = arith.mulf %156, %158 : vector<1x128xf32>
      %c0_170 = arith.constant 0 : index
      %c2 = arith.constant 2 : index
      %c0_171 = arith.constant 0 : index
      %c0_172 = arith.constant 0 : index
      %160 = vector.load %arg16[%c0_170, %c2, %c0_171, %c0_172] : memref<2x7x1x128xf32, #tpu.memory_space<vmem>>, vector<1x1x1x128xf32>
      %161 = vector.shape_cast %160 : vector<1x1x1x128xf32> to vector<1x128xf32>
      %162 = arith.mulf %159, %161 : vector<1x128xf32>
      %c0_173 = arith.constant 0 : index
      %c3 = arith.constant 3 : index
      %c0_174 = arith.constant 0 : index
      %c0_175 = arith.constant 0 : index
      %163 = vector.load %arg16[%c0_173, %c3, %c0_174, %c0_175] : memref<2x7x1x128xf32, #tpu.memory_space<vmem>>, vector<1x1x1x128xf32>
      %164 = vector.shape_cast %163 : vector<1x1x1x128xf32> to vector<1x128xf32>
      %165 = arith.mulf %162, %164 : vector<1x128xf32>
      %c0_176 = arith.constant 0 : index
      %c4 = arith.constant 4 : index
      %c0_177 = arith.constant 0 : index
      %c0_178 = arith.constant 0 : index
      %166 = vector.load %arg16[%c0_176, %c4, %c0_177, %c0_178] : memref<2x7x1x128xf32, #tpu.memory_space<vmem>>, vector<1x1x1x128xf32>
      %167 = vector.shape_cast %166 : vector<1x1x1x128xf32> to vector<1x128xf32>
      %168 = arith.mulf %165, %167 : vector<1x128xf32>
      %c0_179 = arith.constant 0 : index
      %c5 = arith.constant 5 : index
      %c0_180 = arith.constant 0 : index
      %c0_181 = arith.constant 0 : index
      %169 = vector.load %arg16[%c0_179, %c5, %c0_180, %c0_181] : memref<2x7x1x128xf32, #tpu.memory_space<vmem>>, vector<1x1x1x128xf32>
      %170 = vector.shape_cast %169 : vector<1x1x1x128xf32> to vector<1x128xf32>
      %171 = arith.mulf %168, %170 : vector<1x128xf32>
      %c0_182 = arith.constant 0 : index
      %c6 = arith.constant 6 : index
      %c0_183 = arith.constant 0 : index
      %c0_184 = arith.constant 0 : index
      %172 = vector.load %arg16[%c0_182, %c6, %c0_183, %c0_184] : memref<2x7x1x128xf32, #tpu.memory_space<vmem>>, vector<1x1x1x128xf32>
      %173 = vector.shape_cast %172 : vector<1x1x1x128xf32> to vector<1x128xf32>
      %174 = arith.mulf %171, %173 : vector<1x128xf32>
      %175 = arith.index_cast %62 : i32 to index
      %c0_185 = arith.constant 0 : index
      %176 = vector.load %arg18[%175, %c0_185] : memref<8x128xf32, #tpu.memory_space<vmem>>, vector<1x128xf32>
      tpu.vector_store %arg18[%175, %c0_185], %174 {strides = array<i32>} : memref<8x128xf32, #tpu.memory_space<vmem>>, vector<1x128xf32>,
      %c1_i32_186 = arith.constant 1 : i32
      %c0_i32_187 = arith.constant 0 : i32
      %c1_i32_188 = arith.constant 1 : i32
      %c0_i32_189 = arith.constant 0 : i32
      %c0_i32_190 = arith.constant 0 : i32
      %c0_i32_191 = arith.constant 0 : i32
      %177 = tpu.memref_slice %arg8[%c0_i32_190, %c0_i32_191] : memref<5x128xf32, #tpu.memory_space<any>> -> memref<1x128xf32, #tpu.memory_space<any>>
      %c0_i32_192 = arith.constant 0 : i32
      %c0_i32_193 = arith.constant 0 : i32
      %178 = tpu.memref_slice %arg16[%c1_i32_186, %c0_i32_187, %c0_i32_192, %c0_i32_193] : memref<2x7x1x128xf32, #tpu.memory_space<vmem>> -> memref<1x1x1x128xf32, #tpu.memory_space<vmem>>
      %179 = tpu.memref_squeeze %178 : memref<1x1x1x128xf32, #tpu.memory_space<vmem>> -> memref<1x128xf32, #tpu.memory_space<vmem>>
      %180 = tpu.memref_slice %arg17[%c1_i32_188, %c0_i32_189] : memref<2x7x!tpu.dma_semaphore, #tpu.memory_space<semaphore_mem>> -> memref<1x1x!tpu.dma_semaphore, #tpu.memory_space<semaphore_mem>>
      %181 = tpu.memref_squeeze %180 : memref<1x1x!tpu.dma_semaphore, #tpu.memory_space<semaphore_mem>> -> memref<!tpu.dma_semaphore, #tpu.memory_space<semaphore_mem>>
      tpu.wait_dma2 semaphore(%181 : memref<!tpu.dma_semaphore, #tpu.memory_space<semaphore_mem>>) src(%177 : memref<1x128xf32, #tpu.memory_space<any>>) dst(%179 : memref<1x128xf32, #tpu.memory_space<vmem>>)
      %c1_i32_194 = arith.constant 1 : i32
      %c1_i32_195 = arith.constant 1 : i32
      %c1_i32_196 = arith.constant 1 : i32
      %c1_i32_197 = arith.constant 1 : i32
      %c0_i32_198 = arith.constant 0 : i32
      %c0_i32_199 = arith.constant 0 : i32
      %182 = tpu.memref_slice %arg9[%c0_i32_198, %c0_i32_199] : memref<10x128xf32, #tpu.memory_space<any>> -> memref<1x128xf32, #tpu.memory_space<any>>
      %c0_i32_200 = arith.constant 0 : i32
      %c0_i32_201 = arith.constant 0 : i32
      %183 = tpu.memref_slice %arg16[%c1_i32_194, %c1_i32_195, %c0_i32_200, %c0_i32_201] : memref<2x7x1x128xf32, #tpu.memory_space<vmem>> -> memref<1x1x1x128xf32, #tpu.memory_space<vmem>>
      %184 = tpu.memref_squeeze %183 : memref<1x1x1x128xf32, #tpu.memory_space<vmem>> -> memref<1x128xf32, #tpu.memory_space<vmem>>
      %185 = tpu.memref_slice %arg17[%c1_i32_196, %c1_i32_197] : memref<2x7x!tpu.dma_semaphore, #tpu.memory_space<semaphore_mem>> -> memref<1x1x!tpu.dma_semaphore, #tpu.memory_space<semaphore_mem>>
      %186 = tpu.memref_squeeze %185 : memref<1x1x!tpu.dma_semaphore, #tpu.memory_space<semaphore_mem>> -> memref<!tpu.dma_semaphore, #tpu.memory_space<semaphore_mem>>
      tpu.wait_dma2 semaphore(%186 : memref<!tpu.dma_semaphore, #tpu.memory_space<semaphore_mem>>) src(%182 : memref<1x128xf32, #tpu.memory_space<any>>) dst(%184 : memref<1x128xf32, #tpu.memory_space<vmem>>)
      %c1_i32_202 = arith.constant 1 : i32
      %c2_i32_203 = arith.constant 2 : i32
      %c1_i32_204 = arith.constant 1 : i32
      %c2_i32_205 = arith.constant 2 : i32
      %c0_i32_206 = arith.constant 0 : i32
      %c0_i32_207 = arith.constant 0 : i32
      %187 = tpu.memref_slice %arg10[%c0_i32_206, %c0_i32_207] : memref<10x128xf32, #tpu.memory_space<any>> -> memref<1x128xf32, #tpu.memory_space<any>>
      %c0_i32_208 = arith.constant 0 : i32
      %c0_i32_209 = arith.constant 0 : i32
      %188 = tpu.memref_slice %arg16[%c1_i32_202, %c2_i32_203, %c0_i32_208, %c0_i32_209] : memref<2x7x1x128xf32, #tpu.memory_space<vmem>> -> memref<1x1x1x128xf32, #tpu.memory_space<vmem>>
      %189 = tpu.memref_squeeze %188 : memref<1x1x1x128xf32, #tpu.memory_space<vmem>> -> memref<1x128xf32, #tpu.memory_space<vmem>>
      %190 = tpu.memref_slice %arg17[%c1_i32_204, %c2_i32_205] : memref<2x7x!tpu.dma_semaphore, #tpu.memory_space<semaphore_mem>> -> memref<1x1x!tpu.dma_semaphore, #tpu.memory_space<semaphore_mem>>
      %191 = tpu.memref_squeeze %190 : memref<1x1x!tpu.dma_semaphore, #tpu.memory_space<semaphore_mem>> -> memref<!tpu.dma_semaphore, #tpu.memory_space<semaphore_mem>>
      tpu.wait_dma2 semaphore(%191 : memref<!tpu.dma_semaphore, #tpu.memory_space<semaphore_mem>>) src(%187 : memref<1x128xf32, #tpu.memory_space<any>>) dst(%189 : memref<1x128xf32, #tpu.memory_space<vmem>>)
      %c1_i32_210 = arith.constant 1 : i32
      %c3_i32_211 = arith.constant 3 : i32
      %c1_i32_212 = arith.constant 1 : i32
      %c3_i32_213 = arith.constant 3 : i32
      %c0_i32_214 = arith.constant 0 : i32
      %c0_i32_215 = arith.constant 0 : i32
      %192 = tpu.memref_slice %arg11[%c0_i32_214, %c0_i32_215] : memref<10x128xf32, #tpu.memory_space<any>> -> memref<1x128xf32, #tpu.memory_space<any>>
      %c0_i32_216 = arith.constant 0 : i32
      %c0_i32_217 = arith.constant 0 : i32
      %193 = tpu.memref_slice %arg16[%c1_i32_210, %c3_i32_211, %c0_i32_216, %c0_i32_217] : memref<2x7x1x128xf32, #tpu.memory_space<vmem>> -> memref<1x1x1x128xf32, #tpu.memory_space<vmem>>
      %194 = tpu.memref_squeeze %193 : memref<1x1x1x128xf32, #tpu.memory_space<vmem>> -> memref<1x128xf32, #tpu.memory_space<vmem>>
      %195 = tpu.memref_slice %arg17[%c1_i32_212, %c3_i32_213] : memref<2x7x!tpu.dma_semaphore, #tpu.memory_space<semaphore_mem>> -> memref<1x1x!tpu.dma_semaphore, #tpu.memory_space<semaphore_mem>>
      %196 = tpu.memref_squeeze %195 : memref<1x1x!tpu.dma_semaphore, #tpu.memory_space<semaphore_mem>> -> memref<!tpu.dma_semaphore, #tpu.memory_space<semaphore_mem>>
      tpu.wait_dma2 semaphore(%196 : memref<!tpu.dma_semaphore, #tpu.memory_space<semaphore_mem>>) src(%192 : memref<1x128xf32, #tpu.memory_space<any>>) dst(%194 : memref<1x128xf32, #tpu.memory_space<vmem>>)
      %c1_i32_218 = arith.constant 1 : i32
      %c4_i32_219 = arith.constant 4 : i32
      %c1_i32_220 = arith.constant 1 : i32
      %c4_i32_221 = arith.constant 4 : i32
      %c0_i32_222 = arith.constant 0 : i32
      %c0_i32_223 = arith.constant 0 : i32
      %197 = tpu.memref_slice %arg12[%c0_i32_222, %c0_i32_223] : memref<10x128xf32, #tpu.memory_space<any>> -> memref<1x128xf32, #tpu.memory_space<any>>
      %c0_i32_224 = arith.constant 0 : i32
      %c0_i32_225 = arith.constant 0 : i32
      %198 = tpu.memref_slice %arg16[%c1_i32_218, %c4_i32_219, %c0_i32_224, %c0_i32_225] : memref<2x7x1x128xf32, #tpu.memory_space<vmem>> -> memref<1x1x1x128xf32, #tpu.memory_space<vmem>>
      %199 = tpu.memref_squeeze %198 : memref<1x1x1x128xf32, #tpu.memory_space<vmem>> -> memref<1x128xf32, #tpu.memory_space<vmem>>
      %200 = tpu.memref_slice %arg17[%c1_i32_220, %c4_i32_221] : memref<2x7x!tpu.dma_semaphore, #tpu.memory_space<semaphore_mem>> -> memref<1x1x!tpu.dma_semaphore, #tpu.memory_space<semaphore_mem>>
      %201 = tpu.memref_squeeze %200 : memref<1x1x!tpu.dma_semaphore, #tpu.memory_space<semaphore_mem>> -> memref<!tpu.dma_semaphore, #tpu.memory_space<semaphore_mem>>
      tpu.wait_dma2 semaphore(%201 : memref<!tpu.dma_semaphore, #tpu.memory_space<semaphore_mem>>) src(%197 : memref<1x128xf32, #tpu.memory_space<any>>) dst(%199 : memref<1x128xf32, #tpu.memory_space<vmem>>)
      %c1_i32_226 = arith.constant 1 : i32
      %c5_i32_227 = arith.constant 5 : i32
      %c1_i32_228 = arith.constant 1 : i32
      %c5_i32_229 = arith.constant 5 : i32
      %c0_i32_230 = arith.constant 0 : i32
      %c0_i32_231 = arith.constant 0 : i32
      %202 = tpu.memref_slice %arg13[%c0_i32_230, %c0_i32_231] : memref<10x128xf32, #tpu.memory_space<any>> -> memref<1x128xf32, #tpu.memory_space<any>>
      %c0_i32_232 = arith.constant 0 : i32
      %c0_i32_233 = arith.constant 0 : i32
      %203 = tpu.memref_slice %arg16[%c1_i32_226, %c5_i32_227, %c0_i32_232, %c0_i32_233] : memref<2x7x1x128xf32, #tpu.memory_space<vmem>> -> memref<1x1x1x128xf32, #tpu.memory_space<vmem>>
      %204 = tpu.memref_squeeze %203 : memref<1x1x1x128xf32, #tpu.memory_space<vmem>> -> memref<1x128xf32, #tpu.memory_space<vmem>>
      %205 = tpu.memref_slice %arg17[%c1_i32_228, %c5_i32_229] : memref<2x7x!tpu.dma_semaphore, #tpu.memory_space<semaphore_mem>> -> memref<1x1x!tpu.dma_semaphore, #tpu.memory_space<semaphore_mem>>
      %206 = tpu.memref_squeeze %205 : memref<1x1x!tpu.dma_semaphore, #tpu.memory_space<semaphore_mem>> -> memref<!tpu.dma_semaphore, #tpu.memory_space<semaphore_mem>>
      tpu.wait_dma2 semaphore(%206 : memref<!tpu.dma_semaphore, #tpu.memory_space<semaphore_mem>>) src(%202 : memref<1x128xf32, #tpu.memory_space<any>>) dst(%204 : memref<1x128xf32, #tpu.memory_space<vmem>>)
      %c1_i32_234 = arith.constant 1 : i32
      %c6_i32_235 = arith.constant 6 : i32
      %c1_i32_236 = arith.constant 1 : i32
      %c6_i32_237 = arith.constant 6 : i32
      %c0_i32_238 = arith.constant 0 : i32
      %c0_i32_239 = arith.constant 0 : i32
      %207 = tpu.memref_slice %arg14[%c0_i32_238, %c0_i32_239] : memref<10x128xf32, #tpu.memory_space<any>> -> memref<1x128xf32, #tpu.memory_space<any>>
      %c0_i32_240 = arith.constant 0 : i32
      %c0_i32_241 = arith.constant 0 : i32
      %208 = tpu.memref_slice %arg16[%c1_i32_234, %c6_i32_235, %c0_i32_240, %c0_i32_241] : memref<2x7x1x128xf32, #tpu.memory_space<vmem>> -> memref<1x1x1x128xf32, #tpu.memory_space<vmem>>
      %209 = tpu.memref_squeeze %208 : memref<1x1x1x128xf32, #tpu.memory_space<vmem>> -> memref<1x128xf32, #tpu.memory_space<vmem>>
      %210 = tpu.memref_slice %arg17[%c1_i32_236, %c6_i32_237] : memref<2x7x!tpu.dma_semaphore, #tpu.memory_space<semaphore_mem>> -> memref<1x1x!tpu.dma_semaphore, #tpu.memory_space<semaphore_mem>>
      %211 = tpu.memref_squeeze %210 : memref<1x1x!tpu.dma_semaphore, #tpu.memory_space<semaphore_mem>> -> memref<!tpu.dma_semaphore, #tpu.memory_space<semaphore_mem>>
      tpu.wait_dma2 semaphore(%211 : memref<!tpu.dma_semaphore, #tpu.memory_space<semaphore_mem>>) src(%207 : memref<1x128xf32, #tpu.memory_space<any>>) dst(%209 : memref<1x128xf32, #tpu.memory_space<vmem>>)
      %c2_i32_242 = arith.constant 2 : i32
      %212 = arith.addi %62, %c2_i32_242 : i32
      %c8_i32_243 = arith.constant 8 : i32
      %213 = arith.cmpi slt, %212, %c8_i32_243 : i32
      %214 = arith.extui %213 : i1 to i32
      %c0_i32_244 = arith.constant 0 : i32
      %215 = arith.cmpi ne, %214, %c0_i32_244 : i32
      scf.if %215 {
        %c2_i32_275 = arith.constant 2 : i32
        %239 = arith.addi %62, %c2_i32_275 : i32
        %240 = arith.addi %0, %239 : i32
        %241 = arith.index_cast %240 : i32 to index
        %242 = memref.load %arg1[%241] : memref<8xi32, #tpu.memory_space<smem>>
        %c0_i32_276 = arith.constant 0 : i32
        %c0_i32_277 = arith.constant 0 : i32
        %c0_i32_278 = arith.constant 0 : i32
        %c0_i32_279 = arith.constant 0 : i32
        %c0_i32_280 = arith.constant 0 : i32
        %243 = tpu.memref_slice %arg8[%242, %c0_i32_280] : memref<5x128xf32, #tpu.memory_space<any>> -> memref<1x128xf32, #tpu.memory_space<any>>
        %c0_i32_281 = arith.constant 0 : i32
        %c0_i32_282 = arith.constant 0 : i32
        %244 = tpu.memref_slice %arg16[%c0_i32_276, %c0_i32_277, %c0_i32_281, %c0_i32_282] : memref<2x7x1x128xf32, #tpu.memory_space<vmem>> -> memref<1x1x1x128xf32, #tpu.memory_space<vmem>>
        %245 = tpu.memref_squeeze %244 : memref<1x1x1x128xf32, #tpu.memory_space<vmem>> -> memref<1x128xf32, #tpu.memory_space<vmem>>
        %246 = tpu.memref_slice %arg17[%c0_i32_278, %c0_i32_279] : memref<2x7x!tpu.dma_semaphore, #tpu.memory_space<semaphore_mem>> -> memref<1x1x!tpu.dma_semaphore, #tpu.memory_space<semaphore_mem>>
        %247 = tpu.memref_squeeze %246 : memref<1x1x!tpu.dma_semaphore, #tpu.memory_space<semaphore_mem>> -> memref<!tpu.dma_semaphore, #tpu.memory_space<semaphore_mem>>
        tpu.enqueue_dma source(%243 : memref<1x128xf32, #tpu.memory_space<any>>) target(%245 : memref<1x128xf32, #tpu.memory_space<vmem>>) target_semaphore(%247 : memref<!tpu.dma_semaphore, #tpu.memory_space<semaphore_mem>>)
        %248 = arith.addi %0, %239 : i32
        %249 = arith.index_cast %248 : i32 to index
        %250 = memref.load %arg2[%249] : memref<8xi32, #tpu.memory_space<smem>>
        %c0_i32_283 = arith.constant 0 : i32
        %c1_i32_284 = arith.constant 1 : i32
        %c0_i32_285 = arith.constant 0 : i32
        %c1_i32_286 = arith.constant 1 : i32
        %c0_i32_287 = arith.constant 0 : i32
        %251 = tpu.memref_slice %arg9[%250, %c0_i32_287] : memref<10x128xf32, #tpu.memory_space<any>> -> memref<1x128xf32, #tpu.memory_space<any>>
        %c0_i32_288 = arith.constant 0 : i32
        %c0_i32_289 = arith.constant 0 : i32
        %252 = tpu.memref_slice %arg16[%c0_i32_283, %c1_i32_284, %c0_i32_288, %c0_i32_289] : memref<2x7x1x128xf32, #tpu.memory_space<vmem>> -> memref<1x1x1x128xf32, #tpu.memory_space<vmem>>
        %253 = tpu.memref_squeeze %252 : memref<1x1x1x128xf32, #tpu.memory_space<vmem>> -> memref<1x128xf32, #tpu.memory_space<vmem>>
        %254 = tpu.memref_slice %arg17[%c0_i32_285, %c1_i32_286] : memref<2x7x!tpu.dma_semaphore, #tpu.memory_space<semaphore_mem>> -> memref<1x1x!tpu.dma_semaphore, #tpu.memory_space<semaphore_mem>>
        %255 = tpu.memref_squeeze %254 : memref<1x1x!tpu.dma_semaphore, #tpu.memory_space<semaphore_mem>> -> memref<!tpu.dma_semaphore, #tpu.memory_space<semaphore_mem>>
        tpu.enqueue_dma source(%251 : memref<1x128xf32, #tpu.memory_space<any>>) target(%253 : memref<1x128xf32, #tpu.memory_space<vmem>>) target_semaphore(%255 : memref<!tpu.dma_semaphore, #tpu.memory_space<semaphore_mem>>)
        %256 = arith.addi %0, %239 : i32
        %257 = arith.index_cast %256 : i32 to index
        %258 = memref.load %arg3[%257] : memref<8xi32, #tpu.memory_space<smem>>
        %c0_i32_290 = arith.constant 0 : i32
        %c2_i32_291 = arith.constant 2 : i32
        %c0_i32_292 = arith.constant 0 : i32
        %c2_i32_293 = arith.constant 2 : i32
        %c0_i32_294 = arith.constant 0 : i32
        %259 = tpu.memref_slice %arg10[%258, %c0_i32_294] : memref<10x128xf32, #tpu.memory_space<any>> -> memref<1x128xf32, #tpu.memory_space<any>>
        %c0_i32_295 = arith.constant 0 : i32
        %c0_i32_296 = arith.constant 0 : i32
        %260 = tpu.memref_slice %arg16[%c0_i32_290, %c2_i32_291, %c0_i32_295, %c0_i32_296] : memref<2x7x1x128xf32, #tpu.memory_space<vmem>> -> memref<1x1x1x128xf32, #tpu.memory_space<vmem>>
        %261 = tpu.memref_squeeze %260 : memref<1x1x1x128xf32, #tpu.memory_space<vmem>> -> memref<1x128xf32, #tpu.memory_space<vmem>>
        %262 = tpu.memref_slice %arg17[%c0_i32_292, %c2_i32_293] : memref<2x7x!tpu.dma_semaphore, #tpu.memory_space<semaphore_mem>> -> memref<1x1x!tpu.dma_semaphore, #tpu.memory_space<semaphore_mem>>
        %263 = tpu.memref_squeeze %262 : memref<1x1x!tpu.dma_semaphore, #tpu.memory_space<semaphore_mem>> -> memref<!tpu.dma_semaphore, #tpu.memory_space<semaphore_mem>>
        tpu.enqueue_dma source(%259 : memref<1x128xf32, #tpu.memory_space<any>>) target(%261 : memref<1x128xf32, #tpu.memory_space<vmem>>) target_semaphore(%263 : memref<!tpu.dma_semaphore, #tpu.memory_space<semaphore_mem>>)
        %264 = arith.addi %0, %239 : i32
        %265 = arith.index_cast %264 : i32 to index
        %266 = memref.load %arg4[%265] : memref<8xi32, #tpu.memory_space<smem>>
        %c0_i32_297 = arith.constant 0 : i32
        %c3_i32_298 = arith.constant 3 : i32
        %c0_i32_299 = arith.constant 0 : i32
        %c3_i32_300 = arith.constant 3 : i32
        %c0_i32_301 = arith.constant 0 : i32
        %267 = tpu.memref_slice %arg11[%266, %c0_i32_301] : memref<10x128xf32, #tpu.memory_space<any>> -> memref<1x128xf32, #tpu.memory_space<any>>
        %c0_i32_302 = arith.constant 0 : i32
        %c0_i32_303 = arith.constant 0 : i32
        %268 = tpu.memref_slice %arg16[%c0_i32_297, %c3_i32_298, %c0_i32_302, %c0_i32_303] : memref<2x7x1x128xf32, #tpu.memory_space<vmem>> -> memref<1x1x1x128xf32, #tpu.memory_space<vmem>>
        %269 = tpu.memref_squeeze %268 : memref<1x1x1x128xf32, #tpu.memory_space<vmem>> -> memref<1x128xf32, #tpu.memory_space<vmem>>
        %270 = tpu.memref_slice %arg17[%c0_i32_299, %c3_i32_300] : memref<2x7x!tpu.dma_semaphore, #tpu.memory_space<semaphore_mem>> -> memref<1x1x!tpu.dma_semaphore, #tpu.memory_space<semaphore_mem>>
        %271 = tpu.memref_squeeze %270 : memref<1x1x!tpu.dma_semaphore, #tpu.memory_space<semaphore_mem>> -> memref<!tpu.dma_semaphore, #tpu.memory_space<semaphore_mem>>
        tpu.enqueue_dma source(%267 : memref<1x128xf32, #tpu.memory_space<any>>) target(%269 : memref<1x128xf32, #tpu.memory_space<vmem>>) target_semaphore(%271 : memref<!tpu.dma_semaphore, #tpu.memory_space<semaphore_mem>>)
        %272 = arith.addi %0, %239 : i32
        %273 = arith.index_cast %272 : i32 to index
        %274 = memref.load %arg5[%273] : memref<8xi32, #tpu.memory_space<smem>>
        %c0_i32_304 = arith.constant 0 : i32
        %c4_i32_305 = arith.constant 4 : i32
        %c0_i32_306 = arith.constant 0 : i32
        %c4_i32_307 = arith.constant 4 : i32
        %c0_i32_308 = arith.constant 0 : i32
        %275 = tpu.memref_slice %arg12[%274, %c0_i32_308] : memref<10x128xf32, #tpu.memory_space<any>> -> memref<1x128xf32, #tpu.memory_space<any>>
        %c0_i32_309 = arith.constant 0 : i32
        %c0_i32_310 = arith.constant 0 : i32
        %276 = tpu.memref_slice %arg16[%c0_i32_304, %c4_i32_305, %c0_i32_309, %c0_i32_310] : memref<2x7x1x128xf32, #tpu.memory_space<vmem>> -> memref<1x1x1x128xf32, #tpu.memory_space<vmem>>
        %277 = tpu.memref_squeeze %276 : memref<1x1x1x128xf32, #tpu.memory_space<vmem>> -> memref<1x128xf32, #tpu.memory_space<vmem>>
        %278 = tpu.memref_slice %arg17[%c0_i32_306, %c4_i32_307] : memref<2x7x!tpu.dma_semaphore, #tpu.memory_space<semaphore_mem>> -> memref<1x1x!tpu.dma_semaphore, #tpu.memory_space<semaphore_mem>>
        %279 = tpu.memref_squeeze %278 : memref<1x1x!tpu.dma_semaphore, #tpu.memory_space<semaphore_mem>> -> memref<!tpu.dma_semaphore, #tpu.memory_space<semaphore_mem>>
        tpu.enqueue_dma source(%275 : memref<1x128xf32, #tpu.memory_space<any>>) target(%277 : memref<1x128xf32, #tpu.memory_space<vmem>>) target_semaphore(%279 : memref<!tpu.dma_semaphore, #tpu.memory_space<semaphore_mem>>)
        %280 = arith.addi %0, %239 : i32
        %281 = arith.index_cast %280 : i32 to index
        %282 = memref.load %arg6[%281] : memref<8xi32, #tpu.memory_space<smem>>
        %c0_i32_311 = arith.constant 0 : i32
        %c5_i32_312 = arith.constant 5 : i32
        %c0_i32_313 = arith.constant 0 : i32
        %c5_i32_314 = arith.constant 5 : i32
        %c0_i32_315 = arith.constant 0 : i32
        %283 = tpu.memref_slice %arg13[%282, %c0_i32_315] : memref<10x128xf32, #tpu.memory_space<any>> -> memref<1x128xf32, #tpu.memory_space<any>>
        %c0_i32_316 = arith.constant 0 : i32
        %c0_i32_317 = arith.constant 0 : i32
        %284 = tpu.memref_slice %arg16[%c0_i32_311, %c5_i32_312, %c0_i32_316, %c0_i32_317] : memref<2x7x1x128xf32, #tpu.memory_space<vmem>> -> memref<1x1x1x128xf32, #tpu.memory_space<vmem>>
        %285 = tpu.memref_squeeze %284 : memref<1x1x1x128xf32, #tpu.memory_space<vmem>> -> memref<1x128xf32, #tpu.memory_space<vmem>>
        %286 = tpu.memref_slice %arg17[%c0_i32_313, %c5_i32_314] : memref<2x7x!tpu.dma_semaphore, #tpu.memory_space<semaphore_mem>> -> memref<1x1x!tpu.dma_semaphore, #tpu.memory_space<semaphore_mem>>
        %287 = tpu.memref_squeeze %286 : memref<1x1x!tpu.dma_semaphore, #tpu.memory_space<semaphore_mem>> -> memref<!tpu.dma_semaphore, #tpu.memory_space<semaphore_mem>>
        tpu.enqueue_dma source(%283 : memref<1x128xf32, #tpu.memory_space<any>>) target(%285 : memref<1x128xf32, #tpu.memory_space<vmem>>) target_semaphore(%287 : memref<!tpu.dma_semaphore, #tpu.memory_space<semaphore_mem>>)
        %288 = arith.addi %0, %239 : i32
        %289 = arith.index_cast %288 : i32 to index
        %290 = memref.load %arg7[%289] : memref<8xi32, #tpu.memory_space<smem>>
        %c0_i32_318 = arith.constant 0 : i32
        %c6_i32_319 = arith.constant 6 : i32
        %c0_i32_320 = arith.constant 0 : i32
        %c6_i32_321 = arith.constant 6 : i32
        %c0_i32_322 = arith.constant 0 : i32
        %291 = tpu.memref_slice %arg14[%290, %c0_i32_322] : memref<10x128xf32, #tpu.memory_space<any>> -> memref<1x128xf32, #tpu.memory_space<any>>
        %c0_i32_323 = arith.constant 0 : i32
        %c0_i32_324 = arith.constant 0 : i32
        %292 = tpu.memref_slice %arg16[%c0_i32_318, %c6_i32_319, %c0_i32_323, %c0_i32_324] : memref<2x7x1x128xf32, #tpu.memory_space<vmem>> -> memref<1x1x1x128xf32, #tpu.memory_space<vmem>>
        %293 = tpu.memref_squeeze %292 : memref<1x1x1x128xf32, #tpu.memory_space<vmem>> -> memref<1x128xf32, #tpu.memory_space<vmem>>
        %294 = tpu.memref_slice %arg17[%c0_i32_320, %c6_i32_321] : memref<2x7x!tpu.dma_semaphore, #tpu.memory_space<semaphore_mem>> -> memref<1x1x!tpu.dma_semaphore, #tpu.memory_space<semaphore_mem>>
        %295 = tpu.memref_squeeze %294 : memref<1x1x!tpu.dma_semaphore, #tpu.memory_space<semaphore_mem>> -> memref<!tpu.dma_semaphore, #tpu.memory_space<semaphore_mem>>
        tpu.enqueue_dma source(%291 : memref<1x128xf32, #tpu.memory_space<any>>) target(%293 : memref<1x128xf32, #tpu.memory_space<vmem>>) target_semaphore(%295 : memref<!tpu.dma_semaphore, #tpu.memory_space<semaphore_mem>>)
      } else {
      }
      %c1_i32_245 = arith.constant 1 : i32
      %216 = arith.addi %62, %c1_i32_245 : i32
      %c1_246 = arith.constant 1 : index
      %c0_247 = arith.constant 0 : index
      %c0_248 = arith.constant 0 : index
      %c0_249 = arith.constant 0 : index
      %217 = vector.load %arg16[%c1_246, %c0_247, %c0_248, %c0_249] : memref<2x7x1x128xf32, #tpu.memory_space<vmem>>, vector<1x1x1x128xf32>
      %218 = vector.shape_cast %217 : vector<1x1x1x128xf32> to vector<1x128xf32>
      %c1_250 = arith.constant 1 : index
      %c1_251 = arith.constant 1 : index
      %c0_252 = arith.constant 0 : index
      %c0_253 = arith.constant 0 : index
      %219 = vector.load %arg16[%c1_250, %c1_251, %c0_252, %c0_253] : memref<2x7x1x128xf32, #tpu.memory_space<vmem>>, vector<1x1x1x128xf32>
      %220 = vector.shape_cast %219 : vector<1x1x1x128xf32> to vector<1x128xf32>
      %221 = arith.mulf %218, %220 : vector<1x128xf32>
      %c1_254 = arith.constant 1 : index
      %c2_255 = arith.constant 2 : index
      %c0_256 = arith.constant 0 : index
      %c0_257 = arith.constant 0 : index
      %222 = vector.load %arg16[%c1_254, %c2_255, %c0_256, %c0_257] : memref<2x7x1x128xf32, #tpu.memory_space<vmem>>, vector<1x1x1x128xf32>
      %223 = vector.shape_cast %222 : vector<1x1x1x128xf32> to vector<1x128xf32>
      %224 = arith.mulf %221, %223 : vector<1x128xf32>
      %c1_258 = arith.constant 1 : index
      %c3_259 = arith.constant 3 : index
      %c0_260 = arith.constant 0 : index
      %c0_261 = arith.constant 0 : index
      %225 = vector.load %arg16[%c1_258, %c3_259, %c0_260, %c0_261] : memref<2x7x1x128xf32, #tpu.memory_space<vmem>>, vector<1x1x1x128xf32>
      %226 = vector.shape_cast %225 : vector<1x1x1x128xf32> to vector<1x128xf32>
      %227 = arith.mulf %224, %226 : vector<1x128xf32>
      %c1_262 = arith.constant 1 : index
      %c4_263 = arith.constant 4 : index
      %c0_264 = arith.constant 0 : index
      %c0_265 = arith.constant 0 : index
      %228 = vector.load %arg16[%c1_262, %c4_263, %c0_264, %c0_265] : memref<2x7x1x128xf32, #tpu.memory_space<vmem>>, vector<1x1x1x128xf32>
      %229 = vector.shape_cast %228 : vector<1x1x1x128xf32> to vector<1x128xf32>
      %230 = arith.mulf %227, %229 : vector<1x128xf32>
      %c1_266 = arith.constant 1 : index
      %c5_267 = arith.constant 5 : index
      %c0_268 = arith.constant 0 : index
      %c0_269 = arith.constant 0 : index
      %231 = vector.load %arg16[%c1_266, %c5_267, %c0_268, %c0_269] : memref<2x7x1x128xf32, #tpu.memory_space<vmem>>, vector<1x1x1x128xf32>
      %232 = vector.shape_cast %231 : vector<1x1x1x128xf32> to vector<1x128xf32>
      %233 = arith.mulf %230, %232 : vector<1x128xf32>
      %c1_270 = arith.constant 1 : index
      %c6_271 = arith.constant 6 : index
      %c0_272 = arith.constant 0 : index
      %c0_273 = arith.constant 0 : index
      %234 = vector.load %arg16[%c1_270, %c6_271, %c0_272, %c0_273] : memref<2x7x1x128xf32, #tpu.memory_space<vmem>>, vector<1x1x1x128xf32>
      %235 = vector.shape_cast %234 : vector<1x1x1x128xf32> to vector<1x128xf32>
      %236 = arith.mulf %233, %235 : vector<1x128xf32>
      %237 = arith.index_cast %216 : i32 to index
      %c0_274 = arith.constant 0 : index
      %238 = vector.load %arg18[%237, %c0_274] : memref<8x128xf32, #tpu.memory_space<vmem>>, vector<1x128xf32>
      tpu.vector_store %arg18[%237, %c0_274], %236 {strides = array<i32>} : memref<8x128xf32, #tpu.memory_space<vmem>>, vector<1x128xf32>,
    }
    %c4_i32_52 = arith.constant 4 : i32
    %c0 = arith.constant 0 : index
    %c0_53 = arith.constant 0 : index
    %58 = vector.load %arg18[%c0, %c0_53] : memref<8x128xf32, #tpu.memory_space<vmem>>, vector<8x128xf32>
    %cst = arith.constant dense<0.000000e+00> : vector<8xf32>
    %59 = vector.multi_reduction <add>, %58, %cst [1] : vector<8x128xf32> to vector<8xf32>
    %60 = vector.shape_cast %59 : vector<8xf32> to vector<8x1xf32>
    %c0_54 = arith.constant 0 : index
    %c0_55 = arith.constant 0 : index
    %61 = vector.load %arg15[%c0_54, %c0_55] : memref<8x1xf32, #tpu.memory_space<vmem>>, vector<8x1xf32>
    tpu.vector_store %arg15[%c0_54, %c0_55], %60 {strides = array<i32>} : memref<8x1xf32, #tpu.memory_space<vmem>>, vector<8x1xf32>,
    return
  }
  func.func @transform_7(%arg0: i32, %arg1: memref<8xi32, #tpu.memory_space<smem>>, %arg2: memref<8xi32, #tpu.memory_space<smem>>, %arg3: memref<8xi32, #tpu.memory_space<smem>>, %arg4: memref<8xi32, #tpu.memory_space<smem>>, %arg5: memref<8xi32, #tpu.memory_space<smem>>, %arg6: memref<8xi32, #tpu.memory_space<smem>>, %arg7: memref<8xi32, #tpu.memory_space<smem>>) -> (i32, i32) {
    %c0_i32 = arith.constant 0 : i32
    %c0_i32_0 = arith.constant 0 : i32
    return %arg0, %c0_i32 : i32, i32
  }
}

</mosaic_0001>

<llo_original>
// kernel: tpu_custom_call.1
$region0: #{tpu_custom_call.1}
  #allocation0 [shape = 'u32[]', space=smem, size = 0x4, offset = 0x4, fixed_abs, tag = 'smem constant byte address 0x4 - core index']
  #allocation1 [shape = 'u32[144,128]{1,0:T(1,128)}', space=vmem, size = 0x12000, scoped, tag = 'internal scratch']
  #allocation2 [shape = 'f32[8,128]{1,0:T(8,128)}', space=vmem, size = 0x1000, scoped, tag = 'scratch operand']
  #allocation3 [shape = 's32[1]{0}', space=sflag, size = 0x4, scoped, tag = 'scoped memory for tpu_custom_call.1']
  #allocation4 [shape = 'u8[512]{0}', space=smem, size = 0x200, scoped, tag = 'prefetched SMEM operand 0']
  #allocation5 [shape = 'u8[512]{0}', space=smem, size = 0x200, scoped, tag = 'prefetched SMEM operand 1']
  #allocation6 [shape = 'u8[512]{0}', space=smem, size = 0x200, scoped, tag = 'prefetched SMEM operand 2']
  #allocation7 [shape = 'u8[512]{0}', space=smem, size = 0x200, scoped, tag = 'prefetched SMEM operand 3']
  #allocation8 [shape = 'u8[512]{0}', space=smem, size = 0x200, scoped, tag = 'prefetched SMEM operand 4']
  #allocation9 [shape = 'u8[512]{0}', space=smem, size = 0x200, scoped, tag = 'prefetched SMEM operand 5']
  #allocation10 [shape = 'u8[512]{0}', space=smem, size = 0x200, scoped, tag = 'prefetched SMEM operand 6']
  %s0 = inlined_call_operand.hbm [shape: s32[8], index: 0, kind: input, shape index: {}]
  %s1 = inlined_call_operand.vmem [shape: s32[8], index: 1, kind: input, shape index: {}]
  %s2 = inlined_call_operand.hbm [shape: s32[8], index: 2, kind: input, shape index: {}]
  %s3 = inlined_call_operand.hbm [shape: s32[8], index: 3, kind: input, shape index: {}]
  %s4 = inlined_call_operand.hbm [shape: s32[8], index: 4, kind: input, shape index: {}]
  %s5 = inlined_call_operand.hbm [shape: s32[8], index: 5, kind: input, shape index: {}]
  %s6 = inlined_call_operand.hbm [shape: s32[8], index: 6, kind: input, shape index: {}]
  %s7 = inlined_call_operand.hbm [shape: f32[5,128], index: 7, kind: input, shape index: {}]
  %s8 = inlined_call_operand.vmem [shape: f32[10,128], index: 8, kind: input, shape index: {}]
  %s9 = inlined_call_operand.vmem [shape: f32[10,128], index: 9, kind: input, shape index: {}]
  %s10 = inlined_call_operand.hbm [shape: f32[10,128], index: 10, kind: input, shape index: {}]
  %s11 = inlined_call_operand.hbm [shape: f32[10,128], index: 11, kind: input, shape index: {}]
  %s12 = inlined_call_operand.hbm [shape: f32[10,128], index: 12, kind: input, shape index: {}]
  %s13 = inlined_call_operand.vmem [shape: f32[10,128], index: 13, kind: input, shape index: {}]
  %s14 = inlined_call_operand.vmem [shape: f32[8,1], index: 14, kind: output, shape index: {}]
  %s15 = sld [smem:[#allocation0]]
  $region54: #{tpu_custom_call.1} parent=0
    _
  %s17 = ssub.s32 1, %s15
  %s18 = scalar_select 0, %s17, %s15
  %20 = dma.hbm_to_smem %s0, 16, [#allocation4], [#allocation3]
  %s21 = sshll.u32 %s1, 4
  %s22 = int_to_ptr.vmem [resolvable:$true] %s21
  %24 = dma.vmem_to_smem %s22, 16, [#allocation5], [#allocation3]
  %26 = dma.hbm_to_smem %s2, 16, [#allocation6], [#allocation3]
  %28 = dma.hbm_to_smem %s3, 16, [#allocation7], [#allocation3]
  %30 = dma.hbm_to_smem %s4, 16, [#allocation8], [#allocation3]
  %32 = dma.hbm_to_smem %s5, 16, [#allocation9], [#allocation3]
  %34 = dma.hbm_to_smem %s6, 16, [#allocation10], [#allocation3]
  %35 = dma.done [#allocation3], 112
  %36 = sfence
  $region1: #{tpu_custom_call.1} parent=0
    #allocation11 [shape = 'u8[4096]{0}', space=vmem, size = 0x1000, scoped, tag = 'input window, operand 7, single buffered']
    #allocation12 [shape = 's32[1]{0}', space=sflag, size = 0x4, scoped, tag = 'scoped memory for tpu_custom_call.1']
    #allocation13 [shape = 'u8[8192]{0}', space=vmem, size = 0x2000, scoped, tag = 'input window, operand 10, single buffered']
    #allocation14 [shape = 's32[1]{0}', space=sflag, size = 0x4, scoped, tag = 'scoped memory for tpu_custom_call.1']
    #allocation15 [shape = 'u8[8192]{0}', space=vmem, size = 0x2000, scoped, tag = 'input window, operand 11, single buffered']
    #allocation16 [shape = 'u8[8192]{0}', space=vmem, size = 0x2000, scoped, tag = 'input window, operand 12, single buffered']
    #allocation17 [shape = 's32[1]{0}', space=sflag, size = 0x4, scoped, tag = 'scoped memory for tpu_custom_call.1']
    %37 = vsyncpa [#allocation12], 0
    %38 = vsyncpa [#allocation14], 0
    %39 = vsyncpa [#allocation17], 0
    // Predicated region
    $region2: #{tpu_custom_call.1} parent=1 // pred_check
      _
    $region3: #{tpu_custom_call.1} parent=1 // pred_check_branch
      %41 = sbr.rel (0) target = $region5
    $region4: #{tpu_custom_call.1} parent=1 // pred_region
      %s43 = ssub.s32 128, 128
      %44 = vsyncadd [#allocation12], %s43
      %s46 = sshll.u32 [#allocation11], 4
      %s47 = int_to_ptr.vmem [resolvable:$true] %s46
      %49 = dma.hbm_to_vmem [thread:$0]  %s7, 128, %s47, [#allocation12]
    $region5: #{tpu_custom_call.1} parent=1 // pred_fallthru
      _
    // Predicated region
    $region6: #{tpu_custom_call.1} parent=1 // pred_check
      _
    $region7: #{tpu_custom_call.1} parent=1 // pred_check_branch
      %51 = sbr.rel (0) target = $region9
    $region8: #{tpu_custom_call.1} parent=1 // pred_region
      _
    $region9: #{tpu_custom_call.1} parent=1 // pred_fallthru
      _
    // Predicated region
    $region10: #{tpu_custom_call.1} parent=1 // pred_check
      _
    $region11: #{tpu_custom_call.1} parent=1 // pred_check_branch
      %53 = sbr.rel (0) target = $region13
    $region12: #{tpu_custom_call.1} parent=1 // pred_region
      _
    $region13: #{tpu_custom_call.1} parent=1 // pred_fallthru
      _
    // Predicated region
    $region14: #{tpu_custom_call.1} parent=1 // pred_check
      _
    $region15: #{tpu_custom_call.1} parent=1 // pred_check_branch
      %55 = sbr.rel (0) target = $region17
    $region16: #{tpu_custom_call.1} parent=1 // pred_region
      %s57 = ssub.s32 256, 256
      %58 = vsyncadd [#allocation14], %s57
      %s59 = sshll.u32 [#allocation13], 4
      %s60 = int_to_ptr.vmem [resolvable:$true] %s59
      %65 = dma.hbm_to_vmem [thread:$0]  %s10, 256, %s60, [#allocation14], 128, 128, 8
    $region17: #{tpu_custom_call.1} parent=1 // pred_fallthru
      _
    // Predicated region
    $region18: #{tpu_custom_call.1} parent=1 // pred_check
      _
    $region19: #{tpu_custom_call.1} parent=1 // pred_check_branch
      %67 = sbr.rel (0) target = $region21
    $region20: #{tpu_custom_call.1} parent=1 // pred_region
      %s69 = ssub.s32 256, 256
      %70 = vsyncadd [#allocation14], %s69
      %s71 = sshll.u32 [#allocation15], 4
      %s72 = int_to_ptr.vmem [resolvable:$true] %s71
      %77 = dma.hbm_to_vmem [thread:$0]  %s11, 256, %s72, [#allocation14], 128, 128, 8
    $region21: #{tpu_custom_call.1} parent=1 // pred_fallthru
      _
    // Predicated region
    $region22: #{tpu_custom_call.1} parent=1 // pred_check
      _
    $region23: #{tpu_custom_call.1} parent=1 // pred_check_branch
      %79 = sbr.rel (0) target = $region25
    $region24: #{tpu_custom_call.1} parent=1 // pred_region
      %s81 = ssub.s32 256, 256
      %82 = vsyncadd [#allocation17], %s81
      %s83 = sshll.u32 [#allocation16], 4
      %s84 = int_to_ptr.vmem [resolvable:$true] %s83
      %89 = dma.hbm_to_vmem [thread:$0]  %s12, 256, %s84, [#allocation17], 128, 128, 8
    $region25: #{tpu_custom_call.1} parent=1 // pred_fallthru
      _
    // Predicated region
    $region26: #{tpu_custom_call.1} parent=1 // pred_check
      _
    $region27: #{tpu_custom_call.1} parent=1 // pred_check_branch
      %91 = sbr.rel (0) target = $region29
    $region28: #{tpu_custom_call.1} parent=1 // pred_region
      _
    $region29: #{tpu_custom_call.1} parent=1 // pred_fallthru
      _
    // Predicated region
    $region30: #{tpu_custom_call.1} parent=1 // pred_check
      _
    $region31: #{tpu_custom_call.1} parent=1 // pred_check_branch
      %93 = sbr.rel (0) target = $region33
    $region32: #{tpu_custom_call.1} parent=1 // pred_region
      %94 = dma.done [#allocation12], 128
    $region33: #{tpu_custom_call.1} parent=1 // pred_fallthru
      _
    // Predicated region
    $region34: #{tpu_custom_call.1} parent=1 // pred_check
      _
    $region35: #{tpu_custom_call.1} parent=1 // pred_check_branch
      %96 = sbr.rel (0) target = $region37
    $region36: #{tpu_custom_call.1} parent=1 // pred_region
      %97 = dma.done [#allocation14], 256
    $region37: #{tpu_custom_call.1} parent=1 // pred_fallthru
      _
    // Predicated region
    $region38: #{tpu_custom_call.1} parent=1 // pred_check
      _
    $region39: #{tpu_custom_call.1} parent=1 // pred_check_branch
      %99 = sbr.rel (0) target = $region41
    $region40: #{tpu_custom_call.1} parent=1 // pred_region
      %100 = dma.done [#allocation14], 256
    $region41: #{tpu_custom_call.1} parent=1 // pred_fallthru
      _
    // Predicated region
    $region42: #{tpu_custom_call.1} parent=1 // pred_check
      _
    $region43: #{tpu_custom_call.1} parent=1 // pred_check_branch
      %102 = sbr.rel (0) target = $region45
    $region44: #{tpu_custom_call.1} parent=1 // pred_region
      %103 = dma.done [#allocation17], 256
    $region45: #{tpu_custom_call.1} parent=1 // pred_fallthru
      _
    %s104 = smul.u32 0, 8
    %s105 = sadd.s32 %s104, 0
    %s106 = sld [smem:[#allocation4 + %s105]]
    %s107 = scalar_lea.vmem [#allocation11], %s106
    %v108 = vld [vmem:[%s107] sm:$0x1]
    %s109 = sld [smem:[#allocation5 + %s105]]
    %s110 = scalar_lea.vmem %s8, %s109
    %v111 = vld [vmem:[%s110] sm:$0x1]
    %v112 = vmul.f32 %v108, %v111
    %s113 = sld [smem:[#allocation6 + %s105]]
    %s114 = scalar_lea.vmem %s9, %s113
    %v115 = vld [vmem:[%s114] sm:$0x1]
    %v116 = vmul.f32 %v112, %v115
    %s117 = sld [smem:[#allocation7 + %s105]]
    %s118 = scalar_lea.vmem [#allocation13], %s117
    %v119 = vld [vmem:[%s118] sm:$0x1]
    %v120 = vmul.f32 %v116, %v119
    %s121 = sld [smem:[#allocation8 + %s105]]
    %s122 = scalar_lea.vmem [#allocation15], %s121
    %v123 = vld [vmem:[%s122] sm:$0x1]
    %v124 = vmul.f32 %v120, %v123
    %s125 = sld [smem:[#allocation9 + %s105]]
    %s126 = scalar_lea.vmem [#allocation16], %s125
    %v127 = vld [vmem:[%s126] sm:$0x1]
    %v128 = vmul.f32 %v124, %v127
    %s129 = sld [smem:[#allocation10 + %s105]]
    %s130 = scalar_lea.vmem %s13, %s129
    %v131 = vld [vmem:[%s130] sm:$0x1]
    %v132 = vmul.f32 %v128, %v131
    %s133 = sadd.s32 0, 1
    %s134 = sadd.s32 %s104, %s133
    %s135 = sld [smem:[#allocation4 + %s134]]
    %s136 = scalar_lea.vmem [#allocation11], %s135
    %v137 = vld [vmem:[%s136] sm:$0x1]
    %s138 = sld [smem:[#allocation5 + %s134]]
    %s139 = scalar_lea.vmem %s8, %s138
    %v140 = vld [vmem:[%s139] sm:$0x1]
    %v141 = vmul.f32 %v137, %v140
    %s142 = sld [smem:[#allocation6 + %s134]]
    %s143 = scalar_lea.vmem %s9, %s142
    %v144 = vld [vmem:[%s143] sm:$0x1]
    %v145 = vmul.f32 %v141, %v144
    %s146 = sld [smem:[#allocation7 + %s134]]
    %s147 = scalar_lea.vmem [#allocation13], %s146
    %v148 = vld [vmem:[%s147] sm:$0x1]
    %v149 = vmul.f32 %v145, %v148
    %s150 = sld [smem:[#allocation8 + %s134]]
    %s151 = scalar_lea.vmem [#allocation15], %s150
    %v152 = vld [vmem:[%s151] sm:$0x1]
    %v153 = vmul.f32 %v149, %v152
    %s154 = sld [smem:[#allocation9 + %s134]]
    %s155 = scalar_lea.vmem [#allocation16], %s154
    %v156 = vld [vmem:[%s155] sm:$0x1]
    %v157 = vmul.f32 %v153, %v156
    %s158 = sld [smem:[#allocation10 + %s134]]
    %s159 = scalar_lea.vmem %s13, %s158
    %v160 = vld [vmem:[%s159] sm:$0x1]
    %v161 = vmul.f32 %v157, %v160
    %s162 = sadd.s32 0, 2
    %s163 = sadd.s32 %s104, %s162
    %s164 = sld [smem:[#allocation4 + %s163]]
    %s165 = scalar_lea.vmem [#allocation11], %s164
    %v166 = vld [vmem:[%s165] sm:$0x1]
    %s167 = sld [smem:[#allocation5 + %s163]]
    %s168 = scalar_lea.vmem %s8, %s167
    %v169 = vld [vmem:[%s168] sm:$0x1]
    %v170 = vmul.f32 %v166, %v169
    %s171 = sld [smem:[#allocation6 + %s163]]
    %s172 = scalar_lea.vmem %s9, %s171
    %v173 = vld [vmem:[%s172] sm:$0x1]
    %v174 = vmul.f32 %v170, %v173
    %s175 = sld [smem:[#allocation7 + %s163]]
    %s176 = scalar_lea.vmem [#allocation13], %s175
    %v177 = vld [vmem:[%s176] sm:$0x1]
    %v178 = vmul.f32 %v174, %v177
    %s179 = sld [smem:[#allocation8 + %s163]]
    %s180 = scalar_lea.vmem [#allocation15], %s179
    %v181 = vld [vmem:[%s180] sm:$0x1]
    %v182 = vmul.f32 %v178, %v181
    %s183 = sld [smem:[#allocation9 + %s163]]
    %s184 = scalar_lea.vmem [#allocation16], %s183
    %v185 = vld [vmem:[%s184] sm:$0x1]
    %v186 = vmul.f32 %v182, %v185
    %s187 = sld [smem:[#allocation10 + %s163]]
    %s188 = scalar_lea.vmem %s13, %s187
    %v189 = vld [vmem:[%s188] sm:$0x1]
    %v190 = vmul.f32 %v186, %v189
    %s191 = sadd.s32 0, 3
    %s192 = sadd.s32 %s104, %s191
    %s193 = sld [smem:[#allocation4 + %s192]]
    %s194 = scalar_lea.vmem [#allocation11], %s193
    %v195 = vld [vmem:[%s194] sm:$0x1]
    %s196 = sld [smem:[#allocation5 + %s192]]
    %s197 = scalar_lea.vmem %s8, %s196
    %v198 = vld [vmem:[%s197] sm:$0x1]
    %v199 = vmul.f32 %v195, %v198
    %s200 = sld [smem:[#allocation6 + %s192]]
    %s201 = scalar_lea.vmem %s9, %s200
    %v202 = vld [vmem:[%s201] sm:$0x1]
    %v203 = vmul.f32 %v199, %v202
    %s204 = sld [smem:[#allocation7 + %s192]]
    %s205 = scalar_lea.vmem [#allocation13], %s204
    %v206 = vld [vmem:[%s205] sm:$0x1]
    %v207 = vmul.f32 %v203, %v206
    %s208 = sld [smem:[#allocation8 + %s192]]
    %s209 = scalar_lea.vmem [#allocation15], %s208
    %v210 = vld [vmem:[%s209] sm:$0x1]
    %v211 = vmul.f32 %v207, %v210
    %s212 = sld [smem:[#allocation9 + %s192]]
    %s213 = scalar_lea.vmem [#allocation16], %s212
    %v214 = vld [vmem:[%s213] sm:$0x1]
    %v215 = vmul.f32 %v211, %v214
    %s216 = sld [smem:[#allocation10 + %s192]]
    %s217 = scalar_lea.vmem %s13, %s216
    %v218 = vld [vmem:[%s217] sm:$0x1]
    %v219 = vmul.f32 %v215, %v218
    %s220 = sadd.s32 0, 4
    %s221 = sadd.s32 %s104, %s220
    %s222 = sld [smem:[#allocation4 + %s221]]
    %s223 = scalar_lea.vmem [#allocation11], %s222
    %v224 = vld [vmem:[%s223] sm:$0x1]
    %s225 = sld [smem:[#allocation5 + %s221]]
    %s226 = scalar_lea.vmem %s8, %s225
    %v227 = vld [vmem:[%s226] sm:$0x1]
    %v228 = vmul.f32 %v224, %v227
    %s229 = sld [smem:[#allocation6 + %s221]]
    %s230 = scalar_lea.vmem %s9, %s229
    %v231 = vld [vmem:[%s230] sm:$0x1]
    %v232 = vmul.f32 %v228, %v231
    %s233 = sld [smem:[#allocation7 + %s221]]
    %s234 = scalar_lea.vmem [#allocation13], %s233
    %v235 = vld [vmem:[%s234] sm:$0x1]
    %v236 = vmul.f32 %v232, %v235
    %s237 = sld [smem:[#allocation8 + %s221]]
    %s238 = scalar_lea.vmem [#allocation15], %s237
    %v239 = vld [vmem:[%s238] sm:$0x1]
    %v240 = vmul.f32 %v236, %v239
    %s241 = sld [smem:[#allocation9 + %s221]]
    %s242 = scalar_lea.vmem [#allocation16], %s241
    %v243 = vld [vmem:[%s242] sm:$0x1]
    %v244 = vmul.f32 %v240, %v243
    %s245 = sld [smem:[#allocation10 + %s221]]
    %s246 = scalar_lea.vmem %s13, %s245
    %v247 = vld [vmem:[%s246] sm:$0x1]
    %v248 = vmul.f32 %v244, %v247
    %s249 = sadd.s32 0, 5
    %s250 = sadd.s32 %s104, %s249
    %s251 = sld [smem:[#allocation4 + %s250]]
    %s252 = scalar_lea.vmem [#allocation11], %s251
    %v253 = vld [vmem:[%s252] sm:$0x1]
    %s254 = sld [smem:[#allocation5 + %s250]]
    %s255 = scalar_lea.vmem %s8, %s254
    %v256 = vld [vmem:[%s255] sm:$0x1]
    %v257 = vmul.f32 %v253, %v256
    %s258 = sld [smem:[#allocation6 + %s250]]
    %s259 = scalar_lea.vmem %s9, %s258
    %v260 = vld [vmem:[%s259] sm:$0x1]
    %v261 = vmul.f32 %v257, %v260
    %s262 = sld [smem:[#allocation7 + %s250]]
    %s263 = scalar_lea.vmem [#allocation13], %s262
    %v264 = vld [vmem:[%s263] sm:$0x1]
    %v265 = vmul.f32 %v261, %v264
    %s266 = sld [smem:[#allocation8 + %s250]]
    %s267 = scalar_lea.vmem [#allocation15], %s266
    %v268 = vld [vmem:[%s267] sm:$0x1]
    %v269 = vmul.f32 %v265, %v268
    %s270 = sld [smem:[#allocation9 + %s250]]
    %s271 = scalar_lea.vmem [#allocation16], %s270
    %v272 = vld [vmem:[%s271] sm:$0x1]
    %v273 = vmul.f32 %v269, %v272
    %s274 = sld [smem:[#allocation10 + %s250]]
    %s275 = scalar_lea.vmem %s13, %s274
    %v276 = vld [vmem:[%s275] sm:$0x1]
    %v277 = vmul.f32 %v273, %v276
    %s278 = sadd.s32 0, 6
    %s279 = sadd.s32 %s104, %s278
    %s280 = sld [smem:[#allocation4 + %s279]]
    %s281 = scalar_lea.vmem [#allocation11], %s280
    %v282 = vld [vmem:[%s281] sm:$0x1]
    %s283 = sld [smem:[#allocation5 + %s279]]
    %s284 = scalar_lea.vmem %s8, %s283
    %v285 = vld [vmem:[%s284] sm:$0x1]
    %v286 = vmul.f32 %v282, %v285
    %s287 = sld [smem:[#allocation6 + %s279]]
    %s288 = scalar_lea.vmem %s9, %s287
    %v289 = vld [vmem:[%s288] sm:$0x1]
    %v290 = vmul.f32 %v286, %v289
    %s291 = sld [smem:[#allocation7 + %s279]]
    %s292 = scalar_lea.vmem [#allocation13], %s291
    %v293 = vld [vmem:[%s292] sm:$0x1]
    %v294 = vmul.f32 %v290, %v293
    %s295 = sld [smem:[#allocation8 + %s279]]
    %s296 = scalar_lea.vmem [#allocation15], %s295
    %v297 = vld [vmem:[%s296] sm:$0x1]
    %v298 = vmul.f32 %v294, %v297
    %s299 = sld [smem:[#allocation9 + %s279]]
    %s300 = scalar_lea.vmem [#allocation16], %s299
    %v301 = vld [vmem:[%s300] sm:$0x1]
    %v302 = vmul.f32 %v298, %v301
    %s303 = sld [smem:[#allocation10 + %s279]]
    %s304 = scalar_lea.vmem %s13, %s303
    %v305 = vld [vmem:[%s304] sm:$0x1]
    %v306 = vmul.f32 %v302, %v305
    %s307 = sadd.s32 0, 7
    %s308 = sadd.s32 %s104, %s307
    %s309 = sld [smem:[#allocation4 + %s308]]
    %s310 = scalar_lea.vmem [#allocation11], %s309
    %v311 = vld [vmem:[%s310] sm:$0x1]
    %s312 = sld [smem:[#allocation5 + %s308]]
    %s313 = scalar_lea.vmem %s8, %s312
    %v314 = vld [vmem:[%s313] sm:$0x1]
    %v315 = vmul.f32 %v311, %v314
    %s316 = sld [smem:[#allocation6 + %s308]]
    %s317 = scalar_lea.vmem %s9, %s316
    %v318 = vld [vmem:[%s317] sm:$0x1]
    %v319 = vmul.f32 %v315, %v318
    %s320 = sld [smem:[#allocation7 + %s308]]
    %s321 = scalar_lea.vmem [#allocation13], %s320
    %v322 = vld [vmem:[%s321] sm:$0x1]
    %v323 = vmul.f32 %v319, %v322
    %s324 = sld [smem:[#allocation8 + %s308]]
    %s325 = scalar_lea.vmem [#allocation15], %s324
    %v326 = vld [vmem:[%s325] sm:$0x1]
    %v327 = vmul.f32 %v323, %v326
    %s328 = sld [smem:[#allocation9 + %s308]]
    %s329 = scalar_lea.vmem [#allocation16], %s328
    %v330 = vld [vmem:[%s329] sm:$0x1]
    %v331 = vmul.f32 %v327, %v330
    %s332 = sld [smem:[#allocation10 + %s308]]
    %s333 = scalar_lea.vmem %s13, %s332
    %v334 = vld [vmem:[%s333] sm:$0x1]
    %v335 = vmul.f32 %v331, %v334
    %v337 = vrot.slane %v161, 7
    %v340 = vrot.slane %v190, 6
    %v343 = vrot.slane %v219, 5
    %v346 = vrot.slane %v248, 4
    %v349 = vrot.slane %v277, 3
    %v352 = vrot.slane %v306, 2
    %v355 = vrot.slane %v335, 1
    %vm357 = vcmask 1040384
    %v358 = vsel %vm357, %v132, %v337
    %vm359 = vcmask 1041408
    %v360 = vsel %vm359, %v358, %v340
    %vm361 = vcmask 1042432
    %v362 = vsel %vm361, %v360, %v343
    %vm363 = vcmask 1043456
    %v364 = vsel %vm363, %v362, %v346
    %vm365 = vcmask 1044480
    %v366 = vsel %vm365, %v364, %v349
    %vm367 = vcmask 1045504
    %v368 = vsel %vm367, %v366, %v352
    %vm369 = vcmask 1046528
    %v370 = vsel %vm369, %v368, %v355
    %371 = vst [vmem:[#allocation2] sm:$0xff] %v370
    %v372 = vld [vmem:[#allocation2] sm:$0xff]
    %373 = vadd.xlane.f32.xlu0 %v372
    %v374 = vpop.xlane.xlu0 %373
    %vm375 = vcmask 7168
    %376 = vst.msk [vmem:[%s14] sm:$0xff] %vm375, %v374
    // Predicated region
    $region46: #{tpu_custom_call.1} parent=1 // pred_check
      _
    $region47: #{tpu_custom_call.1} parent=1 // pred_check_branch
      %378 = sbr.rel (0) target = $region49
    $region48: #{tpu_custom_call.1} parent=1 // pred_region
      _
    $region49: #{tpu_custom_call.1} parent=1 // pred_fallthru
      _
    // Predicated region
    $region50: #{tpu_custom_call.1} parent=1 // pred_check
      _
    $region51: #{tpu_custom_call.1} parent=1 // pred_check_branch
      %380 = sbr.rel (0) target = $region53
    $region52: #{tpu_custom_call.1} parent=1 // pred_region
      _
    $region53: #{tpu_custom_call.1} parent=1 // pred_fallthru
      _
    %381 = vsyncpa [#allocation12], 1
    %382 = vsyncpa [#allocation14], 1
    %383 = vsyncpa [#allocation17], 1

// kernel: tpu_custom_call.1
$region0: #{tpu_custom_call.1}
  #allocation0 [shape = 'u32[]', space=smem, size = 0x4, offset = 0x4, fixed_abs, tag = 'smem constant byte address 0x4 - core index']
  #allocation1 [shape = 'u32[144,128]{1,0:T(1,128)}', space=vmem, size = 0x12000, scoped, tag = 'internal scratch']
  #allocation2 [shape = 'f32[2,7,1,128]{3,2,1,0:T(1,128)}', space=vmem, size = 0x1c00, scoped, tag = 'scratch operand']
  #allocation3 [shape = 's32[14]{0}', space=sflag, size = 0x38, scoped, tag = 'scratch operand']
  #allocation4 [shape = 'f32[8,128]{1,0:T(8,128)}', space=vmem, size = 0x1000, scoped, tag = 'scratch operand']
  #allocation5 [shape = 's32[1]{0}', space=sflag, size = 0x4, scoped, tag = 'scoped memory for tpu_custom_call.1']
  #allocation6 [shape = 'u8[512]{0}', space=smem, size = 0x200, scoped, tag = 'prefetched SMEM operand 0']
  #allocation7 [shape = 'u8[512]{0}', space=smem, size = 0x200, scoped, tag = 'prefetched SMEM operand 1']
  #allocation8 [shape = 'u8[512]{0}', space=smem, size = 0x200, scoped, tag = 'prefetched SMEM operand 2']
  #allocation9 [shape = 'u8[512]{0}', space=smem, size = 0x200, scoped, tag = 'prefetched SMEM operand 3']
  #allocation10 [shape = 'u8[512]{0}', space=smem, size = 0x200, scoped, tag = 'prefetched SMEM operand 4']
  #allocation11 [shape = 'u8[512]{0}', space=smem, size = 0x200, scoped, tag = 'prefetched SMEM operand 5']
  #allocation12 [shape = 'u8[512]{0}', space=smem, size = 0x200, scoped, tag = 'prefetched SMEM operand 6']
  #allocation13 [shape = 's32[]', space=sflag, size = 0x4, offset = 0, fixed_abs, tag = 'sflag constant byte address 0x0 - dummy sync flag']
  #allocation14 [shape = 's32[]', space=sflag, size = 0x4, offset = 0, fixed_abs, tag = 'sflag constant byte address 0x0 - dummy sync flag']
  #allocation15 [shape = 'u32[]', space=smem, size = 0x4, offset = 0x44, fixed_abs, tag = 'smem constant byte address 0x44 - assertion arg 0']
  #allocation16 [shape = 'u32[]', space=smem, size = 0x4, offset = 0x48, fixed_abs, tag = 'smem constant byte address 0x48 - assertion arg 1']
  #allocation17 [shape = 's32[]', space=sflag, size = 0x4, offset = 0, fixed_abs, tag = 'sflag constant byte address 0x0 - dummy sync flag']
  #allocation18 [shape = 's32[]', space=sflag, size = 0x4, offset = 0, fixed_abs, tag = 'sflag constant byte address 0x0 - dummy sync flag']
  #allocation19 [shape = 's32[]', space=sflag, size = 0x4, offset = 0, fixed_abs, tag = 'sflag constant byte address 0x0 - dummy sync flag']
  #allocation20 [shape = 's32[]', space=sflag, size = 0x4, offset = 0, fixed_abs, tag = 'sflag constant byte address 0x0 - dummy sync flag']
  #allocation21 [shape = 's32[]', space=sflag, size = 0x4, offset = 0, fixed_abs, tag = 'sflag constant byte address 0x0 - dummy sync flag']
  #allocation22 [shape = 's32[]', space=sflag, size = 0x4, offset = 0, fixed_abs, tag = 'sflag constant byte address 0x0 - dummy sync flag']
  #allocation23 [shape = 's32[]', space=sflag, size = 0x4, offset = 0, fixed_abs, tag = 'sflag constant byte address 0x0 - dummy sync flag']
  #allocation24 [shape = 's32[]', space=sflag, size = 0x4, offset = 0, fixed_abs, tag = 'sflag constant byte address 0x0 - dummy sync flag']
  #allocation25 [shape = 's32[]', space=sflag, size = 0x4, offset = 0, fixed_abs, tag = 'sflag constant byte address 0x0 - dummy sync flag']
  #allocation26 [shape = 's32[]', space=sflag, size = 0x4, offset = 0, fixed_abs, tag = 'sflag constant byte address 0x0 - dummy sync flag']
  #allocation27 [shape = 's32[]', space=sflag, size = 0x4, offset = 0, fixed_abs, tag = 'sflag constant byte address 0x0 - dummy sync flag']
  #allocation28 [shape = 's32[]', space=sflag, size = 0x4, offset = 0, fixed_abs, tag = 'sflag constant byte address 0x0 - dummy sync flag']
  #allocation29 [shape = 's32[]', space=sflag, size = 0x4, offset = 0, fixed_abs, tag = 'sflag constant byte address 0x0 - dummy sync flag']
  #allocation30 [shape = 's32[]', space=sflag, size = 0x4, offset = 0, fixed_abs, tag = 'sflag constant byte address 0x0 - dummy sync flag']
  #allocation31 [shape = 's32[]', space=sflag, size = 0x4, offset = 0, fixed_abs, tag = 'sflag constant byte address 0x0 - dummy sync flag']
  #allocation32 [shape = 's32[]', space=sflag, size = 0x4, offset = 0, fixed_abs, tag = 'sflag constant byte address 0x0 - dummy sync flag']
  #allocation33 [shape = 's32[]', space=sflag, size = 0x4, offset = 0, fixed_abs, tag = 'sflag constant byte address 0x0 - dummy sync flag']
  #allocation34 [shape = 's32[]', space=sflag, size = 0x4, offset = 0, fixed_abs, tag = 'sflag constant byte address 0x0 - dummy sync flag']
  #allocation35 [shape = 's32[]', space=sflag, size = 0x4, offset = 0, fixed_abs, tag = 'sflag constant byte address 0x0 - dummy sync flag']
  #allocation36 [shape = 's32[]', space=sflag, size = 0x4, offset = 0, fixed_abs, tag = 'sflag constant byte address 0x0 - dummy sync flag']
  #allocation37 [shape = 's32[]', space=sflag, size = 0x4, offset = 0, fixed_abs, tag = 'sflag constant byte address 0x0 - dummy sync flag']
  #allocation38 [shape = 's32[]', space=sflag, size = 0x4, offset = 0, fixed_abs, tag = 'sflag constant byte address 0x0 - dummy sync flag']
  #allocation39 [shape = 's32[]', space=sflag, size = 0x4, offset = 0, fixed_abs, tag = 'sflag constant byte address 0x0 - dummy sync flag']
  #allocation40 [shape = 's32[]', space=sflag, size = 0x4, offset = 0, fixed_abs, tag = 'sflag constant byte address 0x0 - dummy sync flag']
  #allocation41 [shape = 's32[]', space=sflag, size = 0x4, offset = 0, fixed_abs, tag = 'sflag constant byte address 0x0 - dummy sync flag']
  #allocation42 [shape = 's32[]', space=sflag, size = 0x4, offset = 0, fixed_abs, tag = 'sflag constant byte address 0x0 - dummy sync flag']
  #allocation43 [shape = 's32[]', space=sflag, size = 0x4, offset = 0, fixed_abs, tag = 'sflag constant byte address 0x0 - dummy sync flag']
  #allocation44 [shape = 's32[]', space=sflag, size = 0x4, offset = 0, fixed_abs, tag = 'sflag constant byte address 0x0 - dummy sync flag']
  #allocation45 [shape = 's32[]', space=sflag, size = 0x4, offset = 0, fixed_abs, tag = 'sflag constant byte address 0x0 - dummy sync flag']
  #allocation46 [shape = 's32[]', space=sflag, size = 0x4, offset = 0, fixed_abs, tag = 'sflag constant byte address 0x0 - dummy sync flag']
  #allocation47 [shape = 's32[]', space=sflag, size = 0x4, offset = 0, fixed_abs, tag = 'sflag constant byte address 0x0 - dummy sync flag']
  %s0 = inlined_call_operand.hbm [shape: s32[8], index: 0, kind: input, shape index: {}]
  %s1 = inlined_call_operand.vmem [shape: s32[8], index: 1, kind: input, shape index: {}]
  %s2 = inlined_call_operand.hbm [shape: s32[8], index: 2, kind: input, shape index: {}]
  %s3 = inlined_call_operand.hbm [shape: s32[8], index: 3, kind: input, shape index: {}]
  %s4 = inlined_call_operand.hbm [shape: s32[8], index: 4, kind: input, shape index: {}]
  %s5 = inlined_call_operand.hbm [shape: s32[8], index: 5, kind: input, shape index: {}]
  %s6 = inlined_call_operand.hbm [shape: s32[8], index: 6, kind: input, shape index: {}]
  %s7 = inlined_call_operand.hbm [shape: f32[5,128], index: 7, kind: input, shape index: {}]
  %s8 = inlined_call_operand.vmem [shape: f32[10,128], index: 8, kind: input, shape index: {}]
  %s9 = inlined_call_operand.vmem [shape: f32[10,128], index: 9, kind: input, shape index: {}]
  %s10 = inlined_call_operand.hbm [shape: f32[10,128], index: 10, kind: input, shape index: {}]
  %s11 = inlined_call_operand.hbm [shape: f32[10,128], index: 11, kind: input, shape index: {}]
  %s12 = inlined_call_operand.hbm [shape: f32[10,128], index: 12, kind: input, shape index: {}]
  %s13 = inlined_call_operand.vmem [shape: f32[10,128], index: 13, kind: input, shape index: {}]
  %s14 = inlined_call_operand.vmem [shape: f32[8,1], index: 14, kind: output, shape index: {}]
  %s15 = sld [smem:[#allocation0]]
  $region339: #{tpu_custom_call.1} parent=0
    _
  %s17 = ssub.s32 1, %s15
  %s18 = scalar_select 0, %s17, %s15
  %20 = dma.hbm_to_smem %s0, 16, [#allocation6], [#allocation5]
  %s21 = sshll.u32 %s1, 4
  %s22 = int_to_ptr.vmem [resolvable:$true] %s21
  %24 = dma.vmem_to_smem %s22, 16, [#allocation7], [#allocation5]
  %26 = dma.hbm_to_smem %s2, 16, [#allocation8], [#allocation5]
  %28 = dma.hbm_to_smem %s3, 16, [#allocation9], [#allocation5]
  %30 = dma.hbm_to_smem %s4, 16, [#allocation10], [#allocation5]
  %32 = dma.hbm_to_smem %s5, 16, [#allocation11], [#allocation5]
  %34 = dma.hbm_to_smem %s6, 16, [#allocation12], [#allocation5]
  %35 = dma.done [#allocation5], 112
  %36 = sfence
  %s37 = smul.u32 0, 8
  %s38 = sld [smem:[#allocation6 + %s37]]
  %s39 = smul.addr %s38, 16
  %s40 = scalar_lea.hbm %s7, %s39
  // Predicated region
  $region2: #{tpu_custom_call.1} parent=0 // pred_check
    _
  $region3: #{tpu_custom_call.1} parent=0 // pred_check_branch
    %42 = sbr.rel target = $region5
  $region4: #{tpu_custom_call.1} parent=0 // pred_region
    %43 = sst [smem:[#allocation15]] [#allocation14]
    %44 = sst [smem:[#allocation16]] [#allocation13]
  $region5: #{tpu_custom_call.1} parent=0 // pred_fallthru
    _
  %46 = shalt.err (0)
  %s48 = sshll.u32 [#allocation2], 4
  %s49 = int_to_ptr.vmem [resolvable:$true] %s48
  %51 = dma.hbm_to_vmem [thread:$0]  %s40, 16, %s49, [#allocation3]
  %s52 = sld [smem:[#allocation7 + %s37]]
  %s53 = scalar_lea.vmem %s8, %s52
  %s54 = scalar_lea.vmem [#allocation2], 1
  %s55 = scalar_lea.sflag [#allocation3], 1
  %p57 = scmp.lt.u32.totalorder 1, 8
  %p58 = pneg %p57
  // Predicated region
  $region6: #{tpu_custom_call.1} parent=0 // pred_check
    _
  $region7: #{tpu_custom_call.1} parent=0 // pred_check_branch
    %60 = sbr.rel (%p57) target = $region9
  $region8: #{tpu_custom_call.1} parent=0 // pred_region
    %s75 = sand.u32 1, 7
    %p76 = scmp.eq.s32.totalorder %s75, 0
    %p77 = pneg %p76
    // Predicated region
    $region21: #{tpu_custom_call.1} parent=8 // pred_check
      _
    $region22: #{tpu_custom_call.1} parent=8 // pred_check_branch
      %79 = sbr.rel (%p76) target = $region24
    $region23: #{tpu_custom_call.1} parent=8 // pred_region
      %s80 = sand.u32 1, 7
      %s81 = ssub.s32 1, %s80
      %s82 = scalar_lea.vmem %s53, %s81
      %s83 = ssub.s32 1, %s80
      %s84 = scalar_lea.vmem %s54, %s83 [#allocation2]
      %s85 = sshllo.u32 0, %s80
      loop: start=0, step=1, limit=1
      $region25: #{tpu_custom_call.1} parent=23 // loop_pre_header
        _
      $region26: #{tpu_custom_call.1} parent=23 // loop_header
        %s87 = sphi 0, %s91
        %p88 = scmp.ge.s32.totalorder %s87, 1
        %s92 = sphi %s82, %s82
        %s93 = sphi %s84, %s84
      $region27: #{tpu_custom_call.1} parent=23 // loop_header_branch
        %90 = sbr.rel (%p88) target = $region31
      $region28: #{tpu_custom_call.1} parent=23 // loop_body
        %v94 = vld [vmem:[%s92] sm:%s85]
        %95 = vst [vmem:[%s93] sm:%s85] %v94
      $region29: #{tpu_custom_call.1} parent=23 // loop_footer
        %s91 = sadd.s32 1, %s87
      $region30: #{tpu_custom_call.1} parent=23 // loop_footer_branch
        %86 = sbr.rel target = $region26
      $region31: #{tpu_custom_call.1} parent=23 // loop_exit
        _
    $region24: #{tpu_custom_call.1} parent=8 // pred_fallthru
      _
  $region9: #{tpu_custom_call.1} parent=0 // pred_fallthru
    _
  // Predicated region
  $region10: #{tpu_custom_call.1} parent=0 // pred_check
    %p61 = pneg %p57
  $region11: #{tpu_custom_call.1} parent=0 // pred_check_branch
    %63 = sbr.rel (%p61) target = $region13
  $region12: #{tpu_custom_call.1} parent=0 // pred_region
    %s64 = sshllo.u32 0, 1
    loop: start=0, step=1, limit=1
    $region14: #{tpu_custom_call.1} parent=12 // loop_pre_header
      _
    $region15: #{tpu_custom_call.1} parent=12 // loop_header
      %s66 = sphi 0, %s70
      %p67 = scmp.ge.s32.totalorder %s66, 1
      %s71 = sphi %s53, %s53
      %s72 = sphi %s54, %s54
    $region16: #{tpu_custom_call.1} parent=12 // loop_header_branch
      %69 = sbr.rel (%p67) target = $region20
    $region17: #{tpu_custom_call.1} parent=12 // loop_body
      %v73 = vld [vmem:[%s71] sm:%s64]
      %74 = vst [vmem:[%s72] sm:%s64] %v73
    $region18: #{tpu_custom_call.1} parent=12 // loop_footer
      %s70 = sadd.s32 1, %s66
    $region19: #{tpu_custom_call.1} parent=12 // loop_footer_branch
      %65 = sbr.rel target = $region15
    $region20: #{tpu_custom_call.1} parent=12 // loop_exit
      _
  $region13: #{tpu_custom_call.1} parent=0 // pred_fallthru
    _
  // Predicated region
  $region32: #{tpu_custom_call.1} parent=0 // pred_check
    _
  $region33: #{tpu_custom_call.1} parent=0 // pred_check_branch
    %98 = sbr.rel (0) target = $region35
  $region34: #{tpu_custom_call.1} parent=0 // pred_region
    %99 = vsyncadd %s55, 16
  $region35: #{tpu_custom_call.1} parent=0 // pred_fallthru
    _
  %s100 = sld [smem:[#allocation8 + %s37]]
  %s101 = scalar_lea.vmem %s9, %s100
  %s102 = scalar_lea.vmem [#allocation2], 2
  %s103 = scalar_lea.sflag [#allocation3], 2
  %p105 = scmp.lt.u32.totalorder 1, 8
  %p106 = pneg %p105
  // Predicated region
  $region36: #{tpu_custom_call.1} parent=0 // pred_check
    _
  $region37: #{tpu_custom_call.1} parent=0 // pred_check_branch
    %108 = sbr.rel (%p105) target = $region39
  $region38: #{tpu_custom_call.1} parent=0 // pred_region
    %s123 = sand.u32 1, 7
    %p124 = scmp.eq.s32.totalorder %s123, 0
    %p125 = pneg %p124
    // Predicated region
    $region51: #{tpu_custom_call.1} parent=38 // pred_check
      _
    $region52: #{tpu_custom_call.1} parent=38 // pred_check_branch
      %127 = sbr.rel (%p124) target = $region54
    $region53: #{tpu_custom_call.1} parent=38 // pred_region
      %s128 = sand.u32 1, 7
      %s129 = ssub.s32 1, %s128
      %s130 = scalar_lea.vmem %s101, %s129
      %s131 = ssub.s32 1, %s128
      %s132 = scalar_lea.vmem %s102, %s131 [#allocation2]
      %s133 = sshllo.u32 0, %s128
      loop: start=0, step=1, limit=1
      $region55: #{tpu_custom_call.1} parent=53 // loop_pre_header
        _
      $region56: #{tpu_custom_call.1} parent=53 // loop_header
        %s135 = sphi 0, %s139
        %p136 = scmp.ge.s32.totalorder %s135, 1
        %s140 = sphi %s130, %s130
        %s141 = sphi %s132, %s132
      $region57: #{tpu_custom_call.1} parent=53 // loop_header_branch
        %138 = sbr.rel (%p136) target = $region61
      $region58: #{tpu_custom_call.1} parent=53 // loop_body
        %v142 = vld [vmem:[%s140] sm:%s133]
        %143 = vst [vmem:[%s141] sm:%s133] %v142
      $region59: #{tpu_custom_call.1} parent=53 // loop_footer
        %s139 = sadd.s32 1, %s135
      $region60: #{tpu_custom_call.1} parent=53 // loop_footer_branch
        %134 = sbr.rel target = $region56
      $region61: #{tpu_custom_call.1} parent=53 // loop_exit
        _
    $region54: #{tpu_custom_call.1} parent=38 // pred_fallthru
      _
  $region39: #{tpu_custom_call.1} parent=0 // pred_fallthru
    _
  // Predicated region
  $region40: #{tpu_custom_call.1} parent=0 // pred_check
    %p109 = pneg %p105
  $region41: #{tpu_custom_call.1} parent=0 // pred_check_branch
    %111 = sbr.rel (%p109) target = $region43
  $region42: #{tpu_custom_call.1} parent=0 // pred_region
    %s112 = sshllo.u32 0, 1
    loop: start=0, step=1, limit=1
    $region44: #{tpu_custom_call.1} parent=42 // loop_pre_header
      _
    $region45: #{tpu_custom_call.1} parent=42 // loop_header
      %s114 = sphi 0, %s118
      %p115 = scmp.ge.s32.totalorder %s114, 1
      %s119 = sphi %s101, %s101
      %s120 = sphi %s102, %s102
    $region46: #{tpu_custom_call.1} parent=42 // loop_header_branch
      %117 = sbr.rel (%p115) target = $region50
    $region47: #{tpu_custom_call.1} parent=42 // loop_body
      %v121 = vld [vmem:[%s119] sm:%s112]
      %122 = vst [vmem:[%s120] sm:%s112] %v121
    $region48: #{tpu_custom_call.1} parent=42 // loop_footer
      %s118 = sadd.s32 1, %s114
    $region49: #{tpu_custom_call.1} parent=42 // loop_footer_branch
      %113 = sbr.rel target = $region45
    $region50: #{tpu_custom_call.1} parent=42 // loop_exit
      _
  $region43: #{tpu_custom_call.1} parent=0 // pred_fallthru
    _
  // Predicated region
  $region62: #{tpu_custom_call.1} parent=0 // pred_check
    _
  $region63: #{tpu_custom_call.1} parent=0 // pred_check_branch
    %146 = sbr.rel (0) target = $region65
  $region64: #{tpu_custom_call.1} parent=0 // pred_region
    %147 = vsyncadd %s103, 16
  $region65: #{tpu_custom_call.1} parent=0 // pred_fallthru
    _
  %s148 = sld [smem:[#allocation9 + %s37]]
  %s149 = smul.addr %s148, 16
  %s150 = scalar_lea.hbm %s10, %s149
  %s151 = scalar_lea.vmem [#allocation2], 3
  %s152 = scalar_lea.sflag [#allocation3], 3
  // Predicated region
  $region66: #{tpu_custom_call.1} parent=0 // pred_check
    _
  $region67: #{tpu_custom_call.1} parent=0 // pred_check_branch
    %154 = sbr.rel target = $region69
  $region68: #{tpu_custom_call.1} parent=0 // pred_region
    %155 = sst [smem:[#allocation15]] [#allocation20]
    %156 = sst [smem:[#allocation16]] [#allocation19]
  $region69: #{tpu_custom_call.1} parent=0 // pred_fallthru
    _
  %158 = shalt.err (0)
  %s160 = sshll.u32 %s151, 4
  %s161 = int_to_ptr.vmem [resolvable:$true] %s160
  %163 = dma.hbm_to_vmem [thread:$0]  %s150, 16, %s161, %s152
  %s164 = sld [smem:[#allocation10 + %s37]]
  %s165 = smul.addr %s164, 16
  %s166 = scalar_lea.hbm %s11, %s165
  %s167 = scalar_lea.vmem [#allocation2], 4
  %s168 = scalar_lea.sflag [#allocation3], 4
  // Predicated region
  $region70: #{tpu_custom_call.1} parent=0 // pred_check
    _
  $region71: #{tpu_custom_call.1} parent=0 // pred_check_branch
    %170 = sbr.rel target = $region73
  $region72: #{tpu_custom_call.1} parent=0 // pred_region
    %171 = sst [smem:[#allocation15]] [#allocation22]
    %172 = sst [smem:[#allocation16]] [#allocation21]
  $region73: #{tpu_custom_call.1} parent=0 // pred_fallthru
    _
  %174 = shalt.err (0)
  %s176 = sshll.u32 %s167, 4
  %s177 = int_to_ptr.vmem [resolvable:$true] %s176
  %179 = dma.hbm_to_vmem [thread:$0]  %s166, 16, %s177, %s168
  %s180 = sld [smem:[#allocation11 + %s37]]
  %s181 = smul.addr %s180, 16
  %s182 = scalar_lea.hbm %s12, %s181
  %s183 = scalar_lea.vmem [#allocation2], 5
  %s184 = scalar_lea.sflag [#allocation3], 5
  // Predicated region
  $region74: #{tpu_custom_call.1} parent=0 // pred_check
    _
  $region75: #{tpu_custom_call.1} parent=0 // pred_check_branch
    %186 = sbr.rel target = $region77
  $region76: #{tpu_custom_call.1} parent=0 // pred_region
    %187 = sst [smem:[#allocation15]] [#allocation24]
    %188 = sst [smem:[#allocation16]] [#allocation23]
  $region77: #{tpu_custom_call.1} parent=0 // pred_fallthru
    _
  %190 = shalt.err (0)
  %s192 = sshll.u32 %s183, 4
  %s193 = int_to_ptr.vmem [resolvable:$true] %s192
  %195 = dma.hbm_to_vmem [thread:$0]  %s182, 16, %s193, %s184
  %s196 = sld [smem:[#allocation12 + %s37]]
  %s197 = scalar_lea.vmem %s13, %s196
  %s198 = scalar_lea.vmem [#allocation2], 6
  %s199 = scalar_lea.sflag [#allocation3], 6
  %p201 = scmp.lt.u32.totalorder 1, 8
  %p202 = pneg %p201
  // Predicated region
  $region78: #{tpu_custom_call.1} parent=0 // pred_check
    _
  $region79: #{tpu_custom_call.1} parent=0 // pred_check_branch
    %204 = sbr.rel (%p201) target = $region81
  $region80: #{tpu_custom_call.1} parent=0 // pred_region
    %s219 = sand.u32 1, 7
    %p220 = scmp.eq.s32.totalorder %s219, 0
    %p221 = pneg %p220
    // Predicated region
    $region93: #{tpu_custom_call.1} parent=80 // pred_check
      _
    $region94: #{tpu_custom_call.1} parent=80 // pred_check_branch
      %223 = sbr.rel (%p220) target = $region96
    $region95: #{tpu_custom_call.1} parent=80 // pred_region
      %s224 = sand.u32 1, 7
      %s225 = ssub.s32 1, %s224
      %s226 = scalar_lea.vmem %s197, %s225
      %s227 = ssub.s32 1, %s224
      %s228 = scalar_lea.vmem %s198, %s227 [#allocation2]
      %s229 = sshllo.u32 0, %s224
      loop: start=0, step=1, limit=1
      $region97: #{tpu_custom_call.1} parent=95 // loop_pre_header
        _
      $region98: #{tpu_custom_call.1} parent=95 // loop_header
        %s231 = sphi 0, %s235
        %p232 = scmp.ge.s32.totalorder %s231, 1
        %s236 = sphi %s226, %s226
        %s237 = sphi %s228, %s228
      $region99: #{tpu_custom_call.1} parent=95 // loop_header_branch
        %234 = sbr.rel (%p232) target = $region103
      $region100: #{tpu_custom_call.1} parent=95 // loop_body
        %v238 = vld [vmem:[%s236] sm:%s229]
        %239 = vst [vmem:[%s237] sm:%s229] %v238
      $region101: #{tpu_custom_call.1} parent=95 // loop_footer
        %s235 = sadd.s32 1, %s231
      $region102: #{tpu_custom_call.1} parent=95 // loop_footer_branch
        %230 = sbr.rel target = $region98
      $region103: #{tpu_custom_call.1} parent=95 // loop_exit
        _
    $region96: #{tpu_custom_call.1} parent=80 // pred_fallthru
      _
  $region81: #{tpu_custom_call.1} parent=0 // pred_fallthru
    _
  // Predicated region
  $region82: #{tpu_custom_call.1} parent=0 // pred_check
    %p205 = pneg %p201
  $region83: #{tpu_custom_call.1} parent=0 // pred_check_branch
    %207 = sbr.rel (%p205) target = $region85
  $region84: #{tpu_custom_call.1} parent=0 // pred_region
    %s208 = sshllo.u32 0, 1
    loop: start=0, step=1, limit=1
    $region86: #{tpu_custom_call.1} parent=84 // loop_pre_header
      _
    $region87: #{tpu_custom_call.1} parent=84 // loop_header
      %s210 = sphi 0, %s214
      %p211 = scmp.ge.s32.totalorder %s210, 1
      %s215 = sphi %s197, %s197
      %s216 = sphi %s198, %s198
    $region88: #{tpu_custom_call.1} parent=84 // loop_header_branch
      %213 = sbr.rel (%p211) target = $region92
    $region89: #{tpu_custom_call.1} parent=84 // loop_body
      %v217 = vld [vmem:[%s215] sm:%s208]
      %218 = vst [vmem:[%s216] sm:%s208] %v217
    $region90: #{tpu_custom_call.1} parent=84 // loop_footer
      %s214 = sadd.s32 1, %s210
    $region91: #{tpu_custom_call.1} parent=84 // loop_footer_branch
      %209 = sbr.rel target = $region87
    $region92: #{tpu_custom_call.1} parent=84 // loop_exit
      _
  $region85: #{tpu_custom_call.1} parent=0 // pred_fallthru
    _
  // Predicated region
  $region104: #{tpu_custom_call.1} parent=0 // pred_check
    _
  $region105: #{tpu_custom_call.1} parent=0 // pred_check_branch
    %242 = sbr.rel (0) target = $region107
  $region106: #{tpu_custom_call.1} parent=0 // pred_region
    %243 = vsyncadd %s199, 16
  $region107: #{tpu_custom_call.1} parent=0 // pred_fallthru
    _
  loop: start=0, step=1, limit=4
  $region108: #{tpu_custom_call.1} parent=0 // loop_pre_header
    _
  $region109: #{tpu_custom_call.1} parent=0 // loop_header
    %s245 = sphi 0, %s249
    %p246 = scmp.ge.s32.totalorder %s245, 4
  $region110: #{tpu_custom_call.1} parent=0 // loop_header_branch
    %248 = sbr.rel (%p246) target = $region114
  $region111: #{tpu_custom_call.1} parent=0 // loop_body
    %s250 = smul.u32 %s245, 2
    %s251 = smul.u32 1, 1
    %s252 = sshll.u32 %s251, 4
    %253 = dma.done [#allocation3], %s252
    %s254 = sshll.u32 %s251, 4
    %255 = dma.done %s55, %s254
    %s256 = sshll.u32 %s251, 4
    %257 = dma.done %s103, %s256
    %s258 = sshll.u32 %s251, 4
    %259 = dma.done %s152, %s258
    %s260 = sshll.u32 %s251, 4
    %261 = dma.done %s168, %s260
    %s262 = sshll.u32 %s251, 4
    %263 = dma.done %s184, %s262
    %s264 = sshll.u32 %s251, 4
    %265 = dma.done %s199, %s264
    %s266 = sadd.s32 %s250, 1
    %s267 = sadd.s32 %s37, %s266
    %s268 = sld [smem:[#allocation6 + %s267]]
    %s269 = smul.addr %s268, 16
    %s270 = scalar_lea.hbm %s7, %s269
    %s271 = scalar_lea.vmem [#allocation2], 7
    %s272 = scalar_lea.sflag [#allocation3], 7
    // Predicated region
    $region115: #{tpu_custom_call.1} parent=111 // pred_check
      _
    $region116: #{tpu_custom_call.1} parent=111 // pred_check_branch
      %274 = sbr.rel target = $region118
    $region117: #{tpu_custom_call.1} parent=111 // pred_region
      %275 = sst [smem:[#allocation15]] [#allocation27]
      %276 = sst [smem:[#allocation16]] [#allocation26]
    $region118: #{tpu_custom_call.1} parent=111 // pred_fallthru
      _
    %278 = shalt.err (0)
    %s280 = sshll.u32 %s271, 4
    %s281 = int_to_ptr.vmem [resolvable:$true] %s280
    %283 = dma.hbm_to_vmem [thread:$0]  %s270, 16, %s281, %s272
    %s284 = sld [smem:[#allocation7 + %s267]]
    %s285 = scalar_lea.vmem %s8, %s284
    %s286 = scalar_lea.vmem [#allocation2], 8
    %s287 = scalar_lea.sflag [#allocation3], 8
    %p289 = scmp.lt.u32.totalorder 1, 8
    %p290 = pneg %p289
    // Predicated region
    $region119: #{tpu_custom_call.1} parent=111 // pred_check
      _
    $region120: #{tpu_custom_call.1} parent=111 // pred_check_branch
      %292 = sbr.rel (%p289) target = $region122
    $region121: #{tpu_custom_call.1} parent=111 // pred_region
      %s307 = sand.u32 1, 7
      %p308 = scmp.eq.s32.totalorder %s307, 0
      %p309 = pneg %p308
      // Predicated region
      $region134: #{tpu_custom_call.1} parent=121 // pred_check
        _
      $region135: #{tpu_custom_call.1} parent=121 // pred_check_branch
        %311 = sbr.rel (%p308) target = $region137
      $region136: #{tpu_custom_call.1} parent=121 // pred_region
        %s312 = sand.u32 1, 7
        %s313 = ssub.s32 1, %s312
        %s314 = scalar_lea.vmem %s285, %s313
        %s315 = ssub.s32 1, %s312
        %s316 = scalar_lea.vmem %s286, %s315 [#allocation2]
        %s317 = sshllo.u32 0, %s312
        loop: start=0, step=1, limit=1
        $region138: #{tpu_custom_call.1} parent=136 // loop_pre_header
          _
        $region139: #{tpu_custom_call.1} parent=136 // loop_header
          %s319 = sphi 0, %s323
          %p320 = scmp.ge.s32.totalorder %s319, 1
          %s324 = sphi %s314, %s314
          %s325 = sphi %s316, %s316
        $region140: #{tpu_custom_call.1} parent=136 // loop_header_branch
          %322 = sbr.rel (%p320) target = $region144
        $region141: #{tpu_custom_call.1} parent=136 // loop_body
          %v326 = vld [vmem:[%s324] sm:%s317]
          %327 = vst [vmem:[%s325] sm:%s317] %v326
        $region142: #{tpu_custom_call.1} parent=136 // loop_footer
          %s323 = sadd.s32 1, %s319
        $region143: #{tpu_custom_call.1} parent=136 // loop_footer_branch
          %318 = sbr.rel target = $region139
        $region144: #{tpu_custom_call.1} parent=136 // loop_exit
          _
      $region137: #{tpu_custom_call.1} parent=121 // pred_fallthru
        _
    $region122: #{tpu_custom_call.1} parent=111 // pred_fallthru
      _
    // Predicated region
    $region123: #{tpu_custom_call.1} parent=111 // pred_check
      %p293 = pneg %p289
    $region124: #{tpu_custom_call.1} parent=111 // pred_check_branch
      %295 = sbr.rel (%p293) target = $region126
    $region125: #{tpu_custom_call.1} parent=111 // pred_region
      %s296 = sshllo.u32 0, 1
      loop: start=0, step=1, limit=1
      $region127: #{tpu_custom_call.1} parent=125 // loop_pre_header
        _
      $region128: #{tpu_custom_call.1} parent=125 // loop_header
        %s298 = sphi 0, %s302
        %p299 = scmp.ge.s32.totalorder %s298, 1
        %s303 = sphi %s285, %s285
        %s304 = sphi %s286, %s286
      $region129: #{tpu_custom_call.1} parent=125 // loop_header_branch
        %301 = sbr.rel (%p299) target = $region133
      $region130: #{tpu_custom_call.1} parent=125 // loop_body
        %v305 = vld [vmem:[%s303] sm:%s296]
        %306 = vst [vmem:[%s304] sm:%s296] %v305
      $region131: #{tpu_custom_call.1} parent=125 // loop_footer
        %s302 = sadd.s32 1, %s298
      $region132: #{tpu_custom_call.1} parent=125 // loop_footer_branch
        %297 = sbr.rel target = $region128
      $region133: #{tpu_custom_call.1} parent=125 // loop_exit
        _
    $region126: #{tpu_custom_call.1} parent=111 // pred_fallthru
      _
    // Predicated region
    $region145: #{tpu_custom_call.1} parent=111 // pred_check
      _
    $region146: #{tpu_custom_call.1} parent=111 // pred_check_branch
      %330 = sbr.rel (0) target = $region148
    $region147: #{tpu_custom_call.1} parent=111 // pred_region
      %331 = vsyncadd %s287, 16
    $region148: #{tpu_custom_call.1} parent=111 // pred_fallthru
      _
    %s332 = sld [smem:[#allocation8 + %s267]]
    %s333 = scalar_lea.vmem %s9, %s332
    %s334 = scalar_lea.vmem [#allocation2], 9
    %s335 = scalar_lea.sflag [#allocation3], 9
    %p337 = scmp.lt.u32.totalorder 1, 8
    %p338 = pneg %p337
    // Predicated region
    $region149: #{tpu_custom_call.1} parent=111 // pred_check
      _
    $region150: #{tpu_custom_call.1} parent=111 // pred_check_branch
      %340 = sbr.rel (%p337) target = $region152
    $region151: #{tpu_custom_call.1} parent=111 // pred_region
      %s355 = sand.u32 1, 7
      %p356 = scmp.eq.s32.totalorder %s355, 0
      %p357 = pneg %p356
      // Predicated region
      $region164: #{tpu_custom_call.1} parent=151 // pred_check
        _
      $region165: #{tpu_custom_call.1} parent=151 // pred_check_branch
        %359 = sbr.rel (%p356) target = $region167
      $region166: #{tpu_custom_call.1} parent=151 // pred_region
        %s360 = sand.u32 1, 7
        %s361 = ssub.s32 1, %s360
        %s362 = scalar_lea.vmem %s333, %s361
        %s363 = ssub.s32 1, %s360
        %s364 = scalar_lea.vmem %s334, %s363 [#allocation2]
        %s365 = sshllo.u32 0, %s360
        loop: start=0, step=1, limit=1
        $region168: #{tpu_custom_call.1} parent=166 // loop_pre_header
          _
        $region169: #{tpu_custom_call.1} parent=166 // loop_header
          %s367 = sphi 0, %s371
          %p368 = scmp.ge.s32.totalorder %s367, 1
          %s372 = sphi %s362, %s362
          %s373 = sphi %s364, %s364
        $region170: #{tpu_custom_call.1} parent=166 // loop_header_branch
          %370 = sbr.rel (%p368) target = $region174
        $region171: #{tpu_custom_call.1} parent=166 // loop_body
          %v374 = vld [vmem:[%s372] sm:%s365]
          %375 = vst [vmem:[%s373] sm:%s365] %v374
        $region172: #{tpu_custom_call.1} parent=166 // loop_footer
          %s371 = sadd.s32 1, %s367
        $region173: #{tpu_custom_call.1} parent=166 // loop_footer_branch
          %366 = sbr.rel target = $region169
        $region174: #{tpu_custom_call.1} parent=166 // loop_exit
          _
      $region167: #{tpu_custom_call.1} parent=151 // pred_fallthru
        _
    $region152: #{tpu_custom_call.1} parent=111 // pred_fallthru
      _
    // Predicated region
    $region153: #{tpu_custom_call.1} parent=111 // pred_check
      %p341 = pneg %p337
    $region154: #{tpu_custom_call.1} parent=111 // pred_check_branch
      %343 = sbr.rel (%p341) target = $region156
    $region155: #{tpu_custom_call.1} parent=111 // pred_region
      %s344 = sshllo.u32 0, 1
      loop: start=0, step=1, limit=1
      $region157: #{tpu_custom_call.1} parent=155 // loop_pre_header
        _
      $region158: #{tpu_custom_call.1} parent=155 // loop_header
        %s346 = sphi 0, %s350
        %p347 = scmp.ge.s32.totalorder %s346, 1
        %s351 = sphi %s333, %s333
        %s352 = sphi %s334, %s334
      $region159: #{tpu_custom_call.1} parent=155 // loop_header_branch
        %349 = sbr.rel (%p347) target = $region163
      $region160: #{tpu_custom_call.1} parent=155 // loop_body
        %v353 = vld [vmem:[%s351] sm:%s344]
        %354 = vst [vmem:[%s352] sm:%s344] %v353
      $region161: #{tpu_custom_call.1} parent=155 // loop_footer
        %s350 = sadd.s32 1, %s346
      $region162: #{tpu_custom_call.1} parent=155 // loop_footer_branch
        %345 = sbr.rel target = $region158
      $region163: #{tpu_custom_call.1} parent=155 // loop_exit
        _
    $region156: #{tpu_custom_call.1} parent=111 // pred_fallthru
      _
    // Predicated region
    $region175: #{tpu_custom_call.1} parent=111 // pred_check
      _
    $region176: #{tpu_custom_call.1} parent=111 // pred_check_branch
      %378 = sbr.rel (0) target = $region178
    $region177: #{tpu_custom_call.1} parent=111 // pred_region
      %379 = vsyncadd %s335, 16
    $region178: #{tpu_custom_call.1} parent=111 // pred_fallthru
      _
    %s380 = sld [smem:[#allocation9 + %s267]]
    %s381 = smul.addr %s380, 16
    %s382 = scalar_lea.hbm %s10, %s381
    %s383 = scalar_lea.vmem [#allocation2], 10
    %s384 = scalar_lea.sflag [#allocation3], 10
    // Predicated region
    $region179: #{tpu_custom_call.1} parent=111 // pred_check
      _
    $region180: #{tpu_custom_call.1} parent=111 // pred_check_branch
      %386 = sbr.rel target = $region182
    $region181: #{tpu_custom_call.1} parent=111 // pred_region
      %387 = sst [smem:[#allocation15]] [#allocation31]
      %388 = sst [smem:[#allocation16]] [#allocation30]
    $region182: #{tpu_custom_call.1} parent=111 // pred_fallthru
      _
    %390 = shalt.err (0)
    %s392 = sshll.u32 %s383, 4
    %s393 = int_to_ptr.vmem [resolvable:$true] %s392
    %395 = dma.hbm_to_vmem [thread:$0]  %s382, 16, %s393, %s384
    %s396 = sld [smem:[#allocation10 + %s267]]
    %s397 = smul.addr %s396, 16
    %s398 = scalar_lea.hbm %s11, %s397
    %s399 = scalar_lea.vmem [#allocation2], 11
    %s400 = scalar_lea.sflag [#allocation3], 11
    // Predicated region
    $region183: #{tpu_custom_call.1} parent=111 // pred_check
      _
    $region184: #{tpu_custom_call.1} parent=111 // pred_check_branch
      %402 = sbr.rel target = $region186
    $region185: #{tpu_custom_call.1} parent=111 // pred_region
      %403 = sst [smem:[#allocation15]] [#allocation33]
      %404 = sst [smem:[#allocation16]] [#allocation32]
    $region186: #{tpu_custom_call.1} parent=111 // pred_fallthru
      _
    %406 = shalt.err (0)
    %s408 = sshll.u32 %s399, 4
    %s409 = int_to_ptr.vmem [resolvable:$true] %s408
    %411 = dma.hbm_to_vmem [thread:$0]  %s398, 16, %s409, %s400
    %s412 = sld [smem:[#allocation11 + %s267]]
    %s413 = smul.addr %s412, 16
    %s414 = scalar_lea.hbm %s12, %s413
    %s415 = scalar_lea.vmem [#allocation2], 12
    %s416 = scalar_lea.sflag [#allocation3], 12
    // Predicated region
    $region187: #{tpu_custom_call.1} parent=111 // pred_check
      _
    $region188: #{tpu_custom_call.1} parent=111 // pred_check_branch
      %418 = sbr.rel target = $region190
    $region189: #{tpu_custom_call.1} parent=111 // pred_region
      %419 = sst [smem:[#allocation15]] [#allocation35]
      %420 = sst [smem:[#allocation16]] [#allocation34]
    $region190: #{tpu_custom_call.1} parent=111 // pred_fallthru
      _
    %422 = shalt.err (0)
    %s424 = sshll.u32 %s415, 4
    %s425 = int_to_ptr.vmem [resolvable:$true] %s424
    %427 = dma.hbm_to_vmem [thread:$0]  %s414, 16, %s425, %s416
    %s428 = sld [smem:[#allocation12 + %s267]]
    %s429 = scalar_lea.vmem %s13, %s428
    %s430 = scalar_lea.vmem [#allocation2], 13
    %s431 = scalar_lea.sflag [#allocation3], 13
    %p433 = scmp.lt.u32.totalorder 1, 8
    %p434 = pneg %p433
    // Predicated region
    $region191: #{tpu_custom_call.1} parent=111 // pred_check
      _
    $region192: #{tpu_custom_call.1} parent=111 // pred_check_branch
      %436 = sbr.rel (%p433) target = $region194
    $region193: #{tpu_custom_call.1} parent=111 // pred_region
      %s451 = sand.u32 1, 7
      %p452 = scmp.eq.s32.totalorder %s451, 0
      %p453 = pneg %p452
      // Predicated region
      $region206: #{tpu_custom_call.1} parent=193 // pred_check
        _
      $region207: #{tpu_custom_call.1} parent=193 // pred_check_branch
        %455 = sbr.rel (%p452) target = $region209
      $region208: #{tpu_custom_call.1} parent=193 // pred_region
        %s456 = sand.u32 1, 7
        %s457 = ssub.s32 1, %s456
        %s458 = scalar_lea.vmem %s429, %s457
        %s459 = ssub.s32 1, %s456
        %s460 = scalar_lea.vmem %s430, %s459 [#allocation2]
        %s461 = sshllo.u32 0, %s456
        loop: start=0, step=1, limit=1
        $region210: #{tpu_custom_call.1} parent=208 // loop_pre_header
          _
        $region211: #{tpu_custom_call.1} parent=208 // loop_header
          %s463 = sphi 0, %s467
          %p464 = scmp.ge.s32.totalorder %s463, 1
          %s468 = sphi %s458, %s458
          %s469 = sphi %s460, %s460
        $region212: #{tpu_custom_call.1} parent=208 // loop_header_branch
          %466 = sbr.rel (%p464) target = $region216
        $region213: #{tpu_custom_call.1} parent=208 // loop_body
          %v470 = vld [vmem:[%s468] sm:%s461]
          %471 = vst [vmem:[%s469] sm:%s461] %v470
        $region214: #{tpu_custom_call.1} parent=208 // loop_footer
          %s467 = sadd.s32 1, %s463
        $region215: #{tpu_custom_call.1} parent=208 // loop_footer_branch
          %462 = sbr.rel target = $region211
        $region216: #{tpu_custom_call.1} parent=208 // loop_exit
          _
      $region209: #{tpu_custom_call.1} parent=193 // pred_fallthru
        _
    $region194: #{tpu_custom_call.1} parent=111 // pred_fallthru
      _
    // Predicated region
    $region195: #{tpu_custom_call.1} parent=111 // pred_check
      %p437 = pneg %p433
    $region196: #{tpu_custom_call.1} parent=111 // pred_check_branch
      %439 = sbr.rel (%p437) target = $region198
    $region197: #{tpu_custom_call.1} parent=111 // pred_region
      %s440 = sshllo.u32 0, 1
      loop: start=0, step=1, limit=1
      $region199: #{tpu_custom_call.1} parent=197 // loop_pre_header
        _
      $region200: #{tpu_custom_call.1} parent=197 // loop_header
        %s442 = sphi 0, %s446
        %p443 = scmp.ge.s32.totalorder %s442, 1
        %s447 = sphi %s429, %s429
        %s448 = sphi %s430, %s430
      $region201: #{tpu_custom_call.1} parent=197 // loop_header_branch
        %445 = sbr.rel (%p443) target = $region205
      $region202: #{tpu_custom_call.1} parent=197 // loop_body
        %v449 = vld [vmem:[%s447] sm:%s440]
        %450 = vst [vmem:[%s448] sm:%s440] %v449
      $region203: #{tpu_custom_call.1} parent=197 // loop_footer
        %s446 = sadd.s32 1, %s442
      $region204: #{tpu_custom_call.1} parent=197 // loop_footer_branch
        %441 = sbr.rel target = $region200
      $region205: #{tpu_custom_call.1} parent=197 // loop_exit
        _
    $region198: #{tpu_custom_call.1} parent=111 // pred_fallthru
      _
    // Predicated region
    $region217: #{tpu_custom_call.1} parent=111 // pred_check
      _
    $region218: #{tpu_custom_call.1} parent=111 // pred_check_branch
      %474 = sbr.rel (0) target = $region220
    $region219: #{tpu_custom_call.1} parent=111 // pred_region
      %475 = vsyncadd %s431, 16
    $region220: #{tpu_custom_call.1} parent=111 // pred_fallthru
      _
    %v476 = vld [vmem:[#allocation2] sm:$0x1]
    %v477 = vld [vmem:[%s54] sm:$0x1]
    %v478 = vmul.f32 %v476, %v477
    %v479 = vld [vmem:[%s102] sm:$0x1]
    %v480 = vmul.f32 %v478, %v479
    %v481 = vld [vmem:[%s151] sm:$0x1]
    %v482 = vmul.f32 %v480, %v481
    %v483 = vld [vmem:[%s167] sm:$0x1]
    %v484 = vmul.f32 %v482, %v483
    %v485 = vld [vmem:[%s183] sm:$0x1]
    %v486 = vmul.f32 %v484, %v485
    %v487 = vld [vmem:[%s198] sm:$0x1]
    %v488 = vmul.f32 %v486, %v487
    %s489 = scalar_lea.vmem [#allocation4], %s250
    %490 = vst [vmem:[%s489] sm:$0x1] %v488
    %s491 = sshll.u32 %s251, 4
    %492 = dma.done %s272, %s491
    %s493 = sshll.u32 %s251, 4
    %494 = dma.done %s287, %s493
    %s495 = sshll.u32 %s251, 4
    %496 = dma.done %s335, %s495
    %s497 = sshll.u32 %s251, 4
    %498 = dma.done %s384, %s497
    %s499 = sshll.u32 %s251, 4
    %500 = dma.done %s400, %s499
    %s501 = sshll.u32 %s251, 4
    %502 = dma.done %s416, %s501
    %s503 = sshll.u32 %s251, 4
    %504 = dma.done %s431, %s503
    %s505 = sadd.s32 %s250, 2
    %p506 = scmp.lt.s32.totalorder %s505, 8
    // Predicated region
    $region221: #{tpu_custom_call.1} parent=111 // pred_check
      %p507 = pneg %p506
    $region222: #{tpu_custom_call.1} parent=111 // pred_check_branch
      %509 = sbr.rel (%p507) target = $region224
    $region223: #{tpu_custom_call.1} parent=111 // pred_region
      %s510 = sadd.s32 %s37, %s505
      %s511 = sld [smem:[#allocation6 + %s510]]
      %s512 = smul.addr %s511, 16
      %s513 = scalar_lea.hbm %s7, %s512
      // Predicated region
      $region225: #{tpu_custom_call.1} parent=223 // pred_check
        _
      $region226: #{tpu_custom_call.1} parent=223 // pred_check_branch
        %515 = sbr.rel target = $region228
      $region227: #{tpu_custom_call.1} parent=223 // pred_region
        %516 = sst [smem:[#allocation15]] [#allocation38]
        %517 = sst [smem:[#allocation16]] [#allocation37]
      $region228: #{tpu_custom_call.1} parent=223 // pred_fallthru
        _
      %519 = shalt.err (0)
      %s521 = sshll.u32 [#allocation2], 4
      %s522 = int_to_ptr.vmem [resolvable:$true] %s521
      %524 = dma.hbm_to_vmem [thread:$0]  %s513, 16, %s522, [#allocation3]
      %s525 = sld [smem:[#allocation7 + %s510]]
      %s526 = scalar_lea.vmem %s8, %s525
      %p528 = scmp.lt.u32.totalorder 1, 8
      %p529 = pneg %p528
      // Predicated region
      $region229: #{tpu_custom_call.1} parent=223 // pred_check
        _
      $region230: #{tpu_custom_call.1} parent=223 // pred_check_branch
        %531 = sbr.rel (%p528) target = $region232
      $region231: #{tpu_custom_call.1} parent=223 // pred_region
        %s546 = sand.u32 1, 7
        %p547 = scmp.eq.s32.totalorder %s546, 0
        %p548 = pneg %p547
        // Predicated region
        $region244: #{tpu_custom_call.1} parent=231 // pred_check
          _
        $region245: #{tpu_custom_call.1} parent=231 // pred_check_branch
          %550 = sbr.rel (%p547) target = $region247
        $region246: #{tpu_custom_call.1} parent=231 // pred_region
          %s551 = sand.u32 1, 7
          %s552 = ssub.s32 1, %s551
          %s553 = scalar_lea.vmem %s526, %s552
          %s554 = ssub.s32 1, %s551
          %s555 = scalar_lea.vmem %s54, %s554 [#allocation2]
          %s556 = sshllo.u32 0, %s551
          loop: start=0, step=1, limit=1
          $region248: #{tpu_custom_call.1} parent=246 // loop_pre_header
            _
          $region249: #{tpu_custom_call.1} parent=246 // loop_header
            %s558 = sphi 0, %s562
            %p559 = scmp.ge.s32.totalorder %s558, 1
            %s563 = sphi %s553, %s553
            %s564 = sphi %s555, %s555
          $region250: #{tpu_custom_call.1} parent=246 // loop_header_branch
            %561 = sbr.rel (%p559) target = $region254
          $region251: #{tpu_custom_call.1} parent=246 // loop_body
            %v565 = vld [vmem:[%s563] sm:%s556]
            %566 = vst [vmem:[%s564] sm:%s556] %v565
          $region252: #{tpu_custom_call.1} parent=246 // loop_footer
            %s562 = sadd.s32 1, %s558
          $region253: #{tpu_custom_call.1} parent=246 // loop_footer_branch
            %557 = sbr.rel target = $region249
          $region254: #{tpu_custom_call.1} parent=246 // loop_exit
            _
        $region247: #{tpu_custom_call.1} parent=231 // pred_fallthru
          _
      $region232: #{tpu_custom_call.1} parent=223 // pred_fallthru
        _
      // Predicated region
      $region233: #{tpu_custom_call.1} parent=223 // pred_check
        %p532 = pneg %p528
      $region234: #{tpu_custom_call.1} parent=223 // pred_check_branch
        %534 = sbr.rel (%p532) target = $region236
      $region235: #{tpu_custom_call.1} parent=223 // pred_region
        %s535 = sshllo.u32 0, 1
        loop: start=0, step=1, limit=1
        $region237: #{tpu_custom_call.1} parent=235 // loop_pre_header
          _
        $region238: #{tpu_custom_call.1} parent=235 // loop_header
          %s537 = sphi 0, %s541
          %p538 = scmp.ge.s32.totalorder %s537, 1
          %s542 = sphi %s526, %s526
          %s543 = sphi %s54, %s54
        $region239: #{tpu_custom_call.1} parent=235 // loop_header_branch
          %540 = sbr.rel (%p538) target = $region243
        $region240: #{tpu_custom_call.1} parent=235 // loop_body
          %v544 = vld [vmem:[%s542] sm:%s535]
          %545 = vst [vmem:[%s543] sm:%s535] %v544
        $region241: #{tpu_custom_call.1} parent=235 // loop_footer
          %s541 = sadd.s32 1, %s537
        $region242: #{tpu_custom_call.1} parent=235 // loop_footer_branch
          %536 = sbr.rel target = $region238
        $region243: #{tpu_custom_call.1} parent=235 // loop_exit
          _
      $region236: #{tpu_custom_call.1} parent=223 // pred_fallthru
        _
      // Predicated region
      $region255: #{tpu_custom_call.1} parent=223 // pred_check
        _
      $region256: #{tpu_custom_call.1} parent=223 // pred_check_branch
        %569 = sbr.rel (0) target = $region258
      $region257: #{tpu_custom_call.1} parent=223 // pred_region
        %570 = vsyncadd %s55, 16
      $region258: #{tpu_custom_call.1} parent=223 // pred_fallthru
        _
      %s571 = sld [smem:[#allocation8 + %s510]]
      %s572 = scalar_lea.vmem %s9, %s571
      %p574 = scmp.lt.u32.totalorder 1, 8
      %p575 = pneg %p574
      // Predicated region
      $region259: #{tpu_custom_call.1} parent=223 // pred_check
        _
      $region260: #{tpu_custom_call.1} parent=223 // pred_check_branch
        %577 = sbr.rel (%p574) target = $region262
      $region261: #{tpu_custom_call.1} parent=223 // pred_region
        %s592 = sand.u32 1, 7
        %p593 = scmp.eq.s32.totalorder %s592, 0
        %p594 = pneg %p593
        // Predicated region
        $region274: #{tpu_custom_call.1} parent=261 // pred_check
          _
        $region275: #{tpu_custom_call.1} parent=261 // pred_check_branch
          %596 = sbr.rel (%p593) target = $region277
        $region276: #{tpu_custom_call.1} parent=261 // pred_region
          %s597 = sand.u32 1, 7
          %s598 = ssub.s32 1, %s597
          %s599 = scalar_lea.vmem %s572, %s598
          %s600 = ssub.s32 1, %s597
          %s601 = scalar_lea.vmem %s102, %s600 [#allocation2]
          %s602 = sshllo.u32 0, %s597
          loop: start=0, step=1, limit=1
          $region278: #{tpu_custom_call.1} parent=276 // loop_pre_header
            _
          $region279: #{tpu_custom_call.1} parent=276 // loop_header
            %s604 = sphi 0, %s608
            %p605 = scmp.ge.s32.totalorder %s604, 1
            %s609 = sphi %s599, %s599
            %s610 = sphi %s601, %s601
          $region280: #{tpu_custom_call.1} parent=276 // loop_header_branch
            %607 = sbr.rel (%p605) target = $region284
          $region281: #{tpu_custom_call.1} parent=276 // loop_body
            %v611 = vld [vmem:[%s609] sm:%s602]
            %612 = vst [vmem:[%s610] sm:%s602] %v611
          $region282: #{tpu_custom_call.1} parent=276 // loop_footer
            %s608 = sadd.s32 1, %s604
          $region283: #{tpu_custom_call.1} parent=276 // loop_footer_branch
            %603 = sbr.rel target = $region279
          $region284: #{tpu_custom_call.1} parent=276 // loop_exit
            _
        $region277: #{tpu_custom_call.1} parent=261 // pred_fallthru
          _
      $region262: #{tpu_custom_call.1} parent=223 // pred_fallthru
        _
      // Predicated region
      $region263: #{tpu_custom_call.1} parent=223 // pred_check
        %p578 = pneg %p574
      $region264: #{tpu_custom_call.1} parent=223 // pred_check_branch
        %580 = sbr.rel (%p578) target = $region266
      $region265: #{tpu_custom_call.1} parent=223 // pred_region
        %s581 = sshllo.u32 0, 1
        loop: start=0, step=1, limit=1
        $region267: #{tpu_custom_call.1} parent=265 // loop_pre_header
          _
        $region268: #{tpu_custom_call.1} parent=265 // loop_header
          %s583 = sphi 0, %s587
          %p584 = scmp.ge.s32.totalorder %s583, 1
          %s588 = sphi %s572, %s572
          %s589 = sphi %s102, %s102
        $region269: #{tpu_custom_call.1} parent=265 // loop_header_branch
          %586 = sbr.rel (%p584) target = $region273
        $region270: #{tpu_custom_call.1} parent=265 // loop_body
          %v590 = vld [vmem:[%s588] sm:%s581]
          %591 = vst [vmem:[%s589] sm:%s581] %v590
        $region271: #{tpu_custom_call.1} parent=265 // loop_footer
          %s587 = sadd.s32 1, %s583
        $region272: #{tpu_custom_call.1} parent=265 // loop_footer_branch
          %582 = sbr.rel target = $region268
        $region273: #{tpu_custom_call.1} parent=265 // loop_exit
          _
      $region266: #{tpu_custom_call.1} parent=223 // pred_fallthru
        _
      // Predicated region
      $region285: #{tpu_custom_call.1} parent=223 // pred_check
        _
      $region286: #{tpu_custom_call.1} parent=223 // pred_check_branch
        %615 = sbr.rel (0) target = $region288
      $region287: #{tpu_custom_call.1} parent=223 // pred_region
        %616 = vsyncadd %s103, 16
      $region288: #{tpu_custom_call.1} parent=223 // pred_fallthru
        _
      %s617 = sld [smem:[#allocation9 + %s510]]
      %s618 = smul.addr %s617, 16
      %s619 = scalar_lea.hbm %s10, %s618
      // Predicated region
      $region289: #{tpu_custom_call.1} parent=223 // pred_check
        _
      $region290: #{tpu_custom_call.1} parent=223 // pred_check_branch
        %621 = sbr.rel target = $region292
      $region291: #{tpu_custom_call.1} parent=223 // pred_region
        %622 = sst [smem:[#allocation15]] [#allocation42]
        %623 = sst [smem:[#allocation16]] [#allocation41]
      $region292: #{tpu_custom_call.1} parent=223 // pred_fallthru
        _
      %625 = shalt.err (0)
      %s627 = sshll.u32 %s151, 4
      %s628 = int_to_ptr.vmem [resolvable:$true] %s627
      %630 = dma.hbm_to_vmem [thread:$0]  %s619, 16, %s628, %s152
      %s631 = sld [smem:[#allocation10 + %s510]]
      %s632 = smul.addr %s631, 16
      %s633 = scalar_lea.hbm %s11, %s632
      // Predicated region
      $region293: #{tpu_custom_call.1} parent=223 // pred_check
        _
      $region294: #{tpu_custom_call.1} parent=223 // pred_check_branch
        %635 = sbr.rel target = $region296
      $region295: #{tpu_custom_call.1} parent=223 // pred_region
        %636 = sst [smem:[#allocation15]] [#allocation44]
        %637 = sst [smem:[#allocation16]] [#allocation43]
      $region296: #{tpu_custom_call.1} parent=223 // pred_fallthru
        _
      %639 = shalt.err (0)
      %s641 = sshll.u32 %s167, 4
      %s642 = int_to_ptr.vmem [resolvable:$true] %s641
      %644 = dma.hbm_to_vmem [thread:$0]  %s633, 16, %s642, %s168
      %s645 = sld [smem:[#allocation11 + %s510]]
      %s646 = smul.addr %s645, 16
      %s647 = scalar_lea.hbm %s12, %s646
      // Predicated region
      $region297: #{tpu_custom_call.1} parent=223 // pred_check
        _
      $region298: #{tpu_custom_call.1} parent=223 // pred_check_branch
        %649 = sbr.rel target = $region300
      $region299: #{tpu_custom_call.1} parent=223 // pred_region
        %650 = sst [smem:[#allocation15]] [#allocation46]
        %651 = sst [smem:[#allocation16]] [#allocation45]
      $region300: #{tpu_custom_call.1} parent=223 // pred_fallthru
        _
      %653 = shalt.err (0)
      %s655 = sshll.u32 %s183, 4
      %s656 = int_to_ptr.vmem [resolvable:$true] %s655
      %658 = dma.hbm_to_vmem [thread:$0]  %s647, 16, %s656, %s184
      %s659 = sld [smem:[#allocation12 + %s510]]
      %s660 = scalar_lea.vmem %s13, %s659
      %p662 = scmp.lt.u32.totalorder 1, 8
      %p663 = pneg %p662
      // Predicated region
      $region301: #{tpu_custom_call.1} parent=223 // pred_check
        _
      $region302: #{tpu_custom_call.1} parent=223 // pred_check_branch
        %665 = sbr.rel (%p662) target = $region304
      $region303: #{tpu_custom_call.1} parent=223 // pred_region
        %s680 = sand.u32 1, 7
        %p681 = scmp.eq.s32.totalorder %s680, 0
        %p682 = pneg %p681
        // Predicated region
        $region316: #{tpu_custom_call.1} parent=303 // pred_check
          _
        $region317: #{tpu_custom_call.1} parent=303 // pred_check_branch
          %684 = sbr.rel (%p681) target = $region319
        $region318: #{tpu_custom_call.1} parent=303 // pred_region
          %s685 = sand.u32 1, 7
          %s686 = ssub.s32 1, %s685
          %s687 = scalar_lea.vmem %s660, %s686
          %s688 = ssub.s32 1, %s685
          %s689 = scalar_lea.vmem %s198, %s688 [#allocation2]
          %s690 = sshllo.u32 0, %s685
          loop: start=0, step=1, limit=1
          $region320: #{tpu_custom_call.1} parent=318 // loop_pre_header
            _
          $region321: #{tpu_custom_call.1} parent=318 // loop_header
            %s692 = sphi 0, %s696
            %p693 = scmp.ge.s32.totalorder %s692, 1
            %s697 = sphi %s687, %s687
            %s698 = sphi %s689, %s689
          $region322: #{tpu_custom_call.1} parent=318 // loop_header_branch
            %695 = sbr.rel (%p693) target = $region326
          $region323: #{tpu_custom_call.1} parent=318 // loop_body
            %v699 = vld [vmem:[%s697] sm:%s690]
            %700 = vst [vmem:[%s698] sm:%s690] %v699
          $region324: #{tpu_custom_call.1} parent=318 // loop_footer
            %s696 = sadd.s32 1, %s692
          $region325: #{tpu_custom_call.1} parent=318 // loop_footer_branch
            %691 = sbr.rel target = $region321
          $region326: #{tpu_custom_call.1} parent=318 // loop_exit
            _
        $region319: #{tpu_custom_call.1} parent=303 // pred_fallthru
          _
      $region304: #{tpu_custom_call.1} parent=223 // pred_fallthru
        _
      // Predicated region
      $region305: #{tpu_custom_call.1} parent=223 // pred_check
        %p666 = pneg %p662
      $region306: #{tpu_custom_call.1} parent=223 // pred_check_branch
        %668 = sbr.rel (%p666) target = $region308
      $region307: #{tpu_custom_call.1} parent=223 // pred_region
        %s669 = sshllo.u32 0, 1
        loop: start=0, step=1, limit=1
        $region309: #{tpu_custom_call.1} parent=307 // loop_pre_header
          _
        $region310: #{tpu_custom_call.1} parent=307 // loop_header
          %s671 = sphi 0, %s675
          %p672 = scmp.ge.s32.totalorder %s671, 1
          %s676 = sphi %s660, %s660
          %s677 = sphi %s198, %s198
        $region311: #{tpu_custom_call.1} parent=307 // loop_header_branch
          %674 = sbr.rel (%p672) target = $region315
        $region312: #{tpu_custom_call.1} parent=307 // loop_body
          %v678 = vld [vmem:[%s676] sm:%s669]
          %679 = vst [vmem:[%s677] sm:%s669] %v678
        $region313: #{tpu_custom_call.1} parent=307 // loop_footer
          %s675 = sadd.s32 1, %s671
        $region314: #{tpu_custom_call.1} parent=307 // loop_footer_branch
          %670 = sbr.rel target = $region310
        $region315: #{tpu_custom_call.1} parent=307 // loop_exit
          _
      $region308: #{tpu_custom_call.1} parent=223 // pred_fallthru
        _
      // Predicated region
      $region327: #{tpu_custom_call.1} parent=223 // pred_check
        _
      $region328: #{tpu_custom_call.1} parent=223 // pred_check_branch
        %703 = sbr.rel (0) target = $region330
      $region329: #{tpu_custom_call.1} parent=223 // pred_region
        %704 = vsyncadd %s199, 16
      $region330: #{tpu_custom_call.1} parent=223 // pred_fallthru
        _
    $region224: #{tpu_custom_call.1} parent=111 // pred_fallthru
      _
    %v705 = vld [vmem:[%s271] sm:$0x1]
    %v706 = vld [vmem:[%s286] sm:$0x1]
    %v707 = vmul.f32 %v705, %v706
    %v708 = vld [vmem:[%s334] sm:$0x1]
    %v709 = vmul.f32 %v707, %v708
    %v710 = vld [vmem:[%s383] sm:$0x1]
    %v711 = vmul.f32 %v709, %v710
    %v712 = vld [vmem:[%s399] sm:$0x1]
    %v713 = vmul.f32 %v711, %v712
    %v714 = vld [vmem:[%s415] sm:$0x1]
    %v715 = vmul.f32 %v713, %v714
    %v716 = vld [vmem:[%s430] sm:$0x1]
    %v717 = vmul.f32 %v715, %v716
    %s718 = scalar_lea.vmem [#allocation4], %s266
    %719 = vst [vmem:[%s718] sm:$0x1] %v717
  $region112: #{tpu_custom_call.1} parent=0 // loop_footer
    %s249 = sadd.s32 1, %s245
  $region113: #{tpu_custom_call.1} parent=0 // loop_footer_branch
    %244 = sbr.rel target = $region109
  $region114: #{tpu_custom_call.1} parent=0 // loop_exit
    _
  %v720 = vld [vmem:[#allocation4] sm:$0xff]
  %721 = vadd.xlane.f32.xlu0 %v720
  %v722 = vpop.xlane.xlu0 %721
  %vm723 = vcmask 7168
  %724 = vst.msk [vmem:[%s14] sm:$0xff] %vm723, %v722
  // Predicated region
  $region331: #{tpu_custom_call.1} parent=0 // pred_check
    _
  $region332: #{tpu_custom_call.1} parent=0 // pred_check_branch
    %726 = sbr.rel (0) target = $region334
  $region333: #{tpu_custom_call.1} parent=0 // pred_region
    _
  $region334: #{tpu_custom_call.1} parent=0 // pred_fallthru
    _
  // Predicated region
  $region335: #{tpu_custom_call.1} parent=0 // pred_check
    _
  $region336: #{tpu_custom_call.1} parent=0 // pred_check_branch
    %728 = sbr.rel (0) target = $region338
  $region337: #{tpu_custom_call.1} parent=0 // pred_region
    _
  $region338: #{tpu_custom_call.1} parent=0 // pred_fallthru
    _
  %729 = vsyncmov [#allocation3]
  %s730 = vpop.sfrf %729
  %p731 = scmp.eq.s32.totalorder %s730, 0
  %p732 = pneg %p731
  %734 = shalt.err (%p732)
  %s735 = scalar_lea.sflag [#allocation3], 1
  %736 = vsyncmov %s735
  %s737 = vpop.sfrf %736
  %p738 = scmp.eq.s32.totalorder %s737, 0
  %p739 = pneg %p738
  %741 = shalt.err (%p739)
  %s742 = scalar_lea.sflag [#allocation3], 2
  %743 = vsyncmov %s742
  %s744 = vpop.sfrf %743
  %p745 = scmp.eq.s32.totalorder %s744, 0
  %p746 = pneg %p745
  %748 = shalt.err (%p746)
  %s749 = scalar_lea.sflag [#allocation3], 3
  %750 = vsyncmov %s749
  %s751 = vpop.sfrf %750
  %p752 = scmp.eq.s32.totalorder %s751, 0
  %p753 = pneg %p752
  %755 = shalt.err (%p753)
  %s756 = scalar_lea.sflag [#allocation3], 4
  %757 = vsyncmov %s756
  %s758 = vpop.sfrf %757
  %p759 = scmp.eq.s32.totalorder %s758, 0
  %p760 = pneg %p759
  %762 = shalt.err (%p760)
  %s763 = scalar_lea.sflag [#allocation3], 5
  %764 = vsyncmov %s763
  %s765 = vpop.sfrf %764
  %p766 = scmp.eq.s32.totalorder %s765, 0
  %p767 = pneg %p766
  %769 = shalt.err (%p767)
  %s770 = scalar_lea.sflag [#allocation3], 6
  %771 = vsyncmov %s770
  %s772 = vpop.sfrf %771
  %p773 = scmp.eq.s32.totalorder %s772, 0
  %p774 = pneg %p773
  %776 = shalt.err (%p774)
  %s777 = scalar_lea.sflag [#allocation3], 7
  %778 = vsyncmov %s777
  %s779 = vpop.sfrf %778
  %p780 = scmp.eq.s32.totalorder %s779, 0
  %p781 = pneg %p780
  %783 = shalt.err (%p781)
  %s784 = scalar_lea.sflag [#allocation3], 8
  %785 = vsyncmov %s784
  %s786 = vpop.sfrf %785
  %p787 = scmp.eq.s32.totalorder %s786, 0
  %p788 = pneg %p787
  %790 = shalt.err (%p788)
  %s791 = scalar_lea.sflag [#allocation3], 9
  %792 = vsyncmov %s791
  %s793 = vpop.sfrf %792
  %p794 = scmp.eq.s32.totalorder %s793, 0
  %p795 = pneg %p794
  %797 = shalt.err (%p795)
  %s798 = scalar_lea.sflag [#allocation3], 10
  %799 = vsyncmov %s798
  %s800 = vpop.sfrf %799
  %p801 = scmp.eq.s32.totalorder %s800, 0
  %p802 = pneg %p801
  %804 = shalt.err (%p802)
  %s805 = scalar_lea.sflag [#allocation3], 11
  %806 = vsyncmov %s805
  %s807 = vpop.sfrf %806
  %p808 = scmp.eq.s32.totalorder %s807, 0
  %p809 = pneg %p808
  %811 = shalt.err (%p809)
  %s812 = scalar_lea.sflag [#allocation3], 12
  %813 = vsyncmov %s812
  %s814 = vpop.sfrf %813
  %p815 = scmp.eq.s32.totalorder %s814, 0
  %p816 = pneg %p815
  %818 = shalt.err (%p816)
  %s819 = scalar_lea.sflag [#allocation3], 13
  %820 = vsyncmov %s819
  %s821 = vpop.sfrf %820
  %p822 = scmp.eq.s32.totalorder %s821, 0
  %p823 = pneg %p822
  %825 = shalt.err (%p823)

</llo_original>
